<compile_context>
chip_gen: v7x
topology: tpu7x:2x2x1
jax: 0.10.0
libtpu: 0.0.40
codegen_flags: <defaults>
</compile_context>

<pallas_src>
import jax
import jax.numpy as jnp
from jax import lax
from jax.experimental import pallas as pl
from jax.experimental.pallas import tpu as pltpu


def _round_up(x, m):
    return ((x + m - 1) // m) * m


# ---------------------------------------------------------------------------
# Fused Pallas kernel: expand(1x1) -> depthwise(3x3) -> project(1x1)
# ---------------------------------------------------------------------------

def _make_fused_kernel(H, W, Ho, Wo, stride, has_expand, use_res):
    def kernel(*refs):
        if has_expand:
            (x_ref, we_ref, s1_ref, b1_ref,
             wdw_ref, s2_ref, b2_ref,
             wp_ref, s3_ref, b3_ref,
             o_ref, pad_ref) = refs
        else:
            (x_ref,
             wdw_ref, s2_ref, b2_ref,
             wp_ref, s3_ref, b3_ref,
             o_ref, pad_ref) = refs

        k = pl.program_id(1)
        nk = pl.num_programs(1)

        # Zero the halo scratch once per image.  The interior is overwritten
        # below; only the 1-pixel border must stay zero (the depthwise pads
        # AFTER the expand, so the halo is zero in the *expanded* domain).
        @pl.when(k == 0)
        def _():
            pad_ref[...] = jnp.zeros_like(pad_ref)

        x = x_ref[0]                                   # (H*W, Cin_p) f32, VMEM-resident

        # --- 1x1 expand conv + folded BN + ReLU6 (this hidden-channel block) ---
        if has_expand:
            h = jnp.dot(x, we_ref[...], preferred_element_type=jnp.float32)
            h = h * s1_ref[...] + b1_ref[...]
            h = jnp.clip(h, 0.0, 6.0)
        else:
            h = x                                      # expand_ratio == 1 path
        tk = h.shape[-1]
        pad_ref[1:H + 1, 1:W + 1, :] = h.reshape(H, W, tk)

        # --- 3x3 depthwise conv (stride baked in) + folded BN + ReLU6 ---
        wdw = wdw_ref[...]                             # (9, tk)

        def tap(kh, kw):
            if stride == 1:
                return pad_ref[kh:kh + Ho, kw:kw + Wo, :]
            # compute only the strided output positions
            return pad_ref[pl.ds(kh, Ho, stride), pl.ds(kw, Wo, stride), :]

        acc = tap(0, 0) * wdw[0]                       # init with first tap
        for kh in range(3):
            for kw in range(3):
                if kh == 0 and kw == 0:
                    continue
                acc = acc + tap(kh, kw) * wdw[kh * 3 + kw]
        z = jnp.clip(acc * s2_ref[...] + b2_ref[...], 0.0, 6.0)   # (Ho, Wo, tk)

        # --- 1x1 project conv: partial sums accumulated over hidden blocks ---
        y = jnp.dot(z.reshape(Ho * Wo, tk), wp_ref[...],
                    preferred_element_type=jnp.float32)           # (Ho*Wo, Cout_p)

        @pl.when(k == 0)
        def _():
            o_ref[0] = y

        @pl.when(k > 0)
        def _():
            o_ref[0] = o_ref[0] + y

        # --- folded BN of the project conv (+ residual) on the full sum ---
        @pl.when(k == nk - 1)
        def _():
            out = o_ref[0] * s3_ref[...] + b3_ref[...]
            if use_res:
                out = out + x                          # inp==oup, stride==1 here
            o_ref[0] = out

    return kernel


def _fused_block(x2d, params, *, H, W, Ho, Wo, stride, has_expand, use_res,
                 hid_block):
    N, HW, cin_p = x2d.shape
    chid_p = params["w_dw"].shape[-1]
    cout_p = params["w_proj"].shape[-1]
    tk = hid_block
    kb = chid_p // tk

    in_specs = [pl.BlockSpec((1, HW, cin_p), lambda n, k: (n, 0, 0))]
    args = [x2d]
    if has_expand:
        in_specs += [
            pl.BlockSpec((cin_p, tk), lambda n, k: (0, k)),
            pl.BlockSpec((1, tk), lambda n, k: (0, k)),
            pl.BlockSpec((1, tk), lambda n, k: (0, k)),
        ]
        args += [params["w_exp"], params["s1"], params["b1"]]
    in_specs += [
        pl.BlockSpec((9, tk), lambda n, k: (0, k)),
        pl.BlockSpec((1, tk), lambda n, k: (0, k)),
        pl.BlockSpec((1, tk), lambda n, k: (0, k)),
        pl.BlockSpec((tk, cout_p), lambda n, k: (k, 0)),
        pl.BlockSpec((1, cout_p), lambda n, k: (0, 0)),
        pl.BlockSpec((1, cout_p), lambda n, k: (0, 0)),
    ]
    args += [params["w_dw"], params["s2"], params["b2"],
             params["w_proj"], params["s3"], params["b3"]]

    return pl.pallas_call(
        _make_fused_kernel(H, W, Ho, Wo, stride, has_expand, use_res),
        out_shape=jax.ShapeDtypeStruct((N, Ho * Wo, cout_p), jnp.float32),
        grid=(N, kb),
        in_specs=in_specs,
        out_specs=pl.BlockSpec((1, Ho * Wo, cout_p), lambda n, k: (n, 0, 0)),
        scratch_shapes=[pltpu.VMEM((H + 2, W + 2, tk), jnp.float32)],
        compiler_params=pltpu.CompilerParams(
            dimension_semantics=("parallel", "arbitrary")),
    )(*args)


# ---------------------------------------------------------------------------
# Module wrapper with deterministic parameter init (BN folded into scale/bias)
# ---------------------------------------------------------------------------

class InvertedResidualPallas:
    def __init__(self, inp, oup, stride, expand_ratio, key):
        assert stride in (1, 2)
        self.inp, self.oup, self.stride = inp, oup, stride
        self.expand_ratio = expand_ratio
        self.hidden = int(round(inp * expand_ratio))
        self.use_res_connect = (stride == 1) and (inp == oup)

        keys = jax.random.split(key, 6)

        def bn_fold(k, c):
            kg, kb, km, kv = jax.random.split(k, 4)
            gamma = 1.0 + 0.1 * jax.random.normal(kg, (c,), jnp.float32)
            beta = 0.1 * jax.random.normal(kb, (c,), jnp.float32)
            mean = 0.1 * jax.random.normal(km, (c,), jnp.float32)
            var = jnp.abs(jax.random.normal(kv, (c,), jnp.float32)) + 1.0
            scale = gamma / jnp.sqrt(var + 1e-5)
            return scale, beta - mean * scale

        if expand_ratio != 1:
            self.w_exp = 0.1 * jax.random.normal(keys[0], (inp, self.hidden), jnp.float32)
            self.bn1 = bn_fold(keys[1], self.hidden)
        self.w_dw = 0.1 * jax.random.normal(keys[2], (3, 3, self.hidden), jnp.float32)
        self.bn2 = bn_fold(keys[3], self.hidden)
        self.w_proj = 0.1 * jax.random.normal(keys[4], (self.hidden, oup), jnp.float32)
        self.bn3 = bn_fold(keys[5], oup)

        # ---- lane-dense (multiple-of-128) padded copies for the kernel ----
        self.cin_p = _round_up(inp, 128)
        self.chid_p = _round_up(self.hidden, 128)
        self.cout_p = _round_up(oup, 128)

        def pad2(a, r, c):
            return jnp.pad(a, ((0, r - a.shape[0]), (0, c - a.shape[1])))

        def pad_vec(a, c):
            return jnp.pad(a, (0, c - a.shape[0])).reshape(1, c)

        p = {}
        if expand_ratio != 1:
            p["w_exp"] = pad2(self.w_exp, self.cin_p, self.chid_p)
            p["s1"] = pad_vec(self.bn1[0], self.chid_p)
            p["b1"] = pad_vec(self.bn1[1], self.chid_p)
        p["w_dw"] = pad2(self.w_dw.reshape(9, self.hidden), 9, self.chid_p)
        p["s2"] = pad_vec(self.bn2[0], self.chid_p)
        p["b2"] = pad_vec(self.bn2[1], self.chid_p)
        p["w_proj"] = pad2(self.w_proj, self.chid_p, self.cout_p)
        p["s3"] = pad_vec(self.bn3[0], self.cout_p)
        p["b3"] = pad_vec(self.bn3[1], self.cout_p)
        self.params = p

        # Hidden-channel block size: caps per-step VMEM for wide layers (the
        # hidden axis is the project conv's reduction, accumulated in o_ref).
        tk = min(self.chid_p, 512)
        while self.chid_p % tk:
            tk -= 128
        self.hid_block = tk
        if expand_ratio == 1:
            # depthwise input == block input: keep all channels in one block so
            # the same x block serves the depthwise and the residual.
            self.hid_block = self.chid_p

    def __call__(self, x_nchw):
        # NCHW -> NHWC (channels on the 128-lane axis); back to NCHW at the end.
        # TODO(synk): hoist these transposes when chaining NHWC-internal blocks.
        x = jnp.transpose(x_nchw, (0, 2, 3, 1)).astype(jnp.float32)
        N, H, W, _ = x.shape
        s = self.stride
        Ho = (H - 1) // s + 1
        Wo = (W - 1) // s + 1

        x_p = jnp.pad(x, ((0, 0), (0, 0), (0, 0), (0, self.cin_p - self.inp)))
        x2d = x_p.reshape(N, H * W, self.cin_p)

        out2d = _fused_block(
            x2d, self.params, H=H, W=W, Ho=Ho, Wo=Wo, stride=s,
            has_expand=(self.expand_ratio != 1), use_res=self.use_res_connect,
            hid_block=self.hid_block)

        out = out2d.reshape(N, Ho, Wo, self.cout_p)[..., :self.oup]
        return jnp.transpose(out, (0, 3, 1, 2))


# ---------------------------------------------------------------------------
# Pure-JAX reference (lax convs) for correctness check
# ---------------------------------------------------------------------------

def ref_forward(block, x_nchw):
    x = jnp.transpose(x_nchw, (0, 2, 3, 1)).astype(jnp.float32)
    dn = ("NHWC", "HWIO", "NHWC")
    y = x
    if block.expand_ratio != 1:
        y = lax.conv_general_dilated(
            y, block.w_exp.reshape(1, 1, block.inp, block.hidden),
            (1, 1), "VALID", dimension_numbers=dn)
        y = jnp.clip(y * block.bn1[0] + block.bn1[1], 0.0, 6.0)
    y = lax.conv_general_dilated(
        y, block.w_dw.reshape(3, 3, 1, block.hidden),
        (block.stride, block.stride), ((1, 1), (1, 1)),
        dimension_numbers=dn, feature_group_count=block.hidden)
    y = jnp.clip(y * block.bn2[0] + block.bn2[1], 0.0, 6.0)
    y = lax.conv_general_dilated(
        y, block.w_proj.reshape(1, 1, block.hidden, block.oup),
        (1, 1), "VALID", dimension_numbers=dn)
    y = y * block.bn3[0] + block.bn3[1]
    if block.use_res_connect:
        y = y + x
    return jnp.transpose(y, (0, 3, 1, 2))


if __name__ == "__main__":
    key = jax.random.PRNGKey(0)
    kx, kx3, kp1, kp2, kp3 = jax.random.split(key, 5)

    # NCHW input, matching the PyTorch module's convention.
    x = jax.random.normal(kx, (2, 8, 16, 16), jnp.float32)

    # 1) stride=1, expand_ratio=4, inp==oup -> residual + full 3-conv path.
    blk1 = InvertedResidualPallas(inp=8, oup=8, stride=1, expand_ratio=4, key=kp1)
    out1 = jax.block_until_ready(blk1(x))
    ref1 = ref_forward(blk1, x)
    assert out1.shape == (2, 8, 16, 16), out1.shape
    assert jnp.allclose(out1, ref1, atol=2e-4, rtol=2e-4), \
        float(jnp.abs(out1 - ref1).max())

    # 2) stride=2 downsampling block (no residual), stride handled in-kernel.
    blk2 = InvertedResidualPallas(inp=8, oup=16, stride=2, expand_ratio=4, key=kp2)
    out2 = jax.block_until_ready(blk2(x))
    ref2 = ref_forward(blk2, x)
    assert out2.shape == (2, 16, 8, 8), out2.shape
    assert jnp.allclose(out2, ref2, atol=2e-4, rtol=2e-4), \
        float(jnp.abs(out2 - ref2).max())

    # 3) expand_ratio=1 path (no expand conv) with residual.
    x3 = jax.random.normal(kx3, (2, 16, 16, 16), jnp.float32)
    blk3 = InvertedResidualPallas(inp=16, oup=16, stride=1, expand_ratio=1, key=kp3)
    out3 = jax.block_until_ready(blk3(x3))
    ref3 = ref_forward(blk3, x3)
    assert out3.shape == (2, 16, 16, 16), out3.shape
    assert jnp.allclose(out3, ref3, atol=2e-4, rtol=2e-4), \
        float(jnp.abs(out3 - ref3).max())

    print("KERNEL_OK")
</pallas_src>

<mosaic_0001>
module attributes {stable_mosaic.version = 11 : i64} {
  func.func @kernel(%arg0: i32, %arg1: i32, %arg2: memref<1x256x128xf32, #tpu.memory_space<vmem>>, %arg3: memref<128x128xf32, #tpu.memory_space<vmem>>, %arg4: memref<1x128xf32, #tpu.memory_space<vmem>>, %arg5: memref<1x128xf32, #tpu.memory_space<vmem>>, %arg6: memref<9x128xf32, #tpu.memory_space<vmem>>, %arg7: memref<1x128xf32, #tpu.memory_space<vmem>>, %arg8: memref<1x128xf32, #tpu.memory_space<vmem>>, %arg9: memref<128x128xf32, #tpu.memory_space<vmem>>, %arg10: memref<1x128xf32, #tpu.memory_space<vmem>>, %arg11: memref<1x128xf32, #tpu.memory_space<vmem>>, %arg12: memref<1x256x128xf32, #tpu.memory_space<vmem>>, %arg13: memref<18x18x128xf32, #tpu.memory_space<vmem>>) attributes {dimension_semantics = [#tpu.dimension_semantics<parallel>, #tpu.dimension_semantics<arbitrary>], iteration_bounds = array<i64: 2, 1>, scalar_prefetch = 0 : i64, scratch_operands = 1 : i64, tpu.core_type = #tpu.core_type<tc>, window_params = [{transform_indices = @transform_0, window_bounds = array<i64: 1, 256, 128>}, {transform_indices = @transform_1, window_bounds = array<i64: 128, 128>}, {transform_indices = @transform_2, window_bounds = array<i64: 1, 128>}, {transform_indices = @transform_3, window_bounds = array<i64: 1, 128>}, {transform_indices = @transform_4, window_bounds = array<i64: 9, 128>}, {transform_indices = @transform_5, window_bounds = array<i64: 1, 128>}, {transform_indices = @transform_6, window_bounds = array<i64: 1, 128>}, {transform_indices = @transform_7, window_bounds = array<i64: 128, 128>}, {pipeline_mode = #tpu.pipeline_mode<synchronous>, transform_indices = @transform_8, window_bounds = array<i64: 1, 128>}, {pipeline_mode = #tpu.pipeline_mode<synchronous>, transform_indices = @transform_9, window_bounds = array<i64: 1, 128>}, {transform_indices = @transform_10, window_bounds = array<i64: 1, 256, 128>}]} {
    %c0_i32 = arith.constant 0 : i32
    %0 = arith.cmpi eq, %arg1, %c0_i32 : i32
    %1 = arith.extui %0 : i1 to i32
    %c0_i32_0 = arith.constant 0 : i32
    %2 = arith.cmpi ne, %1, %c0_i32_0 : i32
    scf.if %2 {
      %cst_56 = arith.constant 0.000000e+00 : f32
      %106 = vector.broadcast %cst_56 : f32 to vector<18x18x128xf32>
      %c0_57 = arith.constant 0 : index
      %c0_58 = arith.constant 0 : index
      %c0_59 = arith.constant 0 : index
      %107 = vector.load %arg13[%c0_57, %c0_58, %c0_59] : memref<18x18x128xf32, #tpu.memory_space<vmem>>, vector<18x18x128xf32>
      tpu.vector_store %arg13[%c0_57, %c0_58, %c0_59], %106 {strides = array<i32>} : memref<18x18x128xf32, #tpu.memory_space<vmem>>, vector<18x18x128xf32>,
    } else {
    }
    %c0 = arith.constant 0 : index
    %c0_1 = arith.constant 0 : index
    %c0_2 = arith.constant 0 : index
    %3 = vector.load %arg2[%c0, %c0_1, %c0_2] : memref<1x256x128xf32, #tpu.memory_space<vmem>>, vector<1x256x128xf32>
    %4 = vector.shape_cast %3 : vector<1x256x128xf32> to vector<256x128xf32>
    %c0_3 = arith.constant 0 : index
    %c0_4 = arith.constant 0 : index
    %5 = vector.load %arg3[%c0_3, %c0_4] : memref<128x128xf32, #tpu.memory_space<vmem>>, vector<128x128xf32>
    %cst = arith.constant dense<0.000000e+00> : vector<256x128xf32>
    %6 = tpu.matmul %4, %5, %cst {dimension_numbers = #tpu.dot_dimension_numbers<[1], [0], [0], [1], [0, 0, 1, 1], [], []>} : vector<256x128xf32>, vector<128x128xf32>, vector<256x128xf32> -> vector<256x128xf32>
    %c0_5 = arith.constant 0 : index
    %c0_6 = arith.constant 0 : index
    %7 = vector.load %arg4[%c0_5, %c0_6] : memref<1x128xf32, #tpu.memory_space<vmem>>, vector<1x128xf32>
    %8 = vector.broadcast %7 : vector<1x128xf32> to vector<256x128xf32>
    %9 = arith.mulf %6, %8 : vector<256x128xf32>
    %c0_7 = arith.constant 0 : index
    %c0_8 = arith.constant 0 : index
    %10 = vector.load %arg5[%c0_7, %c0_8] : memref<1x128xf32, #tpu.memory_space<vmem>>, vector<1x128xf32>
    %11 = vector.broadcast %10 : vector<1x128xf32> to vector<256x128xf32>
    %12 = arith.addf %9, %11 : vector<256x128xf32>
    %cst_9 = arith.constant 0.000000e+00 : f32
    %cst_10 = arith.constant 6.000000e+00 : f32
    %13 = vector.broadcast %cst_9 : f32 to vector<256x128xf32>
    %14 = arith.maximumf %13, %12 : vector<256x128xf32>
    %15 = vector.broadcast %cst_10 : f32 to vector<256x128xf32>
    %16 = arith.minimumf %15, %14 : vector<256x128xf32>
    %17 = vector.shape_cast %16 : vector<256x128xf32> to vector<16x16x128xf32>
    %c1 = arith.constant 1 : index
    %c1_11 = arith.constant 1 : index
    %c0_12 = arith.constant 0 : index
    %18 = vector.load %arg13[%c1, %c1_11, %c0_12] : memref<18x18x128xf32, #tpu.memory_space<vmem>>, vector<16x16x128xf32>
    tpu.vector_store %arg13[%c1, %c1_11, %c0_12], %17 {strides = array<i32>} : memref<18x18x128xf32, #tpu.memory_space<vmem>>, vector<16x16x128xf32>,
    %c0_13 = arith.constant 0 : index
    %c0_14 = arith.constant 0 : index
    %19 = vector.load %arg6[%c0_13, %c0_14] : memref<9x128xf32, #tpu.memory_space<vmem>>, vector<9x128xf32>
    %c0_15 = arith.constant 0 : index
    %c0_16 = arith.constant 0 : index
    %c0_17 = arith.constant 0 : index
    %20 = vector.load %arg13[%c0_15, %c0_16, %c0_17] : memref<18x18x128xf32, #tpu.memory_space<vmem>>, vector<16x16x128xf32>
    %21 = vector.extract_strided_slice %19 {offsets = [0, 0], sizes = [1, 128], strides = [1, 1]} : vector<9x128xf32> to vector<1x128xf32>
    %22 = vector.shape_cast %21 : vector<1x128xf32> to vector<128xf32>
    %23 = vector.shape_cast %22 : vector<128xf32> to vector<1x1x128xf32>
    %24 = vector.broadcast %23 : vector<1x1x128xf32> to vector<16x16x128xf32>
    %25 = arith.mulf %20, %24 : vector<16x16x128xf32>
    %c0_18 = arith.constant 0 : index
    %c1_19 = arith.constant 1 : index
    %c0_20 = arith.constant 0 : index
    %26 = vector.load %arg13[%c0_18, %c1_19, %c0_20] : memref<18x18x128xf32, #tpu.memory_space<vmem>>, vector<16x16x128xf32>
    %27 = vector.extract_strided_slice %19 {offsets = [1, 0], sizes = [1, 128], strides = [1, 1]} : vector<9x128xf32> to vector<1x128xf32>
    %28 = vector.shape_cast %27 : vector<1x128xf32> to vector<128xf32>
    %29 = vector.shape_cast %28 : vector<128xf32> to vector<1x1x128xf32>
    %30 = vector.broadcast %29 : vector<1x1x128xf32> to vector<16x16x128xf32>
    %31 = arith.mulf %26, %30 : vector<16x16x128xf32>
    %32 = arith.addf %25, %31 : vector<16x16x128xf32>
    %c0_21 = arith.constant 0 : index
    %c2 = arith.constant 2 : index
    %c0_22 = arith.constant 0 : index
    %33 = vector.load %arg13[%c0_21, %c2, %c0_22] : memref<18x18x128xf32, #tpu.memory_space<vmem>>, vector<16x16x128xf32>
    %34 = vector.extract_strided_slice %19 {offsets = [2, 0], sizes = [1, 128], strides = [1, 1]} : vector<9x128xf32> to vector<1x128xf32>
    %35 = vector.shape_cast %34 : vector<1x128xf32> to vector<128xf32>
    %36 = vector.shape_cast %35 : vector<128xf32> to vector<1x1x128xf32>
    %37 = vector.broadcast %36 : vector<1x1x128xf32> to vector<16x16x128xf32>
    %38 = arith.mulf %33, %37 : vector<16x16x128xf32>
    %39 = arith.addf %32, %38 : vector<16x16x128xf32>
    %c1_23 = arith.constant 1 : index
    %c0_24 = arith.constant 0 : index
    %c0_25 = arith.constant 0 : index
    %40 = vector.load %arg13[%c1_23, %c0_24, %c0_25] : memref<18x18x128xf32, #tpu.memory_space<vmem>>, vector<16x16x128xf32>
    %41 = vector.extract_strided_slice %19 {offsets = [3, 0], sizes = [1, 128], strides = [1, 1]} : vector<9x128xf32> to vector<1x128xf32>
    %42 = vector.shape_cast %41 : vector<1x128xf32> to vector<128xf32>
    %43 = vector.shape_cast %42 : vector<128xf32> to vector<1x1x128xf32>
    %44 = vector.broadcast %43 : vector<1x1x128xf32> to vector<16x16x128xf32>
    %45 = arith.mulf %40, %44 : vector<16x16x128xf32>
    %46 = arith.addf %39, %45 : vector<16x16x128xf32>
    %c1_26 = arith.constant 1 : index
    %c1_27 = arith.constant 1 : index
    %c0_28 = arith.constant 0 : index
    %47 = vector.load %arg13[%c1_26, %c1_27, %c0_28] : memref<18x18x128xf32, #tpu.memory_space<vmem>>, vector<16x16x128xf32>
    %48 = vector.extract_strided_slice %19 {offsets = [4, 0], sizes = [1, 128], strides = [1, 1]} : vector<9x128xf32> to vector<1x128xf32>
    %49 = vector.shape_cast %48 : vector<1x128xf32> to vector<128xf32>
    %50 = vector.shape_cast %49 : vector<128xf32> to vector<1x1x128xf32>
    %51 = vector.broadcast %50 : vector<1x1x128xf32> to vector<16x16x128xf32>
    %52 = arith.mulf %47, %51 : vector<16x16x128xf32>
    %53 = arith.addf %46, %52 : vector<16x16x128xf32>
    %c1_29 = arith.constant 1 : index
    %c2_30 = arith.constant 2 : index
    %c0_31 = arith.constant 0 : index
    %54 = vector.load %arg13[%c1_29, %c2_30, %c0_31] : memref<18x18x128xf32, #tpu.memory_space<vmem>>, vector<16x16x128xf32>
    %55 = vector.extract_strided_slice %19 {offsets = [5, 0], sizes = [1, 128], strides = [1, 1]} : vector<9x128xf32> to vector<1x128xf32>
    %56 = vector.shape_cast %55 : vector<1x128xf32> to vector<128xf32>
    %57 = vector.shape_cast %56 : vector<128xf32> to vector<1x1x128xf32>
    %58 = vector.broadcast %57 : vector<1x1x128xf32> to vector<16x16x128xf32>
    %59 = arith.mulf %54, %58 : vector<16x16x128xf32>
    %60 = arith.addf %53, %59 : vector<16x16x128xf32>
    %c2_32 = arith.constant 2 : index
    %c0_33 = arith.constant 0 : index
    %c0_34 = arith.constant 0 : index
    %61 = vector.load %arg13[%c2_32, %c0_33, %c0_34] : memref<18x18x128xf32, #tpu.memory_space<vmem>>, vector<16x16x128xf32>
    %62 = vector.extract_strided_slice %19 {offsets = [6, 0], sizes = [1, 128], strides = [1, 1]} : vector<9x128xf32> to vector<1x128xf32>
    %63 = vector.shape_cast %62 : vector<1x128xf32> to vector<128xf32>
    %64 = vector.shape_cast %63 : vector<128xf32> to vector<1x1x128xf32>
    %65 = vector.broadcast %64 : vector<1x1x128xf32> to vector<16x16x128xf32>
    %66 = arith.mulf %61, %65 : vector<16x16x128xf32>
    %67 = arith.addf %60, %66 : vector<16x16x128xf32>
    %c2_35 = arith.constant 2 : index
    %c1_36 = arith.constant 1 : index
    %c0_37 = arith.constant 0 : index
    %68 = vector.load %arg13[%c2_35, %c1_36, %c0_37] : memref<18x18x128xf32, #tpu.memory_space<vmem>>, vector<16x16x128xf32>
    %69 = vector.extract_strided_slice %19 {offsets = [7, 0], sizes = [1, 128], strides = [1, 1]} : vector<9x128xf32> to vector<1x128xf32>
    %70 = vector.shape_cast %69 : vector<1x128xf32> to vector<128xf32>
    %71 = vector.shape_cast %70 : vector<128xf32> to vector<1x1x128xf32>
    %72 = vector.broadcast %71 : vector<1x1x128xf32> to vector<16x16x128xf32>
    %73 = arith.mulf %68, %72 : vector<16x16x128xf32>
    %74 = arith.addf %67, %73 : vector<16x16x128xf32>
    %c2_38 = arith.constant 2 : index
    %c2_39 = arith.constant 2 : index
    %c0_40 = arith.constant 0 : index
    %75 = vector.load %arg13[%c2_38, %c2_39, %c0_40] : memref<18x18x128xf32, #tpu.memory_space<vmem>>, vector<16x16x128xf32>
    %76 = vector.extract_strided_slice %19 {offsets = [8, 0], sizes = [1, 128], strides = [1, 1]} : vector<9x128xf32> to vector<1x128xf32>
    %77 = vector.shape_cast %76 : vector<1x128xf32> to vector<128xf32>
    %78 = vector.shape_cast %77 : vector<128xf32> to vector<1x1x128xf32>
    %79 = vector.broadcast %78 : vector<1x1x128xf32> to vector<16x16x128xf32>
    %80 = arith.mulf %75, %79 : vector<16x16x128xf32>
    %81 = arith.addf %74, %80 : vector<16x16x128xf32>
    %c0_41 = arith.constant 0 : index
    %c0_42 = arith.constant 0 : index
    %82 = vector.load %arg7[%c0_41, %c0_42] : memref<1x128xf32, #tpu.memory_space<vmem>>, vector<1x128xf32>
    %83 = vector.shape_cast %82 : vector<1x128xf32> to vector<1x1x128xf32>
    %84 = vector.broadcast %83 : vector<1x1x128xf32> to vector<16x16x128xf32>
    %85 = arith.mulf %81, %84 : vector<16x16x128xf32>
    %c0_43 = arith.constant 0 : index
    %c0_44 = arith.constant 0 : index
    %86 = vector.load %arg8[%c0_43, %c0_44] : memref<1x128xf32, #tpu.memory_space<vmem>>, vector<1x128xf32>
    %87 = vector.shape_cast %86 : vector<1x128xf32> to vector<1x1x128xf32>
    %88 = vector.broadcast %87 : vector<1x1x128xf32> to vector<16x16x128xf32>
    %89 = arith.addf %85, %88 : vector<16x16x128xf32>
    %cst_45 = arith.constant 0.000000e+00 : f32
    %cst_46 = arith.constant 6.000000e+00 : f32
    %90 = vector.broadcast %cst_45 : f32 to vector<16x16x128xf32>
    %91 = arith.maximumf %90, %89 : vector<16x16x128xf32>
    %92 = vector.broadcast %cst_46 : f32 to vector<16x16x128xf32>
    %93 = arith.minimumf %92, %91 : vector<16x16x128xf32>
    %94 = vector.shape_cast %93 : vector<16x16x128xf32> to vector<256x128xf32>
    %c0_47 = arith.constant 0 : index
    %c0_48 = arith.constant 0 : index
    %95 = vector.load %arg9[%c0_47, %c0_48] : memref<128x128xf32, #tpu.memory_space<vmem>>, vector<128x128xf32>
    %cst_49 = arith.constant dense<0.000000e+00> : vector<256x128xf32>
    %96 = tpu.matmul %94, %95, %cst_49 {dimension_numbers = #tpu.dot_dimension_numbers<[1], [0], [0], [1], [0, 0, 1, 1], [], []>} : vector<256x128xf32>, vector<128x128xf32>, vector<256x128xf32> -> vector<256x128xf32>
    %c0_i32_50 = arith.constant 0 : i32
    %97 = arith.cmpi eq, %arg1, %c0_i32_50 : i32
    %98 = arith.extui %97 : i1 to i32
    %c0_i32_51 = arith.constant 0 : i32
    %99 = arith.cmpi ne, %98, %c0_i32_51 : i32
    scf.if %99 {
      %c0_56 = arith.constant 0 : index
      %c0_57 = arith.constant 0 : index
      %c0_58 = arith.constant 0 : index
      %106 = vector.load %arg12[%c0_56, %c0_57, %c0_58] : memref<1x256x128xf32, #tpu.memory_space<vmem>>, vector<1x256x128xf32>
      %107 = vector.shape_cast %106 : vector<1x256x128xf32> to vector<256x128xf32>
      %108 = vector.shape_cast %96 : vector<256x128xf32> to vector<1x256x128xf32>
      tpu.vector_store %arg12[%c0_56, %c0_57, %c0_58], %108 {strides = array<i32>} : memref<1x256x128xf32, #tpu.memory_space<vmem>>, vector<1x256x128xf32>,
    } else {
    }
    %c0_i32_52 = arith.constant 0 : i32
    %100 = arith.cmpi sgt, %arg1, %c0_i32_52 : i32
    %101 = arith.extui %100 : i1 to i32
    %c0_i32_53 = arith.constant 0 : i32
    %102 = arith.cmpi ne, %101, %c0_i32_53 : i32
    scf.if %102 {
      %c0_56 = arith.constant 0 : index
      %c0_57 = arith.constant 0 : index
      %c0_58 = arith.constant 0 : index
      %106 = vector.load %arg12[%c0_56, %c0_57, %c0_58] : memref<1x256x128xf32, #tpu.memory_space<vmem>>, vector<1x256x128xf32>
      %107 = vector.shape_cast %106 : vector<1x256x128xf32> to vector<256x128xf32>
      %108 = arith.addf %107, %96 : vector<256x128xf32>
      %c0_59 = arith.constant 0 : index
      %c0_60 = arith.constant 0 : index
      %c0_61 = arith.constant 0 : index
      %109 = vector.load %arg12[%c0_59, %c0_60, %c0_61] : memref<1x256x128xf32, #tpu.memory_space<vmem>>, vector<1x256x128xf32>
      %110 = vector.shape_cast %109 : vector<1x256x128xf32> to vector<256x128xf32>
      %111 = vector.shape_cast %108 : vector<256x128xf32> to vector<1x256x128xf32>
      tpu.vector_store %arg12[%c0_59, %c0_60, %c0_61], %111 {strides = array<i32>} : memref<1x256x128xf32, #tpu.memory_space<vmem>>, vector<1x256x128xf32>,
    } else {
    }
    %c0_i32_54 = arith.constant 0 : i32
    %103 = arith.cmpi eq, %arg1, %c0_i32_54 : i32
    %104 = arith.extui %103 : i1 to i32
    %c0_i32_55 = arith.constant 0 : i32
    %105 = arith.cmpi ne, %104, %c0_i32_55 : i32
    scf.if %105 {
      %c0_56 = arith.constant 0 : index
      %c0_57 = arith.constant 0 : index
      %c0_58 = arith.constant 0 : index
      %106 = vector.load %arg12[%c0_56, %c0_57, %c0_58] : memref<1x256x128xf32, #tpu.memory_space<vmem>>, vector<1x256x128xf32>
      %107 = vector.shape_cast %106 : vector<1x256x128xf32> to vector<256x128xf32>
      %c0_59 = arith.constant 0 : index
      %c0_60 = arith.constant 0 : index
      %108 = vector.load %arg10[%c0_59, %c0_60] : memref<1x128xf32, #tpu.memory_space<vmem>>, vector<1x128xf32>
      %109 = vector.broadcast %108 : vector<1x128xf32> to vector<256x128xf32>
      %110 = arith.mulf %107, %109 : vector<256x128xf32>
      %c0_61 = arith.constant 0 : index
      %c0_62 = arith.constant 0 : index
      %111 = vector.load %arg11[%c0_61, %c0_62] : memref<1x128xf32, #tpu.memory_space<vmem>>, vector<1x128xf32>
      %112 = vector.broadcast %111 : vector<1x128xf32> to vector<256x128xf32>
      %113 = arith.addf %110, %112 : vector<256x128xf32>
      %114 = arith.addf %113, %4 : vector<256x128xf32>
      %c0_63 = arith.constant 0 : index
      %c0_64 = arith.constant 0 : index
      %c0_65 = arith.constant 0 : index
      %115 = vector.load %arg12[%c0_63, %c0_64, %c0_65] : memref<1x256x128xf32, #tpu.memory_space<vmem>>, vector<1x256x128xf32>
      %116 = vector.shape_cast %115 : vector<1x256x128xf32> to vector<256x128xf32>
      %117 = vector.shape_cast %114 : vector<256x128xf32> to vector<1x256x128xf32>
      tpu.vector_store %arg12[%c0_63, %c0_64, %c0_65], %117 {strides = array<i32>} : memref<1x256x128xf32, #tpu.memory_space<vmem>>, vector<1x256x128xf32>,
    } else {
    }
    return
  }
  func.func @transform_0(%arg0: i32, %arg1: i32) -> (i32, i32, i32) {
    %c0_i32 = arith.constant 0 : i32
    %c0_i32_0 = arith.constant 0 : i32
    %c0_i32_1 = arith.constant 0 : i32
    return %arg0, %c0_i32, %c0_i32_0 : i32, i32, i32
  }
  func.func @transform_1(%arg0: i32, %arg1: i32) -> (i32, i32) {
    %c0_i32 = arith.constant 0 : i32
    %c0_i32_0 = arith.constant 0 : i32
    return %c0_i32, %arg1 : i32, i32
  }
  func.func @transform_2(%arg0: i32, %arg1: i32) -> (i32, i32) {
    %c0_i32 = arith.constant 0 : i32
    %c0_i32_0 = arith.constant 0 : i32
    return %c0_i32, %arg1 : i32, i32
  }
  func.func @transform_3(%arg0: i32, %arg1: i32) -> (i32, i32) {
    %c0_i32 = arith.constant 0 : i32
    %c0_i32_0 = arith.constant 0 : i32
    return %c0_i32, %arg1 : i32, i32
  }
  func.func @transform_4(%arg0: i32, %arg1: i32) -> (i32, i32) {
    %c0_i32 = arith.constant 0 : i32
    %c0_i32_0 = arith.constant 0 : i32
    return %c0_i32, %arg1 : i32, i32
  }
  func.func @transform_5(%arg0: i32, %arg1: i32) -> (i32, i32) {
    %c0_i32 = arith.constant 0 : i32
    %c0_i32_0 = arith.constant 0 : i32
    return %c0_i32, %arg1 : i32, i32
  }
  func.func @transform_6(%arg0: i32, %arg1: i32) -> (i32, i32) {
    %c0_i32 = arith.constant 0 : i32
    %c0_i32_0 = arith.constant 0 : i32
    return %c0_i32, %arg1 : i32, i32
  }
  func.func @transform_7(%arg0: i32, %arg1: i32) -> (i32, i32) {
    %c0_i32 = arith.constant 0 : i32
    %c0_i32_0 = arith.constant 0 : i32
    return %arg1, %c0_i32 : i32, i32
  }
  func.func @transform_8(%arg0: i32, %arg1: i32) -> (i32, i32) {
    %c0_i32 = arith.constant 0 : i32
    %c0_i32_0 = arith.constant 0 : i32
    %c0_i32_1 = arith.constant 0 : i32
    return %c0_i32, %c0_i32_0 : i32, i32
  }
  func.func @transform_9(%arg0: i32, %arg1: i32) -> (i32, i32) {
    %c0_i32 = arith.constant 0 : i32
    %c0_i32_0 = arith.constant 0 : i32
    %c0_i32_1 = arith.constant 0 : i32
    return %c0_i32, %c0_i32_0 : i32, i32
  }
  func.func @transform_10(%arg0: i32, %arg1: i32) -> (i32, i32, i32) {
    %c0_i32 = arith.constant 0 : i32
    %c0_i32_0 = arith.constant 0 : i32
    %c0_i32_1 = arith.constant 0 : i32
    return %arg0, %c0_i32, %c0_i32_0 : i32, i32, i32
  }
}

</mosaic_0001>

<llo_original>
// kernel: tpu_custom_call.1
$region0: #{tpu_custom_call.1}
  #allocation0 [shape = 'u32[]', space=smem, size = 0x4, offset = 0x4, fixed_abs, tag = 'smem constant byte address 0x4 - core index']
  #allocation1 [shape = 'u32[144,128]{1,0:T(1,128)}', space=vmem, size = 0x12000, scoped, tag = 'internal scratch']
  #allocation2 [shape = 'f32[18,18,128]{2,1,0:T(8,128)}', space=vmem, size = 0x36000, scoped, tag = 'scratch operand']
  %s0 = inlined_call_operand.hbm [shape: f32[2,256,128], index: 0, kind: input, shape index: {}]
  %s1 = inlined_call_operand.hbm [shape: f32[128,128], index: 1, kind: input, shape index: {}]
  %s2 = inlined_call_operand.vmem [shape: f32[1,128], index: 2, kind: input, shape index: {}]
  %s3 = inlined_call_operand.vmem [shape: f32[1,128], index: 3, kind: input, shape index: {}]
  %s4 = inlined_call_operand.hbm [shape: f32[9,128], index: 4, kind: input, shape index: {}]
  %s5 = inlined_call_operand.vmem [shape: f32[1,128], index: 5, kind: input, shape index: {}]
  %s6 = inlined_call_operand.vmem [shape: f32[1,128], index: 6, kind: input, shape index: {}]
  %s7 = inlined_call_operand.hbm [shape: f32[128,128], index: 7, kind: input, shape index: {}]
  %s8 = inlined_call_operand.vmem [shape: f32[1,128], index: 8, kind: input, shape index: {}]
  %s9 = inlined_call_operand.vmem [shape: f32[1,128], index: 9, kind: input, shape index: {}]
  %s10 = inlined_call_operand.hbm [shape: f32[2,256,128], index: 10, kind: output, shape index: {}]
  %s11 = sld [smem:[#allocation0]]
  $region105: #{tpu_custom_call.1} parent=0
    _
  %s13 = ssub.s32 1, %s11
  %s14 = scalar_select 0, %s13, %s11
  $region1: #{tpu_custom_call.1} parent=0
    #allocation3 [shape = 'u8[262144]{0}', space=vmem, size = 0x40000, scoped, tag = 'input window, operand 0']
    #allocation4 [shape = 's32[2]{0}', space=sflag, size = 0x8, scoped, tag = 'scoped memory for tpu_custom_call.1']
    #allocation5 [shape = 's32[2]{0}', space=sflag, size = 0x8, scoped, tag = 'scoped memory for tpu_custom_call.1']
    #allocation6 [shape = 'u8[65536]{0}', space=vmem, size = 0x10000, scoped, tag = 'input window, operand 1, single buffered']
    #allocation7 [shape = 's32[1]{0}', space=sflag, size = 0x4, scoped, tag = 'scoped memory for tpu_custom_call.1']
    #allocation8 [shape = 'u8[8192]{0}', space=vmem, size = 0x2000, scoped, tag = 'input window, operand 4, single buffered']
    #allocation9 [shape = 'u8[65536]{0}', space=vmem, size = 0x10000, scoped, tag = 'input window, operand 7, single buffered']
    #allocation10 [shape = 's32[1]{0}', space=sflag, size = 0x4, scoped, tag = 'scoped memory for tpu_custom_call.1']
    #allocation11 [shape = 'u8[262144]{0}', space=vmem, size = 0x40000, scoped, tag = 'output window, operand 0']
    %15 = vsyncpa [#allocation4], 0
    %s16 = scalar_lea.sflag [#allocation4], 1
    %17 = vsyncpa %s16, 0
    %18 = vsyncpa [#allocation7], 0
    %19 = vsyncpa [#allocation10], 0
    %20 = vsyncpa [#allocation5], 0
    %s21 = scalar_lea.sflag [#allocation5], 1
    %22 = vsyncpa %s21, 0
    loop: start=0, step=1, limit=4
    $region2: #{tpu_custom_call.1} parent=1 // loop_pre_header
      _
    $region3: #{tpu_custom_call.1} parent=1 // loop_header
      %s24 = sphi 0, %s28
      %p25 = scmp.ge.s32.totalorder %s24, 4
      %s31 = sphi 0, %s43
      %s32 = sphi 0, %s39
      %s33 = sphi 0, %s31
      %s34 = sphi 0, %s32
      %s35 = sphi 0, %s33
      %s36 = sphi 0, %s34
      %s46 = sphi 0, %s48
      %s49 = sphi 0, %s46
      %s50 = sphi 0, %s49
      %s66 = sphi 0, %s50
      %s72 = sphi 0, %s74
      %s75 = sphi 0, %s72
      %s76 = sphi 0, %s75
      %s92 = sphi 0, %s76
      %s98 = sphi 0, %s100
      %s101 = sphi 0, %s98
      %s102 = sphi 0, %s101
      %s118 = sphi 0, %s102
      %s124 = sphi 0, %s126
      %s127 = sphi 0, %s124
      %s128 = sphi 0, %s127
      %s144 = sphi 0, %s128
      %s150 = sphi 0, %s152
      %s153 = sphi 0, %s150
      %s154 = sphi 0, %s153
      %s170 = sphi 0, %s154
      %s176 = sphi 0, %s178
      %s179 = sphi 0, %s176
      %s180 = sphi 0, %s179
      %s196 = sphi 0, %s180
      %s202 = sphi 0, %s204
      %s205 = sphi 0, %s202
      %s206 = sphi 0, %s205
      %s222 = sphi 0, %s206
      %s228 = sphi 0, %s230
      %s231 = sphi 0, %s228
      %s232 = sphi 0, %s231
      %s248 = sphi 0, %s232
      %s252 = sphi 0, %s252
      %s254 = sphi 0, %s252
      %s255 = sphi 0, %s254
      %s269 = sphi 0, %s255
      %s273 = sphi 0, %s273
      %s275 = sphi 0, %s273
      %s276 = sphi 0, %s275
      %s290 = sphi 0, %s276
      %s296 = sphi 0, %s298
      %s299 = sphi 0, %s296
      %s300 = sphi 0, %s299
      %s316 = sphi 0, %s300
    $region4: #{tpu_custom_call.1} parent=1 // loop_header_branch
      %27 = sbr.rel (%p25) target = $region8
    $region5: #{tpu_custom_call.1} parent=1 // loop_body
      %s29 = ssub.s32 %s24, 1
      %s30 = ssub.s32 %s24, 2
      %s37 = sadd.s32 1, %s32
      %p38 = scmp.ge.s32.totalorder %s37, 1
      %s39 = scalar_select %p38, 0, %s37
      %s40 = sadd.s32 1, %s31
      %s41 = scalar_select %p38, %s40, %s31
      %p42 = scmp.ge.s32.totalorder %s41, 2
      %s43 = scalar_select %p42, 0, %s41
      %s44 = ssub.s32 %s31, %s43
      %p45 = scmp.eq.s32.totalorder %s44, 0
      %s47 = sadd.s32 %s46, 1
      %s48 = scalar_select %p45, %s46, %s47
      %p51 = pneg %p45
      %p52 = scmp.eq.s32.totalorder %s24, 1
      %p53 = por %p51, %p52
      %p54 = scmp.ne.s32.totalorder %s46, %s49
      %p55 = scmp.eq.s32.totalorder %s24, 0
      %p56 = por %p54, %p55
      %p57 = scmp.ne.s32.totalorder %s46, %s49
      %p58 = scmp.eq.s32.totalorder %s29, 1
      %p59 = por %p57, %p58
      %p60 = scmp.ne.s32.totalorder %s49, %s50
      %p61 = scmp.eq.s32.totalorder %s29, 0
      %p62 = por %p60, %p61
      %p63 = scmp.ne.s32.totalorder %s49, %s50
      %p64 = scmp.eq.s32.totalorder %s30, 1
      %p65 = por %p63, %p64
      %p67 = scmp.ne.s32.totalorder %s50, %s66
      %p68 = scmp.eq.s32.totalorder %s30, 0
      %p69 = por %p67, %p68
      %s70 = ssub.s32 %s32, %s39
      %p71 = scmp.eq.s32.totalorder %s70, 0
      %s73 = sadd.s32 %s72, 1
      %s74 = scalar_select %p71, %s72, %s73
      %p77 = pneg %p71
      %p78 = scmp.eq.s32.totalorder %s24, 1
      %p79 = por %p77, %p78
      %p80 = scmp.ne.s32.totalorder %s72, %s75
      %p81 = scmp.eq.s32.totalorder %s24, 0
      %p82 = por %p80, %p81
      %p83 = scmp.ne.s32.totalorder %s72, %s75
      %p84 = scmp.eq.s32.totalorder %s29, 1
      %p85 = por %p83, %p84
      %p86 = scmp.ne.s32.totalorder %s75, %s76
      %p87 = scmp.eq.s32.totalorder %s29, 0
      %p88 = por %p86, %p87
      %p89 = scmp.ne.s32.totalorder %s75, %s76
      %p90 = scmp.eq.s32.totalorder %s30, 1
      %p91 = por %p89, %p90
      %p93 = scmp.ne.s32.totalorder %s76, %s92
      %p94 = scmp.eq.s32.totalorder %s30, 0
      %p95 = por %p93, %p94
      %s96 = ssub.s32 %s32, %s39
      %p97 = scmp.eq.s32.totalorder %s96, 0
      %s99 = sadd.s32 %s98, 1
      %s100 = scalar_select %p97, %s98, %s99
      %p103 = pneg %p97
      %p104 = scmp.eq.s32.totalorder %s24, 1
      %p105 = por %p103, %p104
      %p106 = scmp.ne.s32.totalorder %s98, %s101
      %p107 = scmp.eq.s32.totalorder %s24, 0
      %p108 = por %p106, %p107
      %p109 = scmp.ne.s32.totalorder %s98, %s101
      %p110 = scmp.eq.s32.totalorder %s29, 1
      %p111 = por %p109, %p110
      %p112 = scmp.ne.s32.totalorder %s101, %s102
      %p113 = scmp.eq.s32.totalorder %s29, 0
      %p114 = por %p112, %p113
      %p115 = scmp.ne.s32.totalorder %s101, %s102
      %p116 = scmp.eq.s32.totalorder %s30, 1
      %p117 = por %p115, %p116
      %p119 = scmp.ne.s32.totalorder %s102, %s118
      %p120 = scmp.eq.s32.totalorder %s30, 0
      %p121 = por %p119, %p120
      %s122 = ssub.s32 %s32, %s39
      %p123 = scmp.eq.s32.totalorder %s122, 0
      %s125 = sadd.s32 %s124, 1
      %s126 = scalar_select %p123, %s124, %s125
      %p129 = pneg %p123
      %p130 = scmp.eq.s32.totalorder %s24, 1
      %p131 = por %p129, %p130
      %p132 = scmp.ne.s32.totalorder %s124, %s127
      %p133 = scmp.eq.s32.totalorder %s24, 0
      %p134 = por %p132, %p133
      %p135 = scmp.ne.s32.totalorder %s124, %s127
      %p136 = scmp.eq.s32.totalorder %s29, 1
      %p137 = por %p135, %p136
      %p138 = scmp.ne.s32.totalorder %s127, %s128
      %p139 = scmp.eq.s32.totalorder %s29, 0
      %p140 = por %p138, %p139
      %p141 = scmp.ne.s32.totalorder %s127, %s128
      %p142 = scmp.eq.s32.totalorder %s30, 1
      %p143 = por %p141, %p142
      %p145 = scmp.ne.s32.totalorder %s128, %s144
      %p146 = scmp.eq.s32.totalorder %s30, 0
      %p147 = por %p145, %p146
      %s148 = ssub.s32 %s32, %s39
      %p149 = scmp.eq.s32.totalorder %s148, 0
      %s151 = sadd.s32 %s150, 1
      %s152 = scalar_select %p149, %s150, %s151
      %p155 = pneg %p149
      %p156 = scmp.eq.s32.totalorder %s24, 1
      %p157 = por %p155, %p156
      %p158 = scmp.ne.s32.totalorder %s150, %s153
      %p159 = scmp.eq.s32.totalorder %s24, 0
      %p160 = por %p158, %p159
      %p161 = scmp.ne.s32.totalorder %s150, %s153
      %p162 = scmp.eq.s32.totalorder %s29, 1
      %p163 = por %p161, %p162
      %p164 = scmp.ne.s32.totalorder %s153, %s154
      %p165 = scmp.eq.s32.totalorder %s29, 0
      %p166 = por %p164, %p165
      %p167 = scmp.ne.s32.totalorder %s153, %s154
      %p168 = scmp.eq.s32.totalorder %s30, 1
      %p169 = por %p167, %p168
      %p171 = scmp.ne.s32.totalorder %s154, %s170
      %p172 = scmp.eq.s32.totalorder %s30, 0
      %p173 = por %p171, %p172
      %s174 = ssub.s32 %s32, %s39
      %p175 = scmp.eq.s32.totalorder %s174, 0
      %s177 = sadd.s32 %s176, 1
      %s178 = scalar_select %p175, %s176, %s177
      %p181 = pneg %p175
      %p182 = scmp.eq.s32.totalorder %s24, 1
      %p183 = por %p181, %p182
      %p184 = scmp.ne.s32.totalorder %s176, %s179
      %p185 = scmp.eq.s32.totalorder %s24, 0
      %p186 = por %p184, %p185
      %p187 = scmp.ne.s32.totalorder %s176, %s179
      %p188 = scmp.eq.s32.totalorder %s29, 1
      %p189 = por %p187, %p188
      %p190 = scmp.ne.s32.totalorder %s179, %s180
      %p191 = scmp.eq.s32.totalorder %s29, 0
      %p192 = por %p190, %p191
      %p193 = scmp.ne.s32.totalorder %s179, %s180
      %p194 = scmp.eq.s32.totalorder %s30, 1
      %p195 = por %p193, %p194
      %p197 = scmp.ne.s32.totalorder %s180, %s196
      %p198 = scmp.eq.s32.totalorder %s30, 0
      %p199 = por %p197, %p198
      %s200 = ssub.s32 %s32, %s39
      %p201 = scmp.eq.s32.totalorder %s200, 0
      %s203 = sadd.s32 %s202, 1
      %s204 = scalar_select %p201, %s202, %s203
      %p207 = pneg %p201
      %p208 = scmp.eq.s32.totalorder %s24, 1
      %p209 = por %p207, %p208
      %p210 = scmp.ne.s32.totalorder %s202, %s205
      %p211 = scmp.eq.s32.totalorder %s24, 0
      %p212 = por %p210, %p211
      %p213 = scmp.ne.s32.totalorder %s202, %s205
      %p214 = scmp.eq.s32.totalorder %s29, 1
      %p215 = por %p213, %p214
      %p216 = scmp.ne.s32.totalorder %s205, %s206
      %p217 = scmp.eq.s32.totalorder %s29, 0
      %p218 = por %p216, %p217
      %p219 = scmp.ne.s32.totalorder %s205, %s206
      %p220 = scmp.eq.s32.totalorder %s30, 1
      %p221 = por %p219, %p220
      %p223 = scmp.ne.s32.totalorder %s206, %s222
      %p224 = scmp.eq.s32.totalorder %s30, 0
      %p225 = por %p223, %p224
      %s226 = ssub.s32 %s32, %s39
      %p227 = scmp.eq.s32.totalorder %s226, 0
      %s229 = sadd.s32 %s228, 1
      %s230 = scalar_select %p227, %s228, %s229
      %p233 = pneg %p227
      %p234 = scmp.eq.s32.totalorder %s24, 1
      %p235 = por %p233, %p234
      %p236 = scmp.ne.s32.totalorder %s228, %s231
      %p237 = scmp.eq.s32.totalorder %s24, 0
      %p238 = por %p236, %p237
      %p239 = scmp.ne.s32.totalorder %s228, %s231
      %p240 = scmp.eq.s32.totalorder %s29, 1
      %p241 = por %p239, %p240
      %p242 = scmp.ne.s32.totalorder %s231, %s232
      %p243 = scmp.eq.s32.totalorder %s29, 0
      %p244 = por %p242, %p243
      %p245 = scmp.ne.s32.totalorder %s231, %s232
      %p246 = scmp.eq.s32.totalorder %s30, 1
      %p247 = por %p245, %p246
      %p249 = scmp.ne.s32.totalorder %s232, %s248
      %p250 = scmp.eq.s32.totalorder %s30, 0
      %p251 = por %p249, %p250
      %s253 = sadd.s32 %s252, 1
      %p256 = scmp.eq.s32.totalorder %s24, 1
      %p257 = scmp.ne.s32.totalorder %s252, %s254
      %p258 = scmp.eq.s32.totalorder %s24, 0
      %p259 = por %p257, %p258
      %p260 = scmp.ne.s32.totalorder %s252, %s254
      %p261 = scmp.eq.s32.totalorder %s29, 1
      %p262 = por %p260, %p261
      %p263 = scmp.ne.s32.totalorder %s254, %s255
      %p264 = scmp.eq.s32.totalorder %s29, 0
      %p265 = por %p263, %p264
      %p266 = scmp.ne.s32.totalorder %s254, %s255
      %p267 = scmp.eq.s32.totalorder %s30, 1
      %p268 = por %p266, %p267
      %p270 = scmp.ne.s32.totalorder %s255, %s269
      %p271 = scmp.eq.s32.totalorder %s30, 0
      %p272 = por %p270, %p271
      %s274 = sadd.s32 %s273, 1
      %p277 = scmp.eq.s32.totalorder %s24, 1
      %p278 = scmp.ne.s32.totalorder %s273, %s275
      %p279 = scmp.eq.s32.totalorder %s24, 0
      %p280 = por %p278, %p279
      %p281 = scmp.ne.s32.totalorder %s273, %s275
      %p282 = scmp.eq.s32.totalorder %s29, 1
      %p283 = por %p281, %p282
      %p284 = scmp.ne.s32.totalorder %s275, %s276
      %p285 = scmp.eq.s32.totalorder %s29, 0
      %p286 = por %p284, %p285
      %p287 = scmp.ne.s32.totalorder %s275, %s276
      %p288 = scmp.eq.s32.totalorder %s30, 1
      %p289 = por %p287, %p288
      %p291 = scmp.ne.s32.totalorder %s276, %s290
      %p292 = scmp.eq.s32.totalorder %s30, 0
      %p293 = por %p291, %p292
      %s294 = ssub.s32 %s31, %s43
      %p295 = scmp.eq.s32.totalorder %s294, 0
      %s297 = sadd.s32 %s296, 1
      %s298 = scalar_select %p295, %s296, %s297
      %p301 = pneg %p295
      %p302 = scmp.eq.s32.totalorder %s24, 1
      %p303 = por %p301, %p302
      %p304 = scmp.ne.s32.totalorder %s296, %s299
      %p305 = scmp.eq.s32.totalorder %s24, 0
      %p306 = por %p304, %p305
      %p307 = scmp.ne.s32.totalorder %s296, %s299
      %p308 = scmp.eq.s32.totalorder %s29, 1
      %p309 = por %p307, %p308
      %p310 = scmp.ne.s32.totalorder %s299, %s300
      %p311 = scmp.eq.s32.totalorder %s29, 0
      %p312 = por %p310, %p311
      %p313 = scmp.ne.s32.totalorder %s299, %s300
      %p314 = scmp.eq.s32.totalorder %s30, 1
      %p315 = por %p313, %p314
      %p317 = scmp.ne.s32.totalorder %s300, %s316
      %p318 = scmp.eq.s32.totalorder %s30, 0
      %p319 = por %p317, %p318
      %p320 = scmp.le.s32.totalorder 1, %s24
      %p321 = scmp.lt.s32.totalorder %s24, 3
      %p322 = pnand %p320, %p321
      %p323 = pneg %p322
      // Predicated region
      $region9: #{tpu_custom_call.1} parent=5 // pred_check
        _
      $region10: #{tpu_custom_call.1} parent=5 // pred_check_branch
        %325 = sbr.rel (%p322) target = $region12
      $region11: #{tpu_custom_call.1} parent=5 // pred_region
        %s326 = ssub.s32 %s24, 1
        // Predicated region
        $region13: #{tpu_custom_call.1} parent=11 // pred_check
          %p327 = pneg %p88
        $region14: #{tpu_custom_call.1} parent=11 // pred_check_branch
          %329 = sbr.rel (%p327) target = $region16
        $region15: #{tpu_custom_call.1} parent=11 // pred_region
          %s331 = ssub.s32 2048, 2048
          %332 = vsyncadd [#allocation7], %s331
          %s333 = smul.addr %s34, 128
          %s334 = scalar_lea.hbm %s1, %s333
          %s335 = sshll.u32 [#allocation6], 4
          %s336 = int_to_ptr.vmem [resolvable:$true] %s335
          %341 = dma.hbm_to_vmem [thread:$0]  %s334, 2048, %s336, [#allocation7], 128, 128, 8
        $region16: #{tpu_custom_call.1} parent=11 // pred_fallthru
          _
        // Predicated region
        $region17: #{tpu_custom_call.1} parent=11 // pred_check
          %p342 = pneg %p114
        $region18: #{tpu_custom_call.1} parent=11 // pred_check_branch
          %344 = sbr.rel (%p342) target = $region20
        $region19: #{tpu_custom_call.1} parent=11 // pred_region
          %p345 = scmp.lt.s32.totalorder %s34, 0
          %s346 = scalar_select %p345, %s34, 0
          %s347 = scalar_lea.vmem %s2, %s346
        $region20: #{tpu_custom_call.1} parent=11 // pred_fallthru
          _
        // Predicated region
        $region21: #{tpu_custom_call.1} parent=11 // pred_check
          %p348 = pneg %p140
        $region22: #{tpu_custom_call.1} parent=11 // pred_check_branch
          %350 = sbr.rel (%p348) target = $region24
        $region23: #{tpu_custom_call.1} parent=11 // pred_region
          %p351 = scmp.lt.s32.totalorder %s34, 0
          %s352 = scalar_select %p351, %s34, 0
          %s353 = scalar_lea.vmem %s3, %s352
        $region24: #{tpu_custom_call.1} parent=11 // pred_fallthru
          _
        // Predicated region
        $region25: #{tpu_custom_call.1} parent=11 // pred_check
          %p354 = pneg %p166
        $region26: #{tpu_custom_call.1} parent=11 // pred_check_branch
          %356 = sbr.rel (%p354) target = $region28
        $region27: #{tpu_custom_call.1} parent=11 // pred_region
          %s358 = ssub.s32 256, 256
          %359 = vsyncadd [#allocation7], %s358
          %s360 = smul.addr %s34, 128
          %s361 = scalar_lea.hbm %s4, %s360
          %s362 = sshll.u32 [#allocation8], 4
          %s363 = int_to_ptr.vmem [resolvable:$true] %s362
          %368 = dma.hbm_to_vmem [thread:$0]  %s361, 256, %s363, [#allocation7], 128, 128, 8
        $region28: #{tpu_custom_call.1} parent=11 // pred_fallthru
          _
        // Predicated region
        $region29: #{tpu_custom_call.1} parent=11 // pred_check
          %p369 = pneg %p192
        $region30: #{tpu_custom_call.1} parent=11 // pred_check_branch
          %371 = sbr.rel (%p369) target = $region32
        $region31: #{tpu_custom_call.1} parent=11 // pred_region
          %p372 = scmp.lt.s32.totalorder %s34, 0
          %s373 = scalar_select %p372, %s34, 0
          %s374 = scalar_lea.vmem %s5, %s373
        $region32: #{tpu_custom_call.1} parent=11 // pred_fallthru
          _
        // Predicated region
        $region33: #{tpu_custom_call.1} parent=11 // pred_check
          %p375 = pneg %p218
        $region34: #{tpu_custom_call.1} parent=11 // pred_check_branch
          %377 = sbr.rel (%p375) target = $region36
        $region35: #{tpu_custom_call.1} parent=11 // pred_region
          %p378 = scmp.lt.s32.totalorder %s34, 0
          %s379 = scalar_select %p378, %s34, 0
          %s380 = scalar_lea.vmem %s6, %s379
        $region36: #{tpu_custom_call.1} parent=11 // pred_fallthru
          _
        // Predicated region
        $region37: #{tpu_custom_call.1} parent=11 // pred_check
          %p381 = pneg %p244
        $region38: #{tpu_custom_call.1} parent=11 // pred_check_branch
          %383 = sbr.rel (%p381) target = $region40
        $region39: #{tpu_custom_call.1} parent=11 // pred_region
          %s384 = smul.u32 16, %s34
          %s386 = ssub.s32 2048, 2048
          %387 = vsyncadd [#allocation10], %s386
          %s388 = smul.addr %s384, 128
          %s389 = scalar_lea.hbm %s7, %s388
          %s390 = sshll.u32 [#allocation9], 4
          %s391 = int_to_ptr.vmem [resolvable:$true] %s390
          %396 = dma.hbm_to_vmem [thread:$0]  %s389, 2048, %s391, [#allocation10], 128, 128, 8
        $region40: #{tpu_custom_call.1} parent=11 // pred_fallthru
          _
        // Predicated region
        $region41: #{tpu_custom_call.1} parent=11 // pred_check
          %p397 = pneg %p265
        $region42: #{tpu_custom_call.1} parent=11 // pred_check_branch
          %399 = sbr.rel (%p397) target = $region44
        $region43: #{tpu_custom_call.1} parent=11 // pred_region
          _
        $region44: #{tpu_custom_call.1} parent=11 // pred_fallthru
          _
        // Predicated region
        $region45: #{tpu_custom_call.1} parent=11 // pred_check
          %p400 = pneg %p286
        $region46: #{tpu_custom_call.1} parent=11 // pred_check_branch
          %402 = sbr.rel (%p400) target = $region48
        $region47: #{tpu_custom_call.1} parent=11 // pred_region
          _
        $region48: #{tpu_custom_call.1} parent=11 // pred_fallthru
          _
      $region12: #{tpu_custom_call.1} parent=5 // pred_fallthru
        _
      %p403 = scmp.lt.s32.totalorder %s24, 2
      // Predicated region
      $region49: #{tpu_custom_call.1} parent=5 // pred_check
        %p404 = pneg %p403
      $region50: #{tpu_custom_call.1} parent=5 // pred_check_branch
        %406 = sbr.rel (%p404) target = $region52
      $region51: #{tpu_custom_call.1} parent=5 // pred_region
        // Predicated region
        $region53: #{tpu_custom_call.1} parent=51 // pred_check
          %p407 = pneg %p56
        $region54: #{tpu_custom_call.1} parent=51 // pred_check_branch
          %409 = sbr.rel (%p407) target = $region56
        $region55: #{tpu_custom_call.1} parent=51 // pred_region
          %s410 = sand.u32 %s46, 1
          %s411 = scalar_lea.sflag [#allocation4], %s410
          %s412 = sand.u32 %s46, 1
          %s413 = smul.addr %s412, 256
          %s414 = scalar_lea.vmem [#allocation3], %s413
          %s416 = ssub.s32 4096, 4096
          %417 = vsyncadd %s411, %s416
          %s418 = smul.addr %s31, 32
          %s419 = smul.addr %s418, 128
          %s420 = scalar_lea.hbm %s0, %s419
          %s421 = sshll.u32 %s414, 4
          %s422 = int_to_ptr.vmem [resolvable:$true] %s421
          %427 = dma.hbm_to_vmem [thread:$0]  %s420, 4096, %s422, %s411, 128, 128, 8
        $region56: #{tpu_custom_call.1} parent=51 // pred_fallthru
          _
      $region52: #{tpu_custom_call.1} parent=5 // pred_fallthru
        _
      %p428 = scmp.le.s32.totalorder 1, %s24
      %p429 = scmp.lt.s32.totalorder %s24, 3
      %p430 = pnand %p428, %p429
      %p431 = pneg %p430
      // Predicated region
      $region57: #{tpu_custom_call.1} parent=5 // pred_check
        _
      $region58: #{tpu_custom_call.1} parent=5 // pred_check_branch
        %433 = sbr.rel (%p430) target = $region60
      $region59: #{tpu_custom_call.1} parent=5 // pred_region
        %s434 = ssub.s32 %s24, 1
        %s435 = sand.u32 %s49, 1
        %s436 = scalar_lea.sflag [#allocation4], %s435
        %s437 = sand.u32 %s49, 1
        %s438 = smul.addr %s437, 256
        %s439 = scalar_lea.vmem [#allocation3], %s438
        // Predicated region
        $region61: #{tpu_custom_call.1} parent=59 // pred_check
          %p440 = pneg %p62
        $region62: #{tpu_custom_call.1} parent=59 // pred_check_branch
          %442 = sbr.rel (%p440) target = $region64
        $region63: #{tpu_custom_call.1} parent=59 // pred_region
          %443 = dma.done %s436, 4096
        $region64: #{tpu_custom_call.1} parent=59 // pred_fallthru
          _
        // Predicated region
        $region65: #{tpu_custom_call.1} parent=59 // pred_check
          %p444 = pneg %p88
        $region66: #{tpu_custom_call.1} parent=59 // pred_check_branch
          %446 = sbr.rel (%p444) target = $region68
        $region67: #{tpu_custom_call.1} parent=59 // pred_region
          %447 = dma.done [#allocation7], 2048
        $region68: #{tpu_custom_call.1} parent=59 // pred_fallthru
          _
        // Predicated region
        $region69: #{tpu_custom_call.1} parent=59 // pred_check
          %p448 = pneg %p166
        $region70: #{tpu_custom_call.1} parent=59 // pred_check_branch
          %450 = sbr.rel (%p448) target = $region72
        $region71: #{tpu_custom_call.1} parent=59 // pred_region
          %451 = dma.done [#allocation7], 256
        $region72: #{tpu_custom_call.1} parent=59 // pred_fallthru
          _
        // Predicated region
        $region73: #{tpu_custom_call.1} parent=59 // pred_check
          %p452 = pneg %p244
        $region74: #{tpu_custom_call.1} parent=59 // pred_check_branch
          %454 = sbr.rel (%p452) target = $region76
        $region75: #{tpu_custom_call.1} parent=59 // pred_region
          %455 = dma.done [#allocation10], 2048
        $region76: #{tpu_custom_call.1} parent=59 // pred_fallthru
          _
        %s456 = sand.u32 %s49, 1
        %s457 = scalar_lea.sflag [#allocation4], %s456
        %s458 = sand.u32 %s49, 1
        %s459 = smul.addr %s458, 256
        %s460 = scalar_lea.vmem [#allocation3], %s459
        %p461 = pneg %p62
        %p462 = pneg %p59
        %p463 = pneg %p88
        %p464 = pneg %p85
        %p465 = scmp.lt.s32.totalorder %s34, 0
        %s466 = scalar_select %p465, %s34, 0
        %s467 = scalar_lea.vmem %s2, %s466
        %p468 = pneg %p114
        %p469 = pneg %p111
        %p470 = scmp.lt.s32.totalorder %s34, 0
        %s471 = scalar_select %p470, %s34, 0
        %s472 = scalar_lea.vmem %s3, %s471
        %p473 = pneg %p140
        %p474 = pneg %p137
        %p475 = pneg %p166
        %p476 = pneg %p163
        %p477 = scmp.lt.s32.totalorder %s34, 0
        %s478 = scalar_select %p477, %s34, 0
        %s479 = scalar_lea.vmem %s5, %s478
        %p480 = pneg %p192
        %p481 = pneg %p189
        %p482 = scmp.lt.s32.totalorder %s34, 0
        %s483 = scalar_select %p482, %s34, 0
        %s484 = scalar_lea.vmem %s6, %s483
        %p485 = pneg %p218
        %p486 = pneg %p215
        %p487 = pneg %p244
        %p488 = pneg %p241
        %p489 = pneg %p265
        %p490 = pneg %p262
        %p491 = pneg %p286
        %p492 = pneg %p283
        %p493 = pneg %p312
        %p494 = pneg %p309
        %s495 = sand.u32 %s299, 1
        %s496 = scalar_lea.sflag [#allocation5], %s495
        %s497 = sand.u32 %s299, 1
        %s498 = smul.addr %s497, 256
        %s499 = scalar_lea.vmem [#allocation11], %s498
        %p500 = scmp.lt.s32.totalorder %s34, 0
        %s501 = scalar_select %p500, %s34, 0
        %s502 = scalar_lea.vmem %s2, %s501
        %p503 = scmp.lt.s32.totalorder %s34, 0
        %s504 = scalar_select %p503, %s34, 0
        %s505 = scalar_lea.vmem %s3, %s504
        %p506 = scmp.lt.s32.totalorder %s34, 0
        %s507 = scalar_select %p506, %s34, 0
        %s508 = scalar_lea.vmem %s5, %s507
        %p509 = scmp.lt.s32.totalorder %s34, 0
        %s510 = scalar_select %p509, %s34, 0
        %s511 = scalar_lea.vmem %s6, %s510
        %s512 = smul.u32 16, %s34
        %p513 = scmp.eq.s32.totalorder %s34, 0
        // Predicated region
        $region77: #{tpu_custom_call.1} parent=59 // pred_check
          %p514 = pneg %p513
        $region78: #{tpu_custom_call.1} parent=59 // pred_check_branch
          %516 = sbr.rel (%p514) target = $region80
        $region79: #{tpu_custom_call.1} parent=59 // pred_region
          %517 = vst [vmem:[#allocation2] sm:$0xff] 0.0
          %518 = vst [vmem:[#allocation2 + $0x8] sm:$0xff] 0.0
          %519 = vst [vmem:[#allocation2 + $0x10] sm:$0x3] 0.0
          %520 = vst [vmem:[#allocation2 + $0x18] sm:$0xff] 0.0
          %521 = vst [vmem:[#allocation2 + $0x20] sm:$0xff] 0.0
          %522 = vst [vmem:[#allocation2 + $0x28] sm:$0x3] 0.0
          %523 = vst [vmem:[#allocation2 + $0x30] sm:$0xff] 0.0
          %524 = vst [vmem:[#allocation2 + $0x38] sm:$0xff] 0.0
          %525 = vst [vmem:[#allocation2 + $0x40] sm:$0x3] 0.0
          %526 = vst [vmem:[#allocation2 + $0x48] sm:$0xff] 0.0
          %527 = vst [vmem:[#allocation2 + $0x50] sm:$0xff] 0.0
          %528 = vst [vmem:[#allocation2 + $0x58] sm:$0x3] 0.0
          %529 = vst [vmem:[#allocation2 + $0x60] sm:$0xff] 0.0
          %530 = vst [vmem:[#allocation2 + $0x68] sm:$0xff] 0.0
          %531 = vst [vmem:[#allocation2 + $0x70] sm:$0x3] 0.0
          %532 = vst [vmem:[#allocation2 + $0x78] sm:$0xff] 0.0
          %533 = vst [vmem:[#allocation2 + $0x80] sm:$0xff] 0.0
          %534 = vst [vmem:[#allocation2 + $0x88] sm:$0x3] 0.0
          %535 = vst [vmem:[#allocation2 + $0x90] sm:$0xff] 0.0
          %536 = vst [vmem:[#allocation2 + $0x98] sm:$0xff] 0.0
          %537 = vst [vmem:[#allocation2 + $0xa0] sm:$0x3] 0.0
          %538 = vst [vmem:[#allocation2 + $0xa8] sm:$0xff] 0.0
          %539 = vst [vmem:[#allocation2 + $0xb0] sm:$0xff] 0.0
          %540 = vst [vmem:[#allocation2 + $0xb8] sm:$0x3] 0.0
          %541 = vst [vmem:[#allocation2 + $0xc0] sm:$0xff] 0.0
          %542 = vst [vmem:[#allocation2 + $0xc8] sm:$0xff] 0.0
          %543 = vst [vmem:[#allocation2 + $0xd0] sm:$0x3] 0.0
          %544 = vst [vmem:[#allocation2 + $0xd8] sm:$0xff] 0.0
          %545 = vst [vmem:[#allocation2 + $0xe0] sm:$0xff] 0.0
          %546 = vst [vmem:[#allocation2 + $0xe8] sm:$0x3] 0.0
          %547 = vst [vmem:[#allocation2 + $0xf0] sm:$0xff] 0.0
          %548 = vst [vmem:[#allocation2 + $0xf8] sm:$0xff] 0.0
          %549 = vst [vmem:[#allocation2 + $0x100] sm:$0x3] 0.0
          %550 = vst [vmem:[#allocation2 + $0x108] sm:$0xff] 0.0
          %551 = vst [vmem:[#allocation2 + $0x110] sm:$0xff] 0.0
          %552 = vst [vmem:[#allocation2 + $0x118] sm:$0x3] 0.0
          %553 = vst [vmem:[#allocation2 + $0x120] sm:$0xff] 0.0
          %554 = vst [vmem:[#allocation2 + $0x128] sm:$0xff] 0.0
          %555 = vst [vmem:[#allocation2 + $0x130] sm:$0x3] 0.0
          %556 = vst [vmem:[#allocation2 + $0x138] sm:$0xff] 0.0
          %557 = vst [vmem:[#allocation2 + $0x140] sm:$0xff] 0.0
          %558 = vst [vmem:[#allocation2 + $0x148] sm:$0x3] 0.0
          %559 = vst [vmem:[#allocation2 + $0x150] sm:$0xff] 0.0
          %560 = vst [vmem:[#allocation2 + $0x158] sm:$0xff] 0.0
          %561 = vst [vmem:[#allocation2 + $0x160] sm:$0x3] 0.0
          %562 = vst [vmem:[#allocation2 + $0x168] sm:$0xff] 0.0
          %563 = vst [vmem:[#allocation2 + $0x170] sm:$0xff] 0.0
          %564 = vst [vmem:[#allocation2 + $0x178] sm:$0x3] 0.0
          %565 = vst [vmem:[#allocation2 + $0x180] sm:$0xff] 0.0
          %566 = vst [vmem:[#allocation2 + $0x188] sm:$0xff] 0.0
          %567 = vst [vmem:[#allocation2 + $0x190] sm:$0x3] 0.0
          %568 = vst [vmem:[#allocation2 + $0x198] sm:$0xff] 0.0
          %569 = vst [vmem:[#allocation2 + $0x1a0] sm:$0xff] 0.0
          %570 = vst [vmem:[#allocation2 + $0x1a8] sm:$0x3] 0.0
        $region80: #{tpu_custom_call.1} parent=59 // pred_fallthru
          _
        %v571 = vld [vmem:[%s439] sm:$0xff]
        %v572 = vld [vmem:[%s439 + $0x8] sm:$0xff]
        %v573 = vld [vmem:[%s439 + $0x10] sm:$0xff]
        %v574 = vld [vmem:[%s439 + $0x18] sm:$0xff]
        %v575 = vld [vmem:[%s439 + $0x20] sm:$0xff]
        %v576 = vld [vmem:[%s439 + $0x28] sm:$0xff]
        %v577 = vld [vmem:[%s439 + $0x30] sm:$0xff]
        %v578 = vld [vmem:[%s439 + $0x38] sm:$0xff]
        %v579 = vld [vmem:[%s439 + $0x40] sm:$0xff]
        %v580 = vld [vmem:[%s439 + $0x48] sm:$0xff]
        %v581 = vld [vmem:[%s439 + $0x50] sm:$0xff]
        %v582 = vld [vmem:[%s439 + $0x58] sm:$0xff]
        %v583 = vld [vmem:[%s439 + $0x60] sm:$0xff]
        %v584 = vld [vmem:[%s439 + $0x68] sm:$0xff]
        %v585 = vld [vmem:[%s439 + $0x70] sm:$0xff]
        %v586 = vld [vmem:[%s439 + $0x78] sm:$0xff]
        %v587 = vld [vmem:[%s439 + $0x80] sm:$0xff]
        %v588 = vld [vmem:[%s439 + $0x88] sm:$0xff]
        %v589 = vld [vmem:[%s439 + $0x90] sm:$0xff]
        %v590 = vld [vmem:[%s439 + $0x98] sm:$0xff]
        %v591 = vld [vmem:[%s439 + $0xa0] sm:$0xff]
        %v592 = vld [vmem:[%s439 + $0xa8] sm:$0xff]
        %v593 = vld [vmem:[%s439 + $0xb0] sm:$0xff]
        %v594 = vld [vmem:[%s439 + $0xb8] sm:$0xff]
        %v595 = vld [vmem:[%s439 + $0xc0] sm:$0xff]
        %v596 = vld [vmem:[%s439 + $0xc8] sm:$0xff]
        %v597 = vld [vmem:[%s439 + $0xd0] sm:$0xff]
        %v598 = vld [vmem:[%s439 + $0xd8] sm:$0xff]
        %v599 = vld [vmem:[%s439 + $0xe0] sm:$0xff]
        %v600 = vld [vmem:[%s439 + $0xe8] sm:$0xff]
        %v601 = vld [vmem:[%s439 + $0xf0] sm:$0xff]
        %v602 = vld [vmem:[%s439 + $0xf8] sm:$0xff]
        %v603 = vld [vmem:[#allocation6] sm:$0xff]
        %v604 = vld [vmem:[#allocation6 + $0x8] sm:$0xff]
        %v605 = vld [vmem:[#allocation6 + $0x10] sm:$0xff]
        %v606 = vld [vmem:[#allocation6 + $0x18] sm:$0xff]
        %v607 = vld [vmem:[#allocation6 + $0x20] sm:$0xff]
        %v608 = vld [vmem:[#allocation6 + $0x28] sm:$0xff]
        %v609 = vld [vmem:[#allocation6 + $0x30] sm:$0xff]
        %v610 = vld [vmem:[#allocation6 + $0x38] sm:$0xff]
        %v611 = vld [vmem:[#allocation6 + $0x40] sm:$0xff]
        %v612 = vld [vmem:[#allocation6 + $0x48] sm:$0xff]
        %v613 = vld [vmem:[#allocation6 + $0x50] sm:$0xff]
        %v614 = vld [vmem:[#allocation6 + $0x58] sm:$0xff]
        %v615 = vld [vmem:[#allocation6 + $0x60] sm:$0xff]
        %v616 = vld [vmem:[#allocation6 + $0x68] sm:$0xff]
        %v617 = vld [vmem:[#allocation6 + $0x70] sm:$0xff]
        %v618 = vld [vmem:[#allocation6 + $0x78] sm:$0xff]
        %619 = vmatprep.subr.mxu0 0.0
        %620 = vmatpush1.msra.mxu0 %v603
        %621 = vmatprep.subr.mxu0 0.0
        %622 = vmatpush1.msra.mxu0 %v604
        %623 = vmatprep.subr.mxu0 0.0
        %624 = vmatpush1.msra.mxu0 %v605
        %625 = vmatprep.subr.mxu0 0.0
        %626 = vmatpush1.msra.mxu0 %v606
        %627 = vmatprep.subr.mxu0 0.0
        %628 = vmatpush1.msra.mxu0 %v607
        %629 = vmatprep.subr.mxu0 0.0
        %630 = vmatpush1.msra.mxu0 %v608
        %631 = vmatprep.subr.mxu0 0.0
        %632 = vmatpush1.msra.mxu0 %v609
        %633 = vmatprep.subr.mxu0 0.0
        %634 = vmatpush1.msra.mxu0 %v610
        %635 = vmatprep.subr.mxu0 0.0
        %636 = vmatpush1.msra.mxu0 %v611
        %637 = vmatprep.subr.mxu0 0.0
        %638 = vmatpush1.msra.mxu0 %v612
        %639 = vmatprep.subr.mxu0 0.0
        %640 = vmatpush1.msra.mxu0 %v613
        %641 = vmatprep.subr.mxu0 0.0
        %642 = vmatpush1.msra.mxu0 %v614
        %643 = vmatprep.subr.mxu0 0.0
        %644 = vmatpush1.msra.mxu0 %v615
        %645 = vmatprep.subr.mxu0 0.0
        %646 = vmatpush1.msra.mxu0 %v616
        %647 = vmatprep.subr.mxu0 0.0
        %648 = vmatpush1.msra.mxu0 %v617
        %649 = vmatprep.subr.mxu0 0.0
        %650 = vmatpush1.msra.mxu0 %v618
        %651 = vmatprep.subr.mxu0 0.0
        %652 = vmatpush1.msra.mxu0 0.0
        %653 = vmatprep.subr.mxu0 0.0
        %654 = vmatpush1.msra.mxu0 0.0
        %655 = vmatprep.subr.mxu0 0.0
        %656 = vmatpush1.msra.mxu0 0.0
        %657 = vmatprep.subr.mxu0 0.0
        %658 = vmatpush1.msra.mxu0 0.0
        %659 = vmatprep.subr.mxu0 0.0
        %660 = vmatpush1.msra.mxu0 0.0
        %661 = vmatprep.subr.mxu0 0.0
        %662 = vmatpush1.msra.mxu0 0.0
        %663 = vmatprep.subr.mxu0 0.0
        %664 = vmatpush1.msra.mxu0 0.0
        %665 = vmatprep.subr.mxu0 0.0
        %666 = vmatpush1.msra.mxu0 0.0
        %667 = vmatprep.subr.mxu0 0.0
        %668 = vmatpush1.msra.mxu0 0.0
        %669 = vmatprep.subr.mxu0 0.0
        %670 = vmatpush1.msra.mxu0 0.0
        %671 = vmatprep.subr.mxu0 0.0
        %672 = vmatpush1.msra.mxu0 0.0
        %673 = vmatprep.subr.mxu0 0.0
        %674 = vmatpush1.msra.mxu0 0.0
        %675 = vmatprep.subr.mxu0 0.0
        %676 = vmatpush1.msra.mxu0 0.0
        %677 = vmatprep.subr.mxu0 0.0
        %678 = vmatpush1.msra.mxu0 0.0
        %679 = vmatprep.subr.mxu0 0.0
        %680 = vmatpush1.msra.mxu0 0.0
        %681 = vmatprep.subr.mxu0 0.0
        %682 = vmatpush1.msra.mxu0 0.0
        %683 = vmatprep.mubr.f32.mxu0 0.0
        %684 = vmatmul.mubr.f32.gmra.mrb[0].mxu0 %v571
        %v685 = vpop.f32.mrb[0].mxu0
        %v686 = vadd.f32 0.0, %v685
        %v687 = vpop.f32.mrb[0].mxu0
        %688 = vmatprep.mubr.f32.mxu0 0.0
        %689 = vmatmul.mubr.f32.gmra.mrb[0].mxu0 %v572
        %v690 = vpop.f32.mrb[0].mxu0
        %v691 = vadd.f32 0.0, %v690
        %v692 = vpop.f32.mrb[0].mxu0
        %693 = vmatprep.mubr.f32.mxu0 0.0
        %694 = vmatmul.mubr.f32.gmra.mrb[0].mxu0 %v573
        %v695 = vpop.f32.mrb[0].mxu0
        %v696 = vadd.f32 0.0, %v695
        %v697 = vpop.f32.mrb[0].mxu0
        %698 = vmatprep.mubr.f32.mxu0 0.0
        %699 = vmatmul.mubr.f32.gmra.mrb[0].mxu0 %v574
        %v700 = vpop.f32.mrb[0].mxu0
        %v701 = vadd.f32 0.0, %v700
        %v702 = vpop.f32.mrb[0].mxu0
        %703 = vmatprep.mubr.f32.mxu0 0.0
        %704 = vmatmul.mubr.f32.gmra.mrb[0].mxu0 %v575
        %v705 = vpop.f32.mrb[0].mxu0
        %v706 = vadd.f32 0.0, %v705
        %v707 = vpop.f32.mrb[0].mxu0
        %708 = vmatprep.mubr.f32.mxu0 0.0
        %709 = vmatmul.mubr.f32.gmra.mrb[0].mxu0 %v576
        %v710 = vpop.f32.mrb[0].mxu0
        %v711 = vadd.f32 0.0, %v710
        %v712 = vpop.f32.mrb[0].mxu0
        %713 = vmatprep.mubr.f32.mxu0 0.0
        %714 = vmatmul.mubr.f32.gmra.mrb[0].mxu0 %v577
        %v715 = vpop.f32.mrb[0].mxu0
        %v716 = vadd.f32 0.0, %v715
        %v717 = vpop.f32.mrb[0].mxu0
        %718 = vmatprep.mubr.f32.mxu0 0.0
        %719 = vmatmul.mubr.f32.gmra.mrb[0].mxu0 %v578
        %v720 = vpop.f32.mrb[0].mxu0
        %v721 = vadd.f32 0.0, %v720
        %v722 = vpop.f32.mrb[0].mxu0
        %723 = vmatprep.mubr.f32.mxu0 0.0
        %724 = vmatmul.mubr.f32.gmra.mrb[0].mxu0 %v579
        %v725 = vpop.f32.mrb[0].mxu0
        %v726 = vadd.f32 0.0, %v725
        %v727 = vpop.f32.mrb[0].mxu0
        %728 = vmatprep.mubr.f32.mxu0 0.0
        %729 = vmatmul.mubr.f32.gmra.mrb[0].mxu0 %v580
        %v730 = vpop.f32.mrb[0].mxu0
        %v731 = vadd.f32 0.0, %v730
        %v732 = vpop.f32.mrb[0].mxu0
        %733 = vmatprep.mubr.f32.mxu0 0.0
        %734 = vmatmul.mubr.f32.gmra.mrb[0].mxu0 %v581
        %v735 = vpop.f32.mrb[0].mxu0
        %v736 = vadd.f32 0.0, %v735
        %v737 = vpop.f32.mrb[0].mxu0
        %738 = vmatprep.mubr.f32.mxu0 0.0
        %739 = vmatmul.mubr.f32.gmra.mrb[0].mxu0 %v582
        %v740 = vpop.f32.mrb[0].mxu0
        %v741 = vadd.f32 0.0, %v740
        %v742 = vpop.f32.mrb[0].mxu0
        %743 = vmatprep.mubr.f32.mxu0 0.0
        %744 = vmatmul.mubr.f32.gmra.mrb[0].mxu0 %v583
        %v745 = vpop.f32.mrb[0].mxu0
        %v746 = vadd.f32 0.0, %v745
        %v747 = vpop.f32.mrb[0].mxu0
        %748 = vmatprep.mubr.f32.mxu0 0.0
        %749 = vmatmul.mubr.f32.gmra.mrb[0].mxu0 %v584
        %v750 = vpop.f32.mrb[0].mxu0
        %v751 = vadd.f32 0.0, %v750
        %v752 = vpop.f32.mrb[0].mxu0
        %753 = vmatprep.mubr.f32.mxu0 0.0
        %754 = vmatmul.mubr.f32.gmra.mrb[0].mxu0 %v585
        %v755 = vpop.f32.mrb[0].mxu0
        %v756 = vadd.f32 0.0, %v755
        %v757 = vpop.f32.mrb[0].mxu0
        %758 = vmatprep.mubr.f32.mxu0 0.0
        %759 = vmatmul.mubr.f32.gmra.mrb[0].mxu0 %v586
        %v760 = vpop.f32.mrb[0].mxu0
        %v761 = vadd.f32 0.0, %v760
        %v762 = vpop.f32.mrb[0].mxu0
        %763 = vmatprep.mubr.f32.mxu0 0.0
        %764 = vmatmul.mubr.f32.gmra.mrb[0].mxu0 %v587
        %v765 = vpop.f32.mrb[0].mxu0
        %v766 = vadd.f32 0.0, %v765
        %v767 = vpop.f32.mrb[0].mxu0
        %768 = vmatprep.mubr.f32.mxu0 0.0
        %769 = vmatmul.mubr.f32.gmra.mrb[0].mxu0 %v588
        %v770 = vpop.f32.mrb[0].mxu0
        %v771 = vadd.f32 0.0, %v770
        %v772 = vpop.f32.mrb[0].mxu0
        %773 = vmatprep.mubr.f32.mxu0 0.0
        %774 = vmatmul.mubr.f32.gmra.mrb[0].mxu0 %v589
        %v775 = vpop.f32.mrb[0].mxu0
        %v776 = vadd.f32 0.0, %v775
        %v777 = vpop.f32.mrb[0].mxu0
        %778 = vmatprep.mubr.f32.mxu0 0.0
        %779 = vmatmul.mubr.f32.gmra.mrb[0].mxu0 %v590
        %v780 = vpop.f32.mrb[0].mxu0
        %v781 = vadd.f32 0.0, %v780
        %v782 = vpop.f32.mrb[0].mxu0
        %783 = vmatprep.mubr.f32.mxu0 0.0
        %784 = vmatmul.mubr.f32.gmra.mrb[0].mxu0 %v591
        %v785 = vpop.f32.mrb[0].mxu0
        %v786 = vadd.f32 0.0, %v785
        %v787 = vpop.f32.mrb[0].mxu0
        %788 = vmatprep.mubr.f32.mxu0 0.0
        %789 = vmatmul.mubr.f32.gmra.mrb[0].mxu0 %v592
        %v790 = vpop.f32.mrb[0].mxu0
        %v791 = vadd.f32 0.0, %v790
        %v792 = vpop.f32.mrb[0].mxu0
        %793 = vmatprep.mubr.f32.mxu0 0.0
        %794 = vmatmul.mubr.f32.gmra.mrb[0].mxu0 %v593
        %v795 = vpop.f32.mrb[0].mxu0
        %v796 = vadd.f32 0.0, %v795
        %v797 = vpop.f32.mrb[0].mxu0
        %798 = vmatprep.mubr.f32.mxu0 0.0
        %799 = vmatmul.mubr.f32.gmra.mrb[0].mxu0 %v594
        %v800 = vpop.f32.mrb[0].mxu0
        %v801 = vadd.f32 0.0, %v800
        %v802 = vpop.f32.mrb[0].mxu0
        %803 = vmatprep.mubr.f32.mxu0 0.0
        %804 = vmatmul.mubr.f32.gmra.mrb[0].mxu0 %v595
        %v805 = vpop.f32.mrb[0].mxu0
        %v806 = vadd.f32 0.0, %v805
        %v807 = vpop.f32.mrb[0].mxu0
        %808 = vmatprep.mubr.f32.mxu0 0.0
        %809 = vmatmul.mubr.f32.gmra.mrb[0].mxu0 %v596
        %v810 = vpop.f32.mrb[0].mxu0
        %v811 = vadd.f32 0.0, %v810
        %v812 = vpop.f32.mrb[0].mxu0
        %813 = vmatprep.mubr.f32.mxu0 0.0
        %814 = vmatmul.mubr.f32.gmra.mrb[0].mxu0 %v597
        %v815 = vpop.f32.mrb[0].mxu0
        %v816 = vadd.f32 0.0, %v815
        %v817 = vpop.f32.mrb[0].mxu0
        %818 = vmatprep.mubr.f32.mxu0 0.0
        %819 = vmatmul.mubr.f32.gmra.mrb[0].mxu0 %v598
        %v820 = vpop.f32.mrb[0].mxu0
        %v821 = vadd.f32 0.0, %v820
        %v822 = vpop.f32.mrb[0].mxu0
        %823 = vmatprep.mubr.f32.mxu0 0.0
        %824 = vmatmul.mubr.f32.gmra.mrb[0].mxu0 %v599
        %v825 = vpop.f32.mrb[0].mxu0
        %v826 = vadd.f32 0.0, %v825
        %v827 = vpop.f32.mrb[0].mxu0
        %828 = vmatprep.mubr.f32.mxu0 0.0
        %829 = vmatmul.mubr.f32.gmra.mrb[0].mxu0 %v600
        %v830 = vpop.f32.mrb[0].mxu0
        %v831 = vadd.f32 0.0, %v830
        %v832 = vpop.f32.mrb[0].mxu0
        %833 = vmatprep.mubr.f32.mxu0 0.0
        %834 = vmatmul.mubr.f32.gmra.mrb[0].mxu0 %v601
        %v835 = vpop.f32.mrb[0].mxu0
        %v836 = vadd.f32 0.0, %v835
        %v837 = vpop.f32.mrb[0].mxu0
        %838 = vmatprep.mubr.f32.mxu0 0.0
        %839 = vmatmul.mubr.f32.gmra.mrb[0].mxu0 %v602
        %v840 = vpop.f32.mrb[0].mxu0
        %v841 = vadd.f32 0.0, %v840
        %v842 = vpop.f32.mrb[0].mxu0
        %843 = vdwg.mxu0
        %v844 = vld [vmem:[%s502] sm:$0x1]
        %v846 = vlaneseq
        %v847 = vshrl.u32 %v846, 7
        %v848 = vsub.s32 0, %v847
        %v849 = vrot.slane %v844, %v848
        %v851 = vmul.f32 %v686, %v849
        %v852 = vmul.f32 %v691, %v849
        %v853 = vmul.f32 %v696, %v849
        %v854 = vmul.f32 %v701, %v849
        %v855 = vmul.f32 %v706, %v849
        %v856 = vmul.f32 %v711, %v849
        %v857 = vmul.f32 %v716, %v849
        %v858 = vmul.f32 %v721, %v849
        %v859 = vmul.f32 %v726, %v849
        %v860 = vmul.f32 %v731, %v849
        %v861 = vmul.f32 %v736, %v849
        %v862 = vmul.f32 %v741, %v849
        %v863 = vmul.f32 %v746, %v849
        %v864 = vmul.f32 %v751, %v849
        %v865 = vmul.f32 %v756, %v849
        %v866 = vmul.f32 %v761, %v849
        %v867 = vmul.f32 %v766, %v849
        %v868 = vmul.f32 %v771, %v849
        %v869 = vmul.f32 %v776, %v849
        %v870 = vmul.f32 %v781, %v849
        %v871 = vmul.f32 %v786, %v849
        %v872 = vmul.f32 %v791, %v849
        %v873 = vmul.f32 %v796, %v849
        %v874 = vmul.f32 %v801, %v849
        %v875 = vmul.f32 %v806, %v849
        %v876 = vmul.f32 %v811, %v849
        %v877 = vmul.f32 %v816, %v849
        %v878 = vmul.f32 %v821, %v849
        %v879 = vmul.f32 %v826, %v849
        %v880 = vmul.f32 %v831, %v849
        %v881 = vmul.f32 %v836, %v849
        %v882 = vmul.f32 %v841, %v849
        %v883 = vld [vmem:[%s505] sm:$0x1]
        %v885 = vlaneseq
        %v886 = vshrl.u32 %v885, 7
        %v887 = vsub.s32 0, %v886
        %v888 = vrot.slane %v883, %v887
        %v890 = vadd.f32 %v851, %v888
        %v891 = vadd.f32 %v852, %v888
        %v892 = vadd.f32 %v853, %v888
        %v893 = vadd.f32 %v854, %v888
        %v894 = vadd.f32 %v855, %v888
        %v895 = vadd.f32 %v856, %v888
        %v896 = vadd.f32 %v857, %v888
        %v897 = vadd.f32 %v858, %v888
        %v898 = vadd.f32 %v859, %v888
        %v899 = vadd.f32 %v860, %v888
        %v900 = vadd.f32 %v861, %v888
        %v901 = vadd.f32 %v862, %v888
        %v902 = vadd.f32 %v863, %v888
        %v903 = vadd.f32 %v864, %v888
        %v904 = vadd.f32 %v865, %v888
        %v905 = vadd.f32 %v866, %v888
        %v906 = vadd.f32 %v867, %v888
        %v907 = vadd.f32 %v868, %v888
        %v908 = vadd.f32 %v869, %v888
        %v909 = vadd.f32 %v870, %v888
        %v910 = vadd.f32 %v871, %v888
        %v911 = vadd.f32 %v872, %v888
        %v912 = vadd.f32 %v873, %v888
        %v913 = vadd.f32 %v874, %v888
        %v914 = vadd.f32 %v875, %v888
        %v915 = vadd.f32 %v876, %v888
        %v916 = vadd.f32 %v877, %v888
        %v917 = vadd.f32 %v878, %v888
        %v918 = vadd.f32 %v879, %v888
        %v919 = vadd.f32 %v880, %v888
        %v920 = vadd.f32 %v881, %v888
        %v921 = vadd.f32 %v882, %v888
        %v922 = vmax.f32 %v890, 0.0
        %v923 = vmax.f32 %v891, 0.0
        %v924 = vmax.f32 %v892, 0.0
        %v925 = vmax.f32 %v893, 0.0
        %v926 = vmax.f32 %v894, 0.0
        %v927 = vmax.f32 %v895, 0.0
        %v928 = vmax.f32 %v896, 0.0
        %v929 = vmax.f32 %v897, 0.0
        %v930 = vmax.f32 %v898, 0.0
        %v931 = vmax.f32 %v899, 0.0
        %v932 = vmax.f32 %v900, 0.0
        %v933 = vmax.f32 %v901, 0.0
        %v934 = vmax.f32 %v902, 0.0
        %v935 = vmax.f32 %v903, 0.0
        %v936 = vmax.f32 %v904, 0.0
        %v937 = vmax.f32 %v905, 0.0
        %v938 = vmax.f32 %v906, 0.0
        %v939 = vmax.f32 %v907, 0.0
        %v940 = vmax.f32 %v908, 0.0
        %v941 = vmax.f32 %v909, 0.0
        %v942 = vmax.f32 %v910, 0.0
        %v943 = vmax.f32 %v911, 0.0
        %v944 = vmax.f32 %v912, 0.0
        %v945 = vmax.f32 %v913, 0.0
        %v946 = vmax.f32 %v914, 0.0
        %v947 = vmax.f32 %v915, 0.0
        %v948 = vmax.f32 %v916, 0.0
        %v949 = vmax.f32 %v917, 0.0
        %v950 = vmax.f32 %v918, 0.0
        %v951 = vmax.f32 %v919, 0.0
        %v952 = vmax.f32 %v920, 0.0
        %v953 = vmax.f32 %v921, 0.0
        %v954 = vmin.f32 %v922, 6.0
        %v955 = vmin.f32 %v923, 6.0
        %v956 = vmin.f32 %v924, 6.0
        %v957 = vmin.f32 %v925, 6.0
        %v958 = vmin.f32 %v926, 6.0
        %v959 = vmin.f32 %v927, 6.0
        %v960 = vmin.f32 %v928, 6.0
        %v961 = vmin.f32 %v929, 6.0
        %v962 = vmin.f32 %v930, 6.0
        %v963 = vmin.f32 %v931, 6.0
        %v964 = vmin.f32 %v932, 6.0
        %v965 = vmin.f32 %v933, 6.0
        %v966 = vmin.f32 %v934, 6.0
        %v967 = vmin.f32 %v935, 6.0
        %v968 = vmin.f32 %v936, 6.0
        %v969 = vmin.f32 %v937, 6.0
        %v970 = vmin.f32 %v938, 6.0
        %v971 = vmin.f32 %v939, 6.0
        %v972 = vmin.f32 %v940, 6.0
        %v973 = vmin.f32 %v941, 6.0
        %v974 = vmin.f32 %v942, 6.0
        %v975 = vmin.f32 %v943, 6.0
        %v976 = vmin.f32 %v944, 6.0
        %v977 = vmin.f32 %v945, 6.0
        %v978 = vmin.f32 %v946, 6.0
        %v979 = vmin.f32 %v947, 6.0
        %v980 = vmin.f32 %v948, 6.0
        %v981 = vmin.f32 %v949, 6.0
        %v982 = vmin.f32 %v950, 6.0
        %v983 = vmin.f32 %v951, 6.0
        %v984 = vmin.f32 %v952, 6.0
        %v985 = vmin.f32 %v953, 6.0
        %s986 = scalar_lea.vmem [#allocation2], 24
        %987 = vst [vmem:[%s986 + $0x1] sm:$0xff] %v954
        %988 = vst [vmem:[%s986 + $0x9] sm:$0xff] %v955
        %989 = vst [vmem:[%s986 + $0x19] sm:$0xff] %v956
        %990 = vst [vmem:[%s986 + $0x21] sm:$0xff] %v957
        %991 = vst [vmem:[%s986 + $0x31] sm:$0xff] %v958
        %992 = vst [vmem:[%s986 + $0x39] sm:$0xff] %v959
        %993 = vst [vmem:[%s986 + $0x49] sm:$0xff] %v960
        %994 = vst [vmem:[%s986 + $0x51] sm:$0xff] %v961
        %995 = vst [vmem:[%s986 + $0x61] sm:$0xff] %v962
        %996 = vst [vmem:[%s986 + $0x69] sm:$0xff] %v963
        %997 = vst [vmem:[%s986 + $0x79] sm:$0xff] %v964
        %998 = vst [vmem:[%s986 + $0x81] sm:$0xff] %v965
        %999 = vst [vmem:[%s986 + $0x91] sm:$0xff] %v966
        %1000 = vst [vmem:[%s986 + $0x99] sm:$0xff] %v967
        %1001 = vst [vmem:[%s986 + $0xa9] sm:$0xff] %v968
        %1002 = vst [vmem:[%s986 + $0xb1] sm:$0xff] %v969
        %1003 = vst [vmem:[%s986 + $0xc1] sm:$0xff] %v970
        %1004 = vst [vmem:[%s986 + $0xc9] sm:$0xff] %v971
        %1005 = vst [vmem:[%s986 + $0xd9] sm:$0xff] %v972
        %1006 = vst [vmem:[%s986 + $0xe1] sm:$0xff] %v973
        %1007 = vst [vmem:[%s986 + $0xf1] sm:$0xff] %v974
        %1008 = vst [vmem:[%s986 + $0xf9] sm:$0xff] %v975
        %1009 = vst [vmem:[%s986 + $0x109] sm:$0xff] %v976
        %1010 = vst [vmem:[%s986 + $0x111] sm:$0xff] %v977
        %1011 = vst [vmem:[%s986 + $0x121] sm:$0xff] %v978
        %1012 = vst [vmem:[%s986 + $0x129] sm:$0xff] %v979
        %1013 = vst [vmem:[%s986 + $0x139] sm:$0xff] %v980
        %1014 = vst [vmem:[%s986 + $0x141] sm:$0xff] %v981
        %1015 = vst [vmem:[%s986 + $0x151] sm:$0xff] %v982
        %1016 = vst [vmem:[%s986 + $0x159] sm:$0xff] %v983
        %1017 = vst [vmem:[%s986 + $0x169] sm:$0xff] %v984
        %1018 = vst [vmem:[%s986 + $0x171] sm:$0xff] %v985
        %v1019 = vld [vmem:[#allocation8] sm:$0xff]
        %v1020 = vld [vmem:[#allocation8 + $0x8] sm:$0x1]
        %v1021 = vld [vmem:[#allocation2] sm:$0xff]
        %v1022 = vld [vmem:[#allocation2 + $0x8] sm:$0xff]
        %v1023 = vld [vmem:[#allocation2 + $0x18] sm:$0xff]
        %v1024 = vld [vmem:[#allocation2 + $0x20] sm:$0xff]
        %v1025 = vld [vmem:[#allocation2 + $0x30] sm:$0xff]
        %v1026 = vld [vmem:[#allocation2 + $0x38] sm:$0xff]
        %v1027 = vld [vmem:[#allocation2 + $0x48] sm:$0xff]
        %v1028 = vld [vmem:[#allocation2 + $0x50] sm:$0xff]
        %v1029 = vld [vmem:[#allocation2 + $0x60] sm:$0xff]
        %v1030 = vld [vmem:[#allocation2 + $0x68] sm:$0xff]
        %v1031 = vld [vmem:[#allocation2 + $0x78] sm:$0xff]
        %v1032 = vld [vmem:[#allocation2 + $0x80] sm:$0xff]
        %v1033 = vld [vmem:[#allocation2 + $0x90] sm:$0xff]
        %v1034 = vld [vmem:[#allocation2 + $0x98] sm:$0xff]
        %v1035 = vld [vmem:[#allocation2 + $0xa8] sm:$0xff]
        %v1036 = vld [vmem:[#allocation2 + $0xb0] sm:$0xff]
        %v1037 = vld [vmem:[#allocation2 + $0xc0] sm:$0xff]
        %v1038 = vld [vmem:[#allocation2 + $0xc8] sm:$0xff]
        %v1039 = vld [vmem:[#allocation2 + $0xd8] sm:$0xff]
        %v1040 = vld [vmem:[#allocation2 + $0xe0] sm:$0xff]
        %v1041 = vld [vmem:[#allocation2 + $0xf0] sm:$0xff]
        %v1042 = vld [vmem:[#allocation2 + $0xf8] sm:$0xff]
        %v1043 = vld [vmem:[#allocation2 + $0x108] sm:$0xff]
        %v1044 = vld [vmem:[#allocation2 + $0x110] sm:$0xff]
        %v1045 = vld [vmem:[#allocation2 + $0x120] sm:$0xff]
        %v1046 = vld [vmem:[#allocation2 + $0x128] sm:$0xff]
        %v1047 = vld [vmem:[#allocation2 + $0x138] sm:$0xff]
        %v1048 = vld [vmem:[#allocation2 + $0x140] sm:$0xff]
        %v1049 = vld [vmem:[#allocation2 + $0x150] sm:$0xff]
        %v1050 = vld [vmem:[#allocation2 + $0x158] sm:$0xff]
        %v1051 = vld [vmem:[#allocation2 + $0x168] sm:$0xff]
        %v1052 = vld [vmem:[#allocation2 + $0x170] sm:$0xff]
        %v1053 = vlaneseq
        %v1054 = vshrl.u32 %v1053, 7
        %v1055 = vsub.s32 0, %v1054
        %v1056 = vrot.slane %v1019, %v1055
        %v1057 = vmul.f32 %v1021, %v1056
        %v1058 = vmul.f32 %v1022, %v1056
        %v1059 = vmul.f32 %v1023, %v1056
        %v1060 = vmul.f32 %v1024, %v1056
        %v1061 = vmul.f32 %v1025, %v1056
        %v1062 = vmul.f32 %v1026, %v1056
        %v1063 = vmul.f32 %v1027, %v1056
        %v1064 = vmul.f32 %v1028, %v1056
        %v1065 = vmul.f32 %v1029, %v1056
        %v1066 = vmul.f32 %v1030, %v1056
        %v1067 = vmul.f32 %v1031, %v1056
        %v1068 = vmul.f32 %v1032, %v1056
        %v1069 = vmul.f32 %v1033, %v1056
        %v1070 = vmul.f32 %v1034, %v1056
        %v1071 = vmul.f32 %v1035, %v1056
        %v1072 = vmul.f32 %v1036, %v1056
        %v1073 = vmul.f32 %v1037, %v1056
        %v1074 = vmul.f32 %v1038, %v1056
        %v1075 = vmul.f32 %v1039, %v1056
        %v1076 = vmul.f32 %v1040, %v1056
        %v1077 = vmul.f32 %v1041, %v1056
        %v1078 = vmul.f32 %v1042, %v1056
        %v1079 = vmul.f32 %v1043, %v1056
        %v1080 = vmul.f32 %v1044, %v1056
        %v1081 = vmul.f32 %v1045, %v1056
        %v1082 = vmul.f32 %v1046, %v1056
        %v1083 = vmul.f32 %v1047, %v1056
        %v1084 = vmul.f32 %v1048, %v1056
        %v1085 = vmul.f32 %v1049, %v1056
        %v1086 = vmul.f32 %v1050, %v1056
        %v1087 = vmul.f32 %v1051, %v1056
        %v1088 = vmul.f32 %v1052, %v1056
        %v1089 = vld [vmem:[#allocation2 + $0x1] sm:$0xff]
        %v1090 = vld [vmem:[#allocation2 + $0x9] sm:$0xff]
        %v1091 = vld [vmem:[#allocation2 + $0x19] sm:$0xff]
        %v1092 = vld [vmem:[#allocation2 + $0x21] sm:$0xff]
        %v1093 = vld [vmem:[#allocation2 + $0x31] sm:$0xff]
        %v1094 = vld [vmem:[#allocation2 + $0x39] sm:$0xff]
        %v1095 = vld [vmem:[#allocation2 + $0x49] sm:$0xff]
        %v1096 = vld [vmem:[#allocation2 + $0x51] sm:$0xff]
        %v1097 = vld [vmem:[#allocation2 + $0x61] sm:$0xff]
        %v1098 = vld [vmem:[#allocation2 + $0x69] sm:$0xff]
        %v1099 = vld [vmem:[#allocation2 + $0x79] sm:$0xff]
        %v1100 = vld [vmem:[#allocation2 + $0x81] sm:$0xff]
        %v1101 = vld [vmem:[#allocation2 + $0x91] sm:$0xff]
        %v1102 = vld [vmem:[#allocation2 + $0x99] sm:$0xff]
        %v1103 = vld [vmem:[#allocation2 + $0xa9] sm:$0xff]
        %v1104 = vld [vmem:[#allocation2 + $0xb1] sm:$0xff]
        %v1105 = vld [vmem:[#allocation2 + $0xc1] sm:$0xff]
        %v1106 = vld [vmem:[#allocation2 + $0xc9] sm:$0xff]
        %v1107 = vld [vmem:[#allocation2 + $0xd9] sm:$0xff]
        %v1108 = vld [vmem:[#allocation2 + $0xe1] sm:$0xff]
        %v1109 = vld [vmem:[#allocation2 + $0xf1] sm:$0xff]
        %v1110 = vld [vmem:[#allocation2 + $0xf9] sm:$0xff]
        %v1111 = vld [vmem:[#allocation2 + $0x109] sm:$0xff]
        %v1112 = vld [vmem:[#allocation2 + $0x111] sm:$0xff]
        %v1113 = vld [vmem:[#allocation2 + $0x121] sm:$0xff]
        %v1114 = vld [vmem:[#allocation2 + $0x129] sm:$0xff]
        %v1115 = vld [vmem:[#allocation2 + $0x139] sm:$0xff]
        %v1116 = vld [vmem:[#allocation2 + $0x141] sm:$0xff]
        %v1117 = vld [vmem:[#allocation2 + $0x151] sm:$0xff]
        %v1118 = vld [vmem:[#allocation2 + $0x159] sm:$0xff]
        %v1119 = vld [vmem:[#allocation2 + $0x169] sm:$0xff]
        %v1120 = vld [vmem:[#allocation2 + $0x171] sm:$0xff]
        %v1121 = vlaneseq
        %v1122 = vshrl.u32 %v1121, 7
        %v1123 = vsub.s32 1, %v1122
        %v1124 = vrot.slane %v1019, %v1123
        %v1125 = vmul.f32 %v1089, %v1124
        %v1126 = vmul.f32 %v1090, %v1124
        %v1127 = vmul.f32 %v1091, %v1124
        %v1128 = vmul.f32 %v1092, %v1124
        %v1129 = vmul.f32 %v1093, %v1124
        %v1130 = vmul.f32 %v1094, %v1124
        %v1131 = vmul.f32 %v1095, %v1124
        %v1132 = vmul.f32 %v1096, %v1124
        %v1133 = vmul.f32 %v1097, %v1124
        %v1134 = vmul.f32 %v1098, %v1124
        %v1135 = vmul.f32 %v1099, %v1124
        %v1136 = vmul.f32 %v1100, %v1124
        %v1137 = vmul.f32 %v1101, %v1124
        %v1138 = vmul.f32 %v1102, %v1124
        %v1139 = vmul.f32 %v1103, %v1124
        %v1140 = vmul.f32 %v1104, %v1124
        %v1141 = vmul.f32 %v1105, %v1124
        %v1142 = vmul.f32 %v1106, %v1124
        %v1143 = vmul.f32 %v1107, %v1124
        %v1144 = vmul.f32 %v1108, %v1124
        %v1145 = vmul.f32 %v1109, %v1124
        %v1146 = vmul.f32 %v1110, %v1124
        %v1147 = vmul.f32 %v1111, %v1124
        %v1148 = vmul.f32 %v1112, %v1124
        %v1149 = vmul.f32 %v1113, %v1124
        %v1150 = vmul.f32 %v1114, %v1124
        %v1151 = vmul.f32 %v1115, %v1124
        %v1152 = vmul.f32 %v1116, %v1124
        %v1153 = vmul.f32 %v1117, %v1124
        %v1154 = vmul.f32 %v1118, %v1124
        %v1155 = vmul.f32 %v1119, %v1124
        %v1156 = vmul.f32 %v1120, %v1124
        %v1157 = vadd.f32 %v1057, %v1125
        %v1158 = vadd.f32 %v1058, %v1126
        %v1159 = vadd.f32 %v1059, %v1127
        %v1160 = vadd.f32 %v1060, %v1128
        %v1161 = vadd.f32 %v1061, %v1129
        %v1162 = vadd.f32 %v1062, %v1130
        %v1163 = vadd.f32 %v1063, %v1131
        %v1164 = vadd.f32 %v1064, %v1132
        %v1165 = vadd.f32 %v1065, %v1133
        %v1166 = vadd.f32 %v1066, %v1134
        %v1167 = vadd.f32 %v1067, %v1135
        %v1168 = vadd.f32 %v1068, %v1136
        %v1169 = vadd.f32 %v1069, %v1137
        %v1170 = vadd.f32 %v1070, %v1138
        %v1171 = vadd.f32 %v1071, %v1139
        %v1172 = vadd.f32 %v1072, %v1140
        %v1173 = vadd.f32 %v1073, %v1141
        %v1174 = vadd.f32 %v1074, %v1142
        %v1175 = vadd.f32 %v1075, %v1143
        %v1176 = vadd.f32 %v1076, %v1144
        %v1177 = vadd.f32 %v1077, %v1145
        %v1178 = vadd.f32 %v1078, %v1146
        %v1179 = vadd.f32 %v1079, %v1147
        %v1180 = vadd.f32 %v1080, %v1148
        %v1181 = vadd.f32 %v1081, %v1149
        %v1182 = vadd.f32 %v1082, %v1150
        %v1183 = vadd.f32 %v1083, %v1151
        %v1184 = vadd.f32 %v1084, %v1152
        %v1185 = vadd.f32 %v1085, %v1153
        %v1186 = vadd.f32 %v1086, %v1154
        %v1187 = vadd.f32 %v1087, %v1155
        %v1188 = vadd.f32 %v1088, %v1156
        %v1189 = vld [vmem:[#allocation2 + $0x2] sm:$0xff]
        %v1190 = vld [vmem:[#allocation2 + $0xa] sm:$0xff]
        %v1191 = vld [vmem:[#allocation2 + $0x1a] sm:$0xff]
        %v1192 = vld [vmem:[#allocation2 + $0x22] sm:$0xff]
        %v1193 = vld [vmem:[#allocation2 + $0x32] sm:$0xff]
        %v1194 = vld [vmem:[#allocation2 + $0x3a] sm:$0xff]
        %v1195 = vld [vmem:[#allocation2 + $0x4a] sm:$0xff]
        %v1196 = vld [vmem:[#allocation2 + $0x52] sm:$0xff]
        %v1197 = vld [vmem:[#allocation2 + $0x62] sm:$0xff]
        %v1198 = vld [vmem:[#allocation2 + $0x6a] sm:$0xff]
        %v1199 = vld [vmem:[#allocation2 + $0x7a] sm:$0xff]
        %v1200 = vld [vmem:[#allocation2 + $0x82] sm:$0xff]
        %v1201 = vld [vmem:[#allocation2 + $0x92] sm:$0xff]
        %v1202 = vld [vmem:[#allocation2 + $0x9a] sm:$0xff]
        %v1203 = vld [vmem:[#allocation2 + $0xaa] sm:$0xff]
        %v1204 = vld [vmem:[#allocation2 + $0xb2] sm:$0xff]
        %v1205 = vld [vmem:[#allocation2 + $0xc2] sm:$0xff]
        %v1206 = vld [vmem:[#allocation2 + $0xca] sm:$0xff]
        %v1207 = vld [vmem:[#allocation2 + $0xda] sm:$0xff]
        %v1208 = vld [vmem:[#allocation2 + $0xe2] sm:$0xff]
        %v1209 = vld [vmem:[#allocation2 + $0xf2] sm:$0xff]
        %v1210 = vld [vmem:[#allocation2 + $0xfa] sm:$0xff]
        %v1211 = vld [vmem:[#allocation2 + $0x10a] sm:$0xff]
        %v1212 = vld [vmem:[#allocation2 + $0x112] sm:$0xff]
        %v1213 = vld [vmem:[#allocation2 + $0x122] sm:$0xff]
        %v1214 = vld [vmem:[#allocation2 + $0x12a] sm:$0xff]
        %v1215 = vld [vmem:[#allocation2 + $0x13a] sm:$0xff]
        %v1216 = vld [vmem:[#allocation2 + $0x142] sm:$0xff]
        %v1217 = vld [vmem:[#allocation2 + $0x152] sm:$0xff]
        %v1218 = vld [vmem:[#allocation2 + $0x15a] sm:$0xff]
        %v1219 = vld [vmem:[#allocation2 + $0x16a] sm:$0xff]
        %v1220 = vld [vmem:[#allocation2 + $0x172] sm:$0xff]
        %v1221 = vlaneseq
        %v1222 = vshrl.u32 %v1221, 7
        %v1223 = vsub.s32 2, %v1222
        %v1224 = vrot.slane %v1019, %v1223
        %v1225 = vmul.f32 %v1189, %v1224
        %v1226 = vmul.f32 %v1190, %v1224
        %v1227 = vmul.f32 %v1191, %v1224
        %v1228 = vmul.f32 %v1192, %v1224
        %v1229 = vmul.f32 %v1193, %v1224
        %v1230 = vmul.f32 %v1194, %v1224
        %v1231 = vmul.f32 %v1195, %v1224
        %v1232 = vmul.f32 %v1196, %v1224
        %v1233 = vmul.f32 %v1197, %v1224
        %v1234 = vmul.f32 %v1198, %v1224
        %v1235 = vmul.f32 %v1199, %v1224
        %v1236 = vmul.f32 %v1200, %v1224
        %v1237 = vmul.f32 %v1201, %v1224
        %v1238 = vmul.f32 %v1202, %v1224
        %v1239 = vmul.f32 %v1203, %v1224
        %v1240 = vmul.f32 %v1204, %v1224
        %v1241 = vmul.f32 %v1205, %v1224
        %v1242 = vmul.f32 %v1206, %v1224
        %v1243 = vmul.f32 %v1207, %v1224
        %v1244 = vmul.f32 %v1208, %v1224
        %v1245 = vmul.f32 %v1209, %v1224
        %v1246 = vmul.f32 %v1210, %v1224
        %v1247 = vmul.f32 %v1211, %v1224
        %v1248 = vmul.f32 %v1212, %v1224
        %v1249 = vmul.f32 %v1213, %v1224
        %v1250 = vmul.f32 %v1214, %v1224
        %v1251 = vmul.f32 %v1215, %v1224
        %v1252 = vmul.f32 %v1216, %v1224
        %v1253 = vmul.f32 %v1217, %v1224
        %v1254 = vmul.f32 %v1218, %v1224
        %v1255 = vmul.f32 %v1219, %v1224
        %v1256 = vmul.f32 %v1220, %v1224
        %v1257 = vadd.f32 %v1157, %v1225
        %v1258 = vadd.f32 %v1158, %v1226
        %v1259 = vadd.f32 %v1159, %v1227
        %v1260 = vadd.f32 %v1160, %v1228
        %v1261 = vadd.f32 %v1161, %v1229
        %v1262 = vadd.f32 %v1162, %v1230
        %v1263 = vadd.f32 %v1163, %v1231
        %v1264 = vadd.f32 %v1164, %v1232
        %v1265 = vadd.f32 %v1165, %v1233
        %v1266 = vadd.f32 %v1166, %v1234
        %v1267 = vadd.f32 %v1167, %v1235
        %v1268 = vadd.f32 %v1168, %v1236
        %v1269 = vadd.f32 %v1169, %v1237
        %v1270 = vadd.f32 %v1170, %v1238
        %v1271 = vadd.f32 %v1171, %v1239
        %v1272 = vadd.f32 %v1172, %v1240
        %v1273 = vadd.f32 %v1173, %v1241
        %v1274 = vadd.f32 %v1174, %v1242
        %v1275 = vadd.f32 %v1175, %v1243
        %v1276 = vadd.f32 %v1176, %v1244
        %v1277 = vadd.f32 %v1177, %v1245
        %v1278 = vadd.f32 %v1178, %v1246
        %v1279 = vadd.f32 %v1179, %v1247
        %v1280 = vadd.f32 %v1180, %v1248
        %v1281 = vadd.f32 %v1181, %v1249
        %v1282 = vadd.f32 %v1182, %v1250
        %v1283 = vadd.f32 %v1183, %v1251
        %v1284 = vadd.f32 %v1184, %v1252
        %v1285 = vadd.f32 %v1185, %v1253
        %v1286 = vadd.f32 %v1186, %v1254
        %v1287 = vadd.f32 %v1187, %v1255
        %v1288 = vadd.f32 %v1188, %v1256
        %v1289 = vld [vmem:[%s986] sm:$0xff]
        %v1290 = vld [vmem:[%s986 + $0x8] sm:$0xff]
        %v1291 = vld [vmem:[%s986 + $0x18] sm:$0xff]
        %v1292 = vld [vmem:[%s986 + $0x20] sm:$0xff]
        %v1293 = vld [vmem:[%s986 + $0x30] sm:$0xff]
        %v1294 = vld [vmem:[%s986 + $0x38] sm:$0xff]
        %v1295 = vld [vmem:[%s986 + $0x48] sm:$0xff]
        %v1296 = vld [vmem:[%s986 + $0x50] sm:$0xff]
        %v1297 = vld [vmem:[%s986 + $0x60] sm:$0xff]
        %v1298 = vld [vmem:[%s986 + $0x68] sm:$0xff]
        %v1299 = vld [vmem:[%s986 + $0x78] sm:$0xff]
        %v1300 = vld [vmem:[%s986 + $0x80] sm:$0xff]
        %v1301 = vld [vmem:[%s986 + $0x90] sm:$0xff]
        %v1302 = vld [vmem:[%s986 + $0x98] sm:$0xff]
        %v1303 = vld [vmem:[%s986 + $0xa8] sm:$0xff]
        %v1304 = vld [vmem:[%s986 + $0xb0] sm:$0xff]
        %v1305 = vld [vmem:[%s986 + $0xc0] sm:$0xff]
        %v1306 = vld [vmem:[%s986 + $0xc8] sm:$0xff]
        %v1307 = vld [vmem:[%s986 + $0xd8] sm:$0xff]
        %v1308 = vld [vmem:[%s986 + $0xe0] sm:$0xff]
        %v1309 = vld [vmem:[%s986 + $0xf0] sm:$0xff]
        %v1310 = vld [vmem:[%s986 + $0xf8] sm:$0xff]
        %v1311 = vld [vmem:[%s986 + $0x108] sm:$0xff]
        %v1312 = vld [vmem:[%s986 + $0x110] sm:$0xff]
        %v1313 = vld [vmem:[%s986 + $0x120] sm:$0xff]
        %v1314 = vld [vmem:[%s986 + $0x128] sm:$0xff]
        %v1315 = vld [vmem:[%s986 + $0x138] sm:$0xff]
        %v1316 = vld [vmem:[%s986 + $0x140] sm:$0xff]
        %v1317 = vld [vmem:[%s986 + $0x150] sm:$0xff]
        %v1318 = vld [vmem:[%s986 + $0x158] sm:$0xff]
        %v1319 = vld [vmem:[%s986 + $0x168] sm:$0xff]
        %v1320 = vld [vmem:[%s986 + $0x170] sm:$0xff]
        %v1321 = vlaneseq
        %v1322 = vshrl.u32 %v1321, 7
        %v1323 = vsub.s32 3, %v1322
        %v1324 = vrot.slane %v1019, %v1323
        %v1325 = vmul.f32 %v1289, %v1324
        %v1326 = vmul.f32 %v1290, %v1324
        %v1327 = vmul.f32 %v1291, %v1324
        %v1328 = vmul.f32 %v1292, %v1324
        %v1329 = vmul.f32 %v1293, %v1324
        %v1330 = vmul.f32 %v1294, %v1324
        %v1331 = vmul.f32 %v1295, %v1324
        %v1332 = vmul.f32 %v1296, %v1324
        %v1333 = vmul.f32 %v1297, %v1324
        %v1334 = vmul.f32 %v1298, %v1324
        %v1335 = vmul.f32 %v1299, %v1324
        %v1336 = vmul.f32 %v1300, %v1324
        %v1337 = vmul.f32 %v1301, %v1324
        %v1338 = vmul.f32 %v1302, %v1324
        %v1339 = vmul.f32 %v1303, %v1324
        %v1340 = vmul.f32 %v1304, %v1324
        %v1341 = vmul.f32 %v1305, %v1324
        %v1342 = vmul.f32 %v1306, %v1324
        %v1343 = vmul.f32 %v1307, %v1324
        %v1344 = vmul.f32 %v1308, %v1324
        %v1345 = vmul.f32 %v1309, %v1324
        %v1346 = vmul.f32 %v1310, %v1324
        %v1347 = vmul.f32 %v1311, %v1324
        %v1348 = vmul.f32 %v1312, %v1324
        %v1349 = vmul.f32 %v1313, %v1324
        %v1350 = vmul.f32 %v1314, %v1324
        %v1351 = vmul.f32 %v1315, %v1324
        %v1352 = vmul.f32 %v1316, %v1324
        %v1353 = vmul.f32 %v1317, %v1324
        %v1354 = vmul.f32 %v1318, %v1324
        %v1355 = vmul.f32 %v1319, %v1324
        %v1356 = vmul.f32 %v1320, %v1324
        %v1357 = vadd.f32 %v1257, %v1325
        %v1358 = vadd.f32 %v1258, %v1326
        %v1359 = vadd.f32 %v1259, %v1327
        %v1360 = vadd.f32 %v1260, %v1328
        %v1361 = vadd.f32 %v1261, %v1329
        %v1362 = vadd.f32 %v1262, %v1330
        %v1363 = vadd.f32 %v1263, %v1331
        %v1364 = vadd.f32 %v1264, %v1332
        %v1365 = vadd.f32 %v1265, %v1333
        %v1366 = vadd.f32 %v1266, %v1334
        %v1367 = vadd.f32 %v1267, %v1335
        %v1368 = vadd.f32 %v1268, %v1336
        %v1369 = vadd.f32 %v1269, %v1337
        %v1370 = vadd.f32 %v1270, %v1338
        %v1371 = vadd.f32 %v1271, %v1339
        %v1372 = vadd.f32 %v1272, %v1340
        %v1373 = vadd.f32 %v1273, %v1341
        %v1374 = vadd.f32 %v1274, %v1342
        %v1375 = vadd.f32 %v1275, %v1343
        %v1376 = vadd.f32 %v1276, %v1344
        %v1377 = vadd.f32 %v1277, %v1345
        %v1378 = vadd.f32 %v1278, %v1346
        %v1379 = vadd.f32 %v1279, %v1347
        %v1380 = vadd.f32 %v1280, %v1348
        %v1381 = vadd.f32 %v1281, %v1349
        %v1382 = vadd.f32 %v1282, %v1350
        %v1383 = vadd.f32 %v1283, %v1351
        %v1384 = vadd.f32 %v1284, %v1352
        %v1385 = vadd.f32 %v1285, %v1353
        %v1386 = vadd.f32 %v1286, %v1354
        %v1387 = vadd.f32 %v1287, %v1355
        %v1388 = vadd.f32 %v1288, %v1356
        %v1389 = vld [vmem:[%s986 + $0x1] sm:$0xff]
        %v1390 = vld [vmem:[%s986 + $0x9] sm:$0xff]
        %v1391 = vld [vmem:[%s986 + $0x19] sm:$0xff]
        %v1392 = vld [vmem:[%s986 + $0x21] sm:$0xff]
        %v1393 = vld [vmem:[%s986 + $0x31] sm:$0xff]
        %v1394 = vld [vmem:[%s986 + $0x39] sm:$0xff]
        %v1395 = vld [vmem:[%s986 + $0x49] sm:$0xff]
        %v1396 = vld [vmem:[%s986 + $0x51] sm:$0xff]
        %v1397 = vld [vmem:[%s986 + $0x61] sm:$0xff]
        %v1398 = vld [vmem:[%s986 + $0x69] sm:$0xff]
        %v1399 = vld [vmem:[%s986 + $0x79] sm:$0xff]
        %v1400 = vld [vmem:[%s986 + $0x81] sm:$0xff]
        %v1401 = vld [vmem:[%s986 + $0x91] sm:$0xff]
        %v1402 = vld [vmem:[%s986 + $0x99] sm:$0xff]
        %v1403 = vld [vmem:[%s986 + $0xa9] sm:$0xff]
        %v1404 = vld [vmem:[%s986 + $0xb1] sm:$0xff]
        %v1405 = vld [vmem:[%s986 + $0xc1] sm:$0xff]
        %v1406 = vld [vmem:[%s986 + $0xc9] sm:$0xff]
        %v1407 = vld [vmem:[%s986 + $0xd9] sm:$0xff]
        %v1408 = vld [vmem:[%s986 + $0xe1] sm:$0xff]
        %v1409 = vld [vmem:[%s986 + $0xf1] sm:$0xff]
        %v1410 = vld [vmem:[%s986 + $0xf9] sm:$0xff]
        %v1411 = vld [vmem:[%s986 + $0x109] sm:$0xff]
        %v1412 = vld [vmem:[%s986 + $0x111] sm:$0xff]
        %v1413 = vld [vmem:[%s986 + $0x121] sm:$0xff]
        %v1414 = vld [vmem:[%s986 + $0x129] sm:$0xff]
        %v1415 = vld [vmem:[%s986 + $0x139] sm:$0xff]
        %v1416 = vld [vmem:[%s986 + $0x141] sm:$0xff]
        %v1417 = vld [vmem:[%s986 + $0x151] sm:$0xff]
        %v1418 = vld [vmem:[%s986 + $0x159] sm:$0xff]
        %v1419 = vld [vmem:[%s986 + $0x169] sm:$0xff]
        %v1420 = vld [vmem:[%s986 + $0x171] sm:$0xff]
        %v1421 = vlaneseq
        %v1422 = vshrl.u32 %v1421, 7
        %v1423 = vsub.s32 4, %v1422
        %v1424 = vrot.slane %v1019, %v1423
        %v1425 = vmul.f32 %v1389, %v1424
        %v1426 = vmul.f32 %v1390, %v1424
        %v1427 = vmul.f32 %v1391, %v1424
        %v1428 = vmul.f32 %v1392, %v1424
        %v1429 = vmul.f32 %v1393, %v1424
        %v1430 = vmul.f32 %v1394, %v1424
        %v1431 = vmul.f32 %v1395, %v1424
        %v1432 = vmul.f32 %v1396, %v1424
        %v1433 = vmul.f32 %v1397, %v1424
        %v1434 = vmul.f32 %v1398, %v1424
        %v1435 = vmul.f32 %v1399, %v1424
        %v1436 = vmul.f32 %v1400, %v1424
        %v1437 = vmul.f32 %v1401, %v1424
        %v1438 = vmul.f32 %v1402, %v1424
        %v1439 = vmul.f32 %v1403, %v1424
        %v1440 = vmul.f32 %v1404, %v1424
        %v1441 = vmul.f32 %v1405, %v1424
        %v1442 = vmul.f32 %v1406, %v1424
        %v1443 = vmul.f32 %v1407, %v1424
        %v1444 = vmul.f32 %v1408, %v1424
        %v1445 = vmul.f32 %v1409, %v1424
        %v1446 = vmul.f32 %v1410, %v1424
        %v1447 = vmul.f32 %v1411, %v1424
        %v1448 = vmul.f32 %v1412, %v1424
        %v1449 = vmul.f32 %v1413, %v1424
        %v1450 = vmul.f32 %v1414, %v1424
        %v1451 = vmul.f32 %v1415, %v1424
        %v1452 = vmul.f32 %v1416, %v1424
        %v1453 = vmul.f32 %v1417, %v1424
        %v1454 = vmul.f32 %v1418, %v1424
        %v1455 = vmul.f32 %v1419, %v1424
        %v1456 = vmul.f32 %v1420, %v1424
        %v1457 = vadd.f32 %v1357, %v1425
        %v1458 = vadd.f32 %v1358, %v1426
        %v1459 = vadd.f32 %v1359, %v1427
        %v1460 = vadd.f32 %v1360, %v1428
        %v1461 = vadd.f32 %v1361, %v1429
        %v1462 = vadd.f32 %v1362, %v1430
        %v1463 = vadd.f32 %v1363, %v1431
        %v1464 = vadd.f32 %v1364, %v1432
        %v1465 = vadd.f32 %v1365, %v1433
        %v1466 = vadd.f32 %v1366, %v1434
        %v1467 = vadd.f32 %v1367, %v1435
        %v1468 = vadd.f32 %v1368, %v1436
        %v1469 = vadd.f32 %v1369, %v1437
        %v1470 = vadd.f32 %v1370, %v1438
        %v1471 = vadd.f32 %v1371, %v1439
        %v1472 = vadd.f32 %v1372, %v1440
        %v1473 = vadd.f32 %v1373, %v1441
        %v1474 = vadd.f32 %v1374, %v1442
        %v1475 = vadd.f32 %v1375, %v1443
        %v1476 = vadd.f32 %v1376, %v1444
        %v1477 = vadd.f32 %v1377, %v1445
        %v1478 = vadd.f32 %v1378, %v1446
        %v1479 = vadd.f32 %v1379, %v1447
        %v1480 = vadd.f32 %v1380, %v1448
        %v1481 = vadd.f32 %v1381, %v1449
        %v1482 = vadd.f32 %v1382, %v1450
        %v1483 = vadd.f32 %v1383, %v1451
        %v1484 = vadd.f32 %v1384, %v1452
        %v1485 = vadd.f32 %v1385, %v1453
        %v1486 = vadd.f32 %v1386, %v1454
        %v1487 = vadd.f32 %v1387, %v1455
        %v1488 = vadd.f32 %v1388, %v1456
        %v1489 = vld [vmem:[%s986 + $0x2] sm:$0xff]
        %v1490 = vld [vmem:[%s986 + $0xa] sm:$0xff]
        %v1491 = vld [vmem:[%s986 + $0x1a] sm:$0xff]
        %v1492 = vld [vmem:[%s986 + $0x22] sm:$0xff]
        %v1493 = vld [vmem:[%s986 + $0x32] sm:$0xff]
        %v1494 = vld [vmem:[%s986 + $0x3a] sm:$0xff]
        %v1495 = vld [vmem:[%s986 + $0x4a] sm:$0xff]
        %v1496 = vld [vmem:[%s986 + $0x52] sm:$0xff]
        %v1497 = vld [vmem:[%s986 + $0x62] sm:$0xff]
        %v1498 = vld [vmem:[%s986 + $0x6a] sm:$0xff]
        %v1499 = vld [vmem:[%s986 + $0x7a] sm:$0xff]
        %v1500 = vld [vmem:[%s986 + $0x82] sm:$0xff]
        %v1501 = vld [vmem:[%s986 + $0x92] sm:$0xff]
        %v1502 = vld [vmem:[%s986 + $0x9a] sm:$0xff]
        %v1503 = vld [vmem:[%s986 + $0xaa] sm:$0xff]
        %v1504 = vld [vmem:[%s986 + $0xb2] sm:$0xff]
        %v1505 = vld [vmem:[%s986 + $0xc2] sm:$0xff]
        %v1506 = vld [vmem:[%s986 + $0xca] sm:$0xff]
        %v1507 = vld [vmem:[%s986 + $0xda] sm:$0xff]
        %v1508 = vld [vmem:[%s986 + $0xe2] sm:$0xff]
        %v1509 = vld [vmem:[%s986 + $0xf2] sm:$0xff]
        %v1510 = vld [vmem:[%s986 + $0xfa] sm:$0xff]
        %v1511 = vld [vmem:[%s986 + $0x10a] sm:$0xff]
        %v1512 = vld [vmem:[%s986 + $0x112] sm:$0xff]
        %v1513 = vld [vmem:[%s986 + $0x122] sm:$0xff]
        %v1514 = vld [vmem:[%s986 + $0x12a] sm:$0xff]
        %v1515 = vld [vmem:[%s986 + $0x13a] sm:$0xff]
        %v1516 = vld [vmem:[%s986 + $0x142] sm:$0xff]
        %v1517 = vld [vmem:[%s986 + $0x152] sm:$0xff]
        %v1518 = vld [vmem:[%s986 + $0x15a] sm:$0xff]
        %v1519 = vld [vmem:[%s986 + $0x16a] sm:$0xff]
        %v1520 = vld [vmem:[%s986 + $0x172] sm:$0xff]
        %v1521 = vlaneseq
        %v1522 = vshrl.u32 %v1521, 7
        %v1523 = vsub.s32 5, %v1522
        %v1524 = vrot.slane %v1019, %v1523
        %v1525 = vmul.f32 %v1489, %v1524
        %v1526 = vmul.f32 %v1490, %v1524
        %v1527 = vmul.f32 %v1491, %v1524
        %v1528 = vmul.f32 %v1492, %v1524
        %v1529 = vmul.f32 %v1493, %v1524
        %v1530 = vmul.f32 %v1494, %v1524
        %v1531 = vmul.f32 %v1495, %v1524
        %v1532 = vmul.f32 %v1496, %v1524
        %v1533 = vmul.f32 %v1497, %v1524
        %v1534 = vmul.f32 %v1498, %v1524
        %v1535 = vmul.f32 %v1499, %v1524
        %v1536 = vmul.f32 %v1500, %v1524
        %v1537 = vmul.f32 %v1501, %v1524
        %v1538 = vmul.f32 %v1502, %v1524
        %v1539 = vmul.f32 %v1503, %v1524
        %v1540 = vmul.f32 %v1504, %v1524
        %v1541 = vmul.f32 %v1505, %v1524
        %v1542 = vmul.f32 %v1506, %v1524
        %v1543 = vmul.f32 %v1507, %v1524
        %v1544 = vmul.f32 %v1508, %v1524
        %v1545 = vmul.f32 %v1509, %v1524
        %v1546 = vmul.f32 %v1510, %v1524
        %v1547 = vmul.f32 %v1511, %v1524
        %v1548 = vmul.f32 %v1512, %v1524
        %v1549 = vmul.f32 %v1513, %v1524
        %v1550 = vmul.f32 %v1514, %v1524
        %v1551 = vmul.f32 %v1515, %v1524
        %v1552 = vmul.f32 %v1516, %v1524
        %v1553 = vmul.f32 %v1517, %v1524
        %v1554 = vmul.f32 %v1518, %v1524
        %v1555 = vmul.f32 %v1519, %v1524
        %v1556 = vmul.f32 %v1520, %v1524
        %v1557 = vadd.f32 %v1457, %v1525
        %v1558 = vadd.f32 %v1458, %v1526
        %v1559 = vadd.f32 %v1459, %v1527
        %v1560 = vadd.f32 %v1460, %v1528
        %v1561 = vadd.f32 %v1461, %v1529
        %v1562 = vadd.f32 %v1462, %v1530
        %v1563 = vadd.f32 %v1463, %v1531
        %v1564 = vadd.f32 %v1464, %v1532
        %v1565 = vadd.f32 %v1465, %v1533
        %v1566 = vadd.f32 %v1466, %v1534
        %v1567 = vadd.f32 %v1467, %v1535
        %v1568 = vadd.f32 %v1468, %v1536
        %v1569 = vadd.f32 %v1469, %v1537
        %v1570 = vadd.f32 %v1470, %v1538
        %v1571 = vadd.f32 %v1471, %v1539
        %v1572 = vadd.f32 %v1472, %v1540
        %v1573 = vadd.f32 %v1473, %v1541
        %v1574 = vadd.f32 %v1474, %v1542
        %v1575 = vadd.f32 %v1475, %v1543
        %v1576 = vadd.f32 %v1476, %v1544
        %v1577 = vadd.f32 %v1477, %v1545
        %v1578 = vadd.f32 %v1478, %v1546
        %v1579 = vadd.f32 %v1479, %v1547
        %v1580 = vadd.f32 %v1480, %v1548
        %v1581 = vadd.f32 %v1481, %v1549
        %v1582 = vadd.f32 %v1482, %v1550
        %v1583 = vadd.f32 %v1483, %v1551
        %v1584 = vadd.f32 %v1484, %v1552
        %v1585 = vadd.f32 %v1485, %v1553
        %v1586 = vadd.f32 %v1486, %v1554
        %v1587 = vadd.f32 %v1487, %v1555
        %v1588 = vadd.f32 %v1488, %v1556
        %s1589 = scalar_lea.vmem [#allocation2], 48
        %v1590 = vld [vmem:[%s1589] sm:$0xff]
        %v1591 = vld [vmem:[%s1589 + $0x8] sm:$0xff]
        %v1592 = vld [vmem:[%s1589 + $0x18] sm:$0xff]
        %v1593 = vld [vmem:[%s1589 + $0x20] sm:$0xff]
        %v1594 = vld [vmem:[%s1589 + $0x30] sm:$0xff]
        %v1595 = vld [vmem:[%s1589 + $0x38] sm:$0xff]
        %v1596 = vld [vmem:[%s1589 + $0x48] sm:$0xff]
        %v1597 = vld [vmem:[%s1589 + $0x50] sm:$0xff]
        %v1598 = vld [vmem:[%s1589 + $0x60] sm:$0xff]
        %v1599 = vld [vmem:[%s1589 + $0x68] sm:$0xff]
        %v1600 = vld [vmem:[%s1589 + $0x78] sm:$0xff]
        %v1601 = vld [vmem:[%s1589 + $0x80] sm:$0xff]
        %v1602 = vld [vmem:[%s1589 + $0x90] sm:$0xff]
        %v1603 = vld [vmem:[%s1589 + $0x98] sm:$0xff]
        %v1604 = vld [vmem:[%s1589 + $0xa8] sm:$0xff]
        %v1605 = vld [vmem:[%s1589 + $0xb0] sm:$0xff]
        %v1606 = vld [vmem:[%s1589 + $0xc0] sm:$0xff]
        %v1607 = vld [vmem:[%s1589 + $0xc8] sm:$0xff]
        %v1608 = vld [vmem:[%s1589 + $0xd8] sm:$0xff]
        %v1609 = vld [vmem:[%s1589 + $0xe0] sm:$0xff]
        %v1610 = vld [vmem:[%s1589 + $0xf0] sm:$0xff]
        %v1611 = vld [vmem:[%s1589 + $0xf8] sm:$0xff]
        %v1612 = vld [vmem:[%s1589 + $0x108] sm:$0xff]
        %v1613 = vld [vmem:[%s1589 + $0x110] sm:$0xff]
        %v1614 = vld [vmem:[%s1589 + $0x120] sm:$0xff]
        %v1615 = vld [vmem:[%s1589 + $0x128] sm:$0xff]
        %v1616 = vld [vmem:[%s1589 + $0x138] sm:$0xff]
        %v1617 = vld [vmem:[%s1589 + $0x140] sm:$0xff]
        %v1618 = vld [vmem:[%s1589 + $0x150] sm:$0xff]
        %v1619 = vld [vmem:[%s1589 + $0x158] sm:$0xff]
        %v1620 = vld [vmem:[%s1589 + $0x168] sm:$0xff]
        %v1621 = vld [vmem:[%s1589 + $0x170] sm:$0xff]
        %v1622 = vlaneseq
        %v1623 = vshrl.u32 %v1622, 7
        %v1624 = vsub.s32 6, %v1623
        %v1625 = vrot.slane %v1019, %v1624
        %v1626 = vmul.f32 %v1590, %v1625
        %v1627 = vmul.f32 %v1591, %v1625
        %v1628 = vmul.f32 %v1592, %v1625
        %v1629 = vmul.f32 %v1593, %v1625
        %v1630 = vmul.f32 %v1594, %v1625
        %v1631 = vmul.f32 %v1595, %v1625
        %v1632 = vmul.f32 %v1596, %v1625
        %v1633 = vmul.f32 %v1597, %v1625
        %v1634 = vmul.f32 %v1598, %v1625
        %v1635 = vmul.f32 %v1599, %v1625
        %v1636 = vmul.f32 %v1600, %v1625
        %v1637 = vmul.f32 %v1601, %v1625
        %v1638 = vmul.f32 %v1602, %v1625
        %v1639 = vmul.f32 %v1603, %v1625
        %v1640 = vmul.f32 %v1604, %v1625
        %v1641 = vmul.f32 %v1605, %v1625
        %v1642 = vmul.f32 %v1606, %v1625
        %v1643 = vmul.f32 %v1607, %v1625
        %v1644 = vmul.f32 %v1608, %v1625
        %v1645 = vmul.f32 %v1609, %v1625
        %v1646 = vmul.f32 %v1610, %v1625
        %v1647 = vmul.f32 %v1611, %v1625
        %v1648 = vmul.f32 %v1612, %v1625
        %v1649 = vmul.f32 %v1613, %v1625
        %v1650 = vmul.f32 %v1614, %v1625
        %v1651 = vmul.f32 %v1615, %v1625
        %v1652 = vmul.f32 %v1616, %v1625
        %v1653 = vmul.f32 %v1617, %v1625
        %v1654 = vmul.f32 %v1618, %v1625
        %v1655 = vmul.f32 %v1619, %v1625
        %v1656 = vmul.f32 %v1620, %v1625
        %v1657 = vmul.f32 %v1621, %v1625
        %v1658 = vadd.f32 %v1557, %v1626
        %v1659 = vadd.f32 %v1558, %v1627
        %v1660 = vadd.f32 %v1559, %v1628
        %v1661 = vadd.f32 %v1560, %v1629
        %v1662 = vadd.f32 %v1561, %v1630
        %v1663 = vadd.f32 %v1562, %v1631
        %v1664 = vadd.f32 %v1563, %v1632
        %v1665 = vadd.f32 %v1564, %v1633
        %v1666 = vadd.f32 %v1565, %v1634
        %v1667 = vadd.f32 %v1566, %v1635
        %v1668 = vadd.f32 %v1567, %v1636
        %v1669 = vadd.f32 %v1568, %v1637
        %v1670 = vadd.f32 %v1569, %v1638
        %v1671 = vadd.f32 %v1570, %v1639
        %v1672 = vadd.f32 %v1571, %v1640
        %v1673 = vadd.f32 %v1572, %v1641
        %v1674 = vadd.f32 %v1573, %v1642
        %v1675 = vadd.f32 %v1574, %v1643
        %v1676 = vadd.f32 %v1575, %v1644
        %v1677 = vadd.f32 %v1576, %v1645
        %v1678 = vadd.f32 %v1577, %v1646
        %v1679 = vadd.f32 %v1578, %v1647
        %v1680 = vadd.f32 %v1579, %v1648
        %v1681 = vadd.f32 %v1580, %v1649
        %v1682 = vadd.f32 %v1581, %v1650
        %v1683 = vadd.f32 %v1582, %v1651
        %v1684 = vadd.f32 %v1583, %v1652
        %v1685 = vadd.f32 %v1584, %v1653
        %v1686 = vadd.f32 %v1585, %v1654
        %v1687 = vadd.f32 %v1586, %v1655
        %v1688 = vadd.f32 %v1587, %v1656
        %v1689 = vadd.f32 %v1588, %v1657
        %v1690 = vld [vmem:[%s1589 + $0x1] sm:$0xff]
        %v1691 = vld [vmem:[%s1589 + $0x9] sm:$0xff]
        %v1692 = vld [vmem:[%s1589 + $0x19] sm:$0xff]
        %v1693 = vld [vmem:[%s1589 + $0x21] sm:$0xff]
        %v1694 = vld [vmem:[%s1589 + $0x31] sm:$0xff]
        %v1695 = vld [vmem:[%s1589 + $0x39] sm:$0xff]
        %v1696 = vld [vmem:[%s1589 + $0x49] sm:$0xff]
        %v1697 = vld [vmem:[%s1589 + $0x51] sm:$0xff]
        %v1698 = vld [vmem:[%s1589 + $0x61] sm:$0xff]
        %v1699 = vld [vmem:[%s1589 + $0x69] sm:$0xff]
        %v1700 = vld [vmem:[%s1589 + $0x79] sm:$0xff]
        %v1701 = vld [vmem:[%s1589 + $0x81] sm:$0xff]
        %v1702 = vld [vmem:[%s1589 + $0x91] sm:$0xff]
        %v1703 = vld [vmem:[%s1589 + $0x99] sm:$0xff]
        %v1704 = vld [vmem:[%s1589 + $0xa9] sm:$0xff]
        %v1705 = vld [vmem:[%s1589 + $0xb1] sm:$0xff]
        %v1706 = vld [vmem:[%s1589 + $0xc1] sm:$0xff]
        %v1707 = vld [vmem:[%s1589 + $0xc9] sm:$0xff]
        %v1708 = vld [vmem:[%s1589 + $0xd9] sm:$0xff]
        %v1709 = vld [vmem:[%s1589 + $0xe1] sm:$0xff]
        %v1710 = vld [vmem:[%s1589 + $0xf1] sm:$0xff]
        %v1711 = vld [vmem:[%s1589 + $0xf9] sm:$0xff]
        %v1712 = vld [vmem:[%s1589 + $0x109] sm:$0xff]
        %v1713 = vld [vmem:[%s1589 + $0x111] sm:$0xff]
        %v1714 = vld [vmem:[%s1589 + $0x121] sm:$0xff]
        %v1715 = vld [vmem:[%s1589 + $0x129] sm:$0xff]
        %v1716 = vld [vmem:[%s1589 + $0x139] sm:$0xff]
        %v1717 = vld [vmem:[%s1589 + $0x141] sm:$0xff]
        %v1718 = vld [vmem:[%s1589 + $0x151] sm:$0xff]
        %v1719 = vld [vmem:[%s1589 + $0x159] sm:$0xff]
        %v1720 = vld [vmem:[%s1589 + $0x169] sm:$0xff]
        %v1721 = vld [vmem:[%s1589 + $0x171] sm:$0xff]
        %v1722 = vlaneseq
        %v1723 = vshrl.u32 %v1722, 7
        %v1724 = vsub.s32 7, %v1723
        %v1725 = vrot.slane %v1019, %v1724
        %v1726 = vmul.f32 %v1690, %v1725
        %v1727 = vmul.f32 %v1691, %v1725
        %v1728 = vmul.f32 %v1692, %v1725
        %v1729 = vmul.f32 %v1693, %v1725
        %v1730 = vmul.f32 %v1694, %v1725
        %v1731 = vmul.f32 %v1695, %v1725
        %v1732 = vmul.f32 %v1696, %v1725
        %v1733 = vmul.f32 %v1697, %v1725
        %v1734 = vmul.f32 %v1698, %v1725
        %v1735 = vmul.f32 %v1699, %v1725
        %v1736 = vmul.f32 %v1700, %v1725
        %v1737 = vmul.f32 %v1701, %v1725
        %v1738 = vmul.f32 %v1702, %v1725
        %v1739 = vmul.f32 %v1703, %v1725
        %v1740 = vmul.f32 %v1704, %v1725
        %v1741 = vmul.f32 %v1705, %v1725
        %v1742 = vmul.f32 %v1706, %v1725
        %v1743 = vmul.f32 %v1707, %v1725
        %v1744 = vmul.f32 %v1708, %v1725
        %v1745 = vmul.f32 %v1709, %v1725
        %v1746 = vmul.f32 %v1710, %v1725
        %v1747 = vmul.f32 %v1711, %v1725
        %v1748 = vmul.f32 %v1712, %v1725
        %v1749 = vmul.f32 %v1713, %v1725
        %v1750 = vmul.f32 %v1714, %v1725
        %v1751 = vmul.f32 %v1715, %v1725
        %v1752 = vmul.f32 %v1716, %v1725
        %v1753 = vmul.f32 %v1717, %v1725
        %v1754 = vmul.f32 %v1718, %v1725
        %v1755 = vmul.f32 %v1719, %v1725
        %v1756 = vmul.f32 %v1720, %v1725
        %v1757 = vmul.f32 %v1721, %v1725
        %v1758 = vadd.f32 %v1658, %v1726
        %v1759 = vadd.f32 %v1659, %v1727
        %v1760 = vadd.f32 %v1660, %v1728
        %v1761 = vadd.f32 %v1661, %v1729
        %v1762 = vadd.f32 %v1662, %v1730
        %v1763 = vadd.f32 %v1663, %v1731
        %v1764 = vadd.f32 %v1664, %v1732
        %v1765 = vadd.f32 %v1665, %v1733
        %v1766 = vadd.f32 %v1666, %v1734
        %v1767 = vadd.f32 %v1667, %v1735
        %v1768 = vadd.f32 %v1668, %v1736
        %v1769 = vadd.f32 %v1669, %v1737
        %v1770 = vadd.f32 %v1670, %v1738
        %v1771 = vadd.f32 %v1671, %v1739
        %v1772 = vadd.f32 %v1672, %v1740
        %v1773 = vadd.f32 %v1673, %v1741
        %v1774 = vadd.f32 %v1674, %v1742
        %v1775 = vadd.f32 %v1675, %v1743
        %v1776 = vadd.f32 %v1676, %v1744
        %v1777 = vadd.f32 %v1677, %v1745
        %v1778 = vadd.f32 %v1678, %v1746
        %v1779 = vadd.f32 %v1679, %v1747
        %v1780 = vadd.f32 %v1680, %v1748
        %v1781 = vadd.f32 %v1681, %v1749
        %v1782 = vadd.f32 %v1682, %v1750
        %v1783 = vadd.f32 %v1683, %v1751
        %v1784 = vadd.f32 %v1684, %v1752
        %v1785 = vadd.f32 %v1685, %v1753
        %v1786 = vadd.f32 %v1686, %v1754
        %v1787 = vadd.f32 %v1687, %v1755
        %v1788 = vadd.f32 %v1688, %v1756
        %v1789 = vadd.f32 %v1689, %v1757
        %v1790 = vld [vmem:[%s1589 + $0x2] sm:$0xff]
        %v1791 = vld [vmem:[%s1589 + $0xa] sm:$0xff]
        %v1792 = vld [vmem:[%s1589 + $0x1a] sm:$0xff]
        %v1793 = vld [vmem:[%s1589 + $0x22] sm:$0xff]
        %v1794 = vld [vmem:[%s1589 + $0x32] sm:$0xff]
        %v1795 = vld [vmem:[%s1589 + $0x3a] sm:$0xff]
        %v1796 = vld [vmem:[%s1589 + $0x4a] sm:$0xff]
        %v1797 = vld [vmem:[%s1589 + $0x52] sm:$0xff]
        %v1798 = vld [vmem:[%s1589 + $0x62] sm:$0xff]
        %v1799 = vld [vmem:[%s1589 + $0x6a] sm:$0xff]
        %v1800 = vld [vmem:[%s1589 + $0x7a] sm:$0xff]
        %v1801 = vld [vmem:[%s1589 + $0x82] sm:$0xff]
        %v1802 = vld [vmem:[%s1589 + $0x92] sm:$0xff]
        %v1803 = vld [vmem:[%s1589 + $0x9a] sm:$0xff]
        %v1804 = vld [vmem:[%s1589 + $0xaa] sm:$0xff]
        %v1805 = vld [vmem:[%s1589 + $0xb2] sm:$0xff]
        %v1806 = vld [vmem:[%s1589 + $0xc2] sm:$0xff]
        %v1807 = vld [vmem:[%s1589 + $0xca] sm:$0xff]
        %v1808 = vld [vmem:[%s1589 + $0xda] sm:$0xff]
        %v1809 = vld [vmem:[%s1589 + $0xe2] sm:$0xff]
        %v1810 = vld [vmem:[%s1589 + $0xf2] sm:$0xff]
        %v1811 = vld [vmem:[%s1589 + $0xfa] sm:$0xff]
        %v1812 = vld [vmem:[%s1589 + $0x10a] sm:$0xff]
        %v1813 = vld [vmem:[%s1589 + $0x112] sm:$0xff]
        %v1814 = vld [vmem:[%s1589 + $0x122] sm:$0xff]
        %v1815 = vld [vmem:[%s1589 + $0x12a] sm:$0xff]
        %v1816 = vld [vmem:[%s1589 + $0x13a] sm:$0xff]
        %v1817 = vld [vmem:[%s1589 + $0x142] sm:$0xff]
        %v1818 = vld [vmem:[%s1589 + $0x152] sm:$0xff]
        %v1819 = vld [vmem:[%s1589 + $0x15a] sm:$0xff]
        %v1820 = vld [vmem:[%s1589 + $0x16a] sm:$0xff]
        %v1821 = vld [vmem:[%s1589 + $0x172] sm:$0xff]
        %v1822 = vlaneseq
        %v1823 = vshrl.u32 %v1822, 7
        %v1824 = vsub.s32 0, %v1823
        %v1825 = vrot.slane %v1020, %v1824
        %v1826 = vmul.f32 %v1790, %v1825
        %v1827 = vmul.f32 %v1791, %v1825
        %v1828 = vmul.f32 %v1792, %v1825
        %v1829 = vmul.f32 %v1793, %v1825
        %v1830 = vmul.f32 %v1794, %v1825
        %v1831 = vmul.f32 %v1795, %v1825
        %v1832 = vmul.f32 %v1796, %v1825
        %v1833 = vmul.f32 %v1797, %v1825
        %v1834 = vmul.f32 %v1798, %v1825
        %v1835 = vmul.f32 %v1799, %v1825
        %v1836 = vmul.f32 %v1800, %v1825
        %v1837 = vmul.f32 %v1801, %v1825
        %v1838 = vmul.f32 %v1802, %v1825
        %v1839 = vmul.f32 %v1803, %v1825
        %v1840 = vmul.f32 %v1804, %v1825
        %v1841 = vmul.f32 %v1805, %v1825
        %v1842 = vmul.f32 %v1806, %v1825
        %v1843 = vmul.f32 %v1807, %v1825
        %v1844 = vmul.f32 %v1808, %v1825
        %v1845 = vmul.f32 %v1809, %v1825
        %v1846 = vmul.f32 %v1810, %v1825
        %v1847 = vmul.f32 %v1811, %v1825
        %v1848 = vmul.f32 %v1812, %v1825
        %v1849 = vmul.f32 %v1813, %v1825
        %v1850 = vmul.f32 %v1814, %v1825
        %v1851 = vmul.f32 %v1815, %v1825
        %v1852 = vmul.f32 %v1816, %v1825
        %v1853 = vmul.f32 %v1817, %v1825
        %v1854 = vmul.f32 %v1818, %v1825
        %v1855 = vmul.f32 %v1819, %v1825
        %v1856 = vmul.f32 %v1820, %v1825
        %v1857 = vmul.f32 %v1821, %v1825
        %v1858 = vadd.f32 %v1758, %v1826
        %v1859 = vadd.f32 %v1759, %v1827
        %v1860 = vadd.f32 %v1760, %v1828
        %v1861 = vadd.f32 %v1761, %v1829
        %v1862 = vadd.f32 %v1762, %v1830
        %v1863 = vadd.f32 %v1763, %v1831
        %v1864 = vadd.f32 %v1764, %v1832
        %v1865 = vadd.f32 %v1765, %v1833
        %v1866 = vadd.f32 %v1766, %v1834
        %v1867 = vadd.f32 %v1767, %v1835
        %v1868 = vadd.f32 %v1768, %v1836
        %v1869 = vadd.f32 %v1769, %v1837
        %v1870 = vadd.f32 %v1770, %v1838
        %v1871 = vadd.f32 %v1771, %v1839
        %v1872 = vadd.f32 %v1772, %v1840
        %v1873 = vadd.f32 %v1773, %v1841
        %v1874 = vadd.f32 %v1774, %v1842
        %v1875 = vadd.f32 %v1775, %v1843
        %v1876 = vadd.f32 %v1776, %v1844
        %v1877 = vadd.f32 %v1777, %v1845
        %v1878 = vadd.f32 %v1778, %v1846
        %v1879 = vadd.f32 %v1779, %v1847
        %v1880 = vadd.f32 %v1780, %v1848
        %v1881 = vadd.f32 %v1781, %v1849
        %v1882 = vadd.f32 %v1782, %v1850
        %v1883 = vadd.f32 %v1783, %v1851
        %v1884 = vadd.f32 %v1784, %v1852
        %v1885 = vadd.f32 %v1785, %v1853
        %v1886 = vadd.f32 %v1786, %v1854
        %v1887 = vadd.f32 %v1787, %v1855
        %v1888 = vadd.f32 %v1788, %v1856
        %v1889 = vadd.f32 %v1789, %v1857
        %v1890 = vld [vmem:[%s508] sm:$0x1]
        %v1892 = vlaneseq
        %v1893 = vshrl.u32 %v1892, 7
        %v1894 = vsub.s32 0, %v1893
        %v1895 = vrot.slane %v1890, %v1894
        %v1897 = vmul.f32 %v1858, %v1895
        %v1898 = vmul.f32 %v1859, %v1895
        %v1899 = vmul.f32 %v1860, %v1895
        %v1900 = vmul.f32 %v1861, %v1895
        %v1901 = vmul.f32 %v1862, %v1895
        %v1902 = vmul.f32 %v1863, %v1895
        %v1903 = vmul.f32 %v1864, %v1895
        %v1904 = vmul.f32 %v1865, %v1895
        %v1905 = vmul.f32 %v1866, %v1895
        %v1906 = vmul.f32 %v1867, %v1895
        %v1907 = vmul.f32 %v1868, %v1895
        %v1908 = vmul.f32 %v1869, %v1895
        %v1909 = vmul.f32 %v1870, %v1895
        %v1910 = vmul.f32 %v1871, %v1895
        %v1911 = vmul.f32 %v1872, %v1895
        %v1912 = vmul.f32 %v1873, %v1895
        %v1913 = vmul.f32 %v1874, %v1895
        %v1914 = vmul.f32 %v1875, %v1895
        %v1915 = vmul.f32 %v1876, %v1895
        %v1916 = vmul.f32 %v1877, %v1895
        %v1917 = vmul.f32 %v1878, %v1895
        %v1918 = vmul.f32 %v1879, %v1895
        %v1919 = vmul.f32 %v1880, %v1895
        %v1920 = vmul.f32 %v1881, %v1895
        %v1921 = vmul.f32 %v1882, %v1895
        %v1922 = vmul.f32 %v1883, %v1895
        %v1923 = vmul.f32 %v1884, %v1895
        %v1924 = vmul.f32 %v1885, %v1895
        %v1925 = vmul.f32 %v1886, %v1895
        %v1926 = vmul.f32 %v1887, %v1895
        %v1927 = vmul.f32 %v1888, %v1895
        %v1928 = vmul.f32 %v1889, %v1895
        %v1929 = vld [vmem:[%s511] sm:$0x1]
        %v1931 = vlaneseq
        %v1932 = vshrl.u32 %v1931, 7
        %v1933 = vsub.s32 0, %v1932
        %v1934 = vrot.slane %v1929, %v1933
        %v1936 = vadd.f32 %v1897, %v1934
        %v1937 = vadd.f32 %v1898, %v1934
        %v1938 = vadd.f32 %v1899, %v1934
        %v1939 = vadd.f32 %v1900, %v1934
        %v1940 = vadd.f32 %v1901, %v1934
        %v1941 = vadd.f32 %v1902, %v1934
        %v1942 = vadd.f32 %v1903, %v1934
        %v1943 = vadd.f32 %v1904, %v1934
        %v1944 = vadd.f32 %v1905, %v1934
        %v1945 = vadd.f32 %v1906, %v1934
        %v1946 = vadd.f32 %v1907, %v1934
        %v1947 = vadd.f32 %v1908, %v1934
        %v1948 = vadd.f32 %v1909, %v1934
        %v1949 = vadd.f32 %v1910, %v1934
        %v1950 = vadd.f32 %v1911, %v1934
        %v1951 = vadd.f32 %v1912, %v1934
        %v1952 = vadd.f32 %v1913, %v1934
        %v1953 = vadd.f32 %v1914, %v1934
        %v1954 = vadd.f32 %v1915, %v1934
        %v1955 = vadd.f32 %v1916, %v1934
        %v1956 = vadd.f32 %v1917, %v1934
        %v1957 = vadd.f32 %v1918, %v1934
        %v1958 = vadd.f32 %v1919, %v1934
        %v1959 = vadd.f32 %v1920, %v1934
        %v1960 = vadd.f32 %v1921, %v1934
        %v1961 = vadd.f32 %v1922, %v1934
        %v1962 = vadd.f32 %v1923, %v1934
        %v1963 = vadd.f32 %v1924, %v1934
        %v1964 = vadd.f32 %v1925, %v1934
        %v1965 = vadd.f32 %v1926, %v1934
        %v1966 = vadd.f32 %v1927, %v1934
        %v1967 = vadd.f32 %v1928, %v1934
        %v1968 = vmax.f32 %v1936, 0.0
        %v1969 = vmax.f32 %v1937, 0.0
        %v1970 = vmax.f32 %v1938, 0.0
        %v1971 = vmax.f32 %v1939, 0.0
        %v1972 = vmax.f32 %v1940, 0.0
        %v1973 = vmax.f32 %v1941, 0.0
        %v1974 = vmax.f32 %v1942, 0.0
        %v1975 = vmax.f32 %v1943, 0.0
        %v1976 = vmax.f32 %v1944, 0.0
        %v1977 = vmax.f32 %v1945, 0.0
        %v1978 = vmax.f32 %v1946, 0.0
        %v1979 = vmax.f32 %v1947, 0.0
        %v1980 = vmax.f32 %v1948, 0.0
        %v1981 = vmax.f32 %v1949, 0.0
        %v1982 = vmax.f32 %v1950, 0.0
        %v1983 = vmax.f32 %v1951, 0.0
        %v1984 = vmax.f32 %v1952, 0.0
        %v1985 = vmax.f32 %v1953, 0.0
        %v1986 = vmax.f32 %v1954, 0.0
        %v1987 = vmax.f32 %v1955, 0.0
        %v1988 = vmax.f32 %v1956, 0.0
        %v1989 = vmax.f32 %v1957, 0.0
        %v1990 = vmax.f32 %v1958, 0.0
        %v1991 = vmax.f32 %v1959, 0.0
        %v1992 = vmax.f32 %v1960, 0.0
        %v1993 = vmax.f32 %v1961, 0.0
        %v1994 = vmax.f32 %v1962, 0.0
        %v1995 = vmax.f32 %v1963, 0.0
        %v1996 = vmax.f32 %v1964, 0.0
        %v1997 = vmax.f32 %v1965, 0.0
        %v1998 = vmax.f32 %v1966, 0.0
        %v1999 = vmax.f32 %v1967, 0.0
        %v2000 = vmin.f32 %v1968, 6.0
        %v2001 = vmin.f32 %v1969, 6.0
        %v2002 = vmin.f32 %v1970, 6.0
        %v2003 = vmin.f32 %v1971, 6.0
        %v2004 = vmin.f32 %v1972, 6.0
        %v2005 = vmin.f32 %v1973, 6.0
        %v2006 = vmin.f32 %v1974, 6.0
        %v2007 = vmin.f32 %v1975, 6.0
        %v2008 = vmin.f32 %v1976, 6.0
        %v2009 = vmin.f32 %v1977, 6.0
        %v2010 = vmin.f32 %v1978, 6.0
        %v2011 = vmin.f32 %v1979, 6.0
        %v2012 = vmin.f32 %v1980, 6.0
        %v2013 = vmin.f32 %v1981, 6.0
        %v2014 = vmin.f32 %v1982, 6.0
        %v2015 = vmin.f32 %v1983, 6.0
        %v2016 = vmin.f32 %v1984, 6.0
        %v2017 = vmin.f32 %v1985, 6.0
        %v2018 = vmin.f32 %v1986, 6.0
        %v2019 = vmin.f32 %v1987, 6.0
        %v2020 = vmin.f32 %v1988, 6.0
        %v2021 = vmin.f32 %v1989, 6.0
        %v2022 = vmin.f32 %v1990, 6.0
        %v2023 = vmin.f32 %v1991, 6.0
        %v2024 = vmin.f32 %v1992, 6.0
        %v2025 = vmin.f32 %v1993, 6.0
        %v2026 = vmin.f32 %v1994, 6.0
        %v2027 = vmin.f32 %v1995, 6.0
        %v2028 = vmin.f32 %v1996, 6.0
        %v2029 = vmin.f32 %v1997, 6.0
        %v2030 = vmin.f32 %v1998, 6.0
        %v2031 = vmin.f32 %v1999, 6.0
        %v2032 = vld [vmem:[#allocation9] sm:$0xff]
        %v2033 = vld [vmem:[#allocation9 + $0x8] sm:$0xff]
        %v2034 = vld [vmem:[#allocation9 + $0x10] sm:$0xff]
        %v2035 = vld [vmem:[#allocation9 + $0x18] sm:$0xff]
        %v2036 = vld [vmem:[#allocation9 + $0x20] sm:$0xff]
        %v2037 = vld [vmem:[#allocation9 + $0x28] sm:$0xff]
        %v2038 = vld [vmem:[#allocation9 + $0x30] sm:$0xff]
        %v2039 = vld [vmem:[#allocation9 + $0x38] sm:$0xff]
        %v2040 = vld [vmem:[#allocation9 + $0x40] sm:$0xff]
        %v2041 = vld [vmem:[#allocation9 + $0x48] sm:$0xff]
        %v2042 = vld [vmem:[#allocation9 + $0x50] sm:$0xff]
        %v2043 = vld [vmem:[#allocation9 + $0x58] sm:$0xff]
        %v2044 = vld [vmem:[#allocation9 + $0x60] sm:$0xff]
        %v2045 = vld [vmem:[#allocation9 + $0x68] sm:$0xff]
        %v2046 = vld [vmem:[#allocation9 + $0x70] sm:$0xff]
        %v2047 = vld [vmem:[#allocation9 + $0x78] sm:$0xff]
        %2048 = vmatprep.subr.mxu0 0.0
        %2049 = vmatpush1.msra.mxu0 %v2032
        %2050 = vmatprep.subr.mxu0 0.0
        %2051 = vmatpush1.msra.mxu0 %v2033
        %2052 = vmatprep.subr.mxu0 0.0
        %2053 = vmatpush1.msra.mxu0 %v2034
        %2054 = vmatprep.subr.mxu0 0.0
        %2055 = vmatpush1.msra.mxu0 %v2035
        %2056 = vmatprep.subr.mxu0 0.0
        %2057 = vmatpush1.msra.mxu0 %v2036
        %2058 = vmatprep.subr.mxu0 0.0
        %2059 = vmatpush1.msra.mxu0 %v2037
        %2060 = vmatprep.subr.mxu0 0.0
        %2061 = vmatpush1.msra.mxu0 %v2038
        %2062 = vmatprep.subr.mxu0 0.0
        %2063 = vmatpush1.msra.mxu0 %v2039
        %2064 = vmatprep.subr.mxu0 0.0
        %2065 = vmatpush1.msra.mxu0 %v2040
        %2066 = vmatprep.subr.mxu0 0.0
        %2067 = vmatpush1.msra.mxu0 %v2041
        %2068 = vmatprep.subr.mxu0 0.0
        %2069 = vmatpush1.msra.mxu0 %v2042
        %2070 = vmatprep.subr.mxu0 0.0
        %2071 = vmatpush1.msra.mxu0 %v2043
        %2072 = vmatprep.subr.mxu0 0.0
        %2073 = vmatpush1.msra.mxu0 %v2044
        %2074 = vmatprep.subr.mxu0 0.0
        %2075 = vmatpush1.msra.mxu0 %v2045
        %2076 = vmatprep.subr.mxu0 0.0
        %2077 = vmatpush1.msra.mxu0 %v2046
        %2078 = vmatprep.subr.mxu0 0.0
        %2079 = vmatpush1.msra.mxu0 %v2047
        %2080 = vmatprep.subr.mxu0 0.0
        %2081 = vmatpush1.msra.mxu0 0.0
        %2082 = vmatprep.subr.mxu0 0.0
        %2083 = vmatpush1.msra.mxu0 0.0
        %2084 = vmatprep.subr.mxu0 0.0
        %2085 = vmatpush1.msra.mxu0 0.0
        %2086 = vmatprep.subr.mxu0 0.0
        %2087 = vmatpush1.msra.mxu0 0.0
        %2088 = vmatprep.subr.mxu0 0.0
        %2089 = vmatpush1.msra.mxu0 0.0
        %2090 = vmatprep.subr.mxu0 0.0
        %2091 = vmatpush1.msra.mxu0 0.0
        %2092 = vmatprep.subr.mxu0 0.0
        %2093 = vmatpush1.msra.mxu0 0.0
        %2094 = vmatprep.subr.mxu0 0.0
        %2095 = vmatpush1.msra.mxu0 0.0
        %2096 = vmatprep.subr.mxu0 0.0
        %2097 = vmatpush1.msra.mxu0 0.0
        %2098 = vmatprep.subr.mxu0 0.0
        %2099 = vmatpush1.msra.mxu0 0.0
        %2100 = vmatprep.subr.mxu0 0.0
        %2101 = vmatpush1.msra.mxu0 0.0
        %2102 = vmatprep.subr.mxu0 0.0
        %2103 = vmatpush1.msra.mxu0 0.0
        %2104 = vmatprep.subr.mxu0 0.0
        %2105 = vmatpush1.msra.mxu0 0.0
        %2106 = vmatprep.subr.mxu0 0.0
        %2107 = vmatpush1.msra.mxu0 0.0
        %2108 = vmatprep.subr.mxu0 0.0
        %2109 = vmatpush1.msra.mxu0 0.0
        %2110 = vmatprep.subr.mxu0 0.0
        %2111 = vmatpush1.msra.mxu0 0.0
        %2112 = vmatprep.mubr.f32.mxu0 0.0
        %2113 = vmatmul.mubr.f32.gmra.mrb[0].mxu0 %v2000
        %v2114 = vpop.f32.mrb[0].mxu0
        %v2115 = vadd.f32 0.0, %v2114
        %v2116 = vpop.f32.mrb[0].mxu0
        %2117 = vmatprep.mubr.f32.mxu0 0.0
        %2118 = vmatmul.mubr.f32.gmra.mrb[0].mxu0 %v2001
        %v2119 = vpop.f32.mrb[0].mxu0
        %v2120 = vadd.f32 0.0, %v2119
        %v2121 = vpop.f32.mrb[0].mxu0
        %2122 = vmatprep.mubr.f32.mxu0 0.0
        %2123 = vmatmul.mubr.f32.gmra.mrb[0].mxu0 %v2002
        %v2124 = vpop.f32.mrb[0].mxu0
        %v2125 = vadd.f32 0.0, %v2124
        %v2126 = vpop.f32.mrb[0].mxu0
        %2127 = vmatprep.mubr.f32.mxu0 0.0
        %2128 = vmatmul.mubr.f32.gmra.mrb[0].mxu0 %v2003
        %v2129 = vpop.f32.mrb[0].mxu0
        %v2130 = vadd.f32 0.0, %v2129
        %v2131 = vpop.f32.mrb[0].mxu0
        %2132 = vmatprep.mubr.f32.mxu0 0.0
        %2133 = vmatmul.mubr.f32.gmra.mrb[0].mxu0 %v2004
        %v2134 = vpop.f32.mrb[0].mxu0
        %v2135 = vadd.f32 0.0, %v2134
        %v2136 = vpop.f32.mrb[0].mxu0
        %2137 = vmatprep.mubr.f32.mxu0 0.0
        %2138 = vmatmul.mubr.f32.gmra.mrb[0].mxu0 %v2005
        %v2139 = vpop.f32.mrb[0].mxu0
        %v2140 = vadd.f32 0.0, %v2139
        %v2141 = vpop.f32.mrb[0].mxu0
        %2142 = vmatprep.mubr.f32.mxu0 0.0
        %2143 = vmatmul.mubr.f32.gmra.mrb[0].mxu0 %v2006
        %v2144 = vpop.f32.mrb[0].mxu0
        %v2145 = vadd.f32 0.0, %v2144
        %v2146 = vpop.f32.mrb[0].mxu0
        %2147 = vmatprep.mubr.f32.mxu0 0.0
        %2148 = vmatmul.mubr.f32.gmra.mrb[0].mxu0 %v2007
        %v2149 = vpop.f32.mrb[0].mxu0
        %v2150 = vadd.f32 0.0, %v2149
        %v2151 = vpop.f32.mrb[0].mxu0
        %2152 = vmatprep.mubr.f32.mxu0 0.0
        %2153 = vmatmul.mubr.f32.gmra.mrb[0].mxu0 %v2008
        %v2154 = vpop.f32.mrb[0].mxu0
        %v2155 = vadd.f32 0.0, %v2154
        %v2156 = vpop.f32.mrb[0].mxu0
        %2157 = vmatprep.mubr.f32.mxu0 0.0
        %2158 = vmatmul.mubr.f32.gmra.mrb[0].mxu0 %v2009
        %v2159 = vpop.f32.mrb[0].mxu0
        %v2160 = vadd.f32 0.0, %v2159
        %v2161 = vpop.f32.mrb[0].mxu0
        %2162 = vmatprep.mubr.f32.mxu0 0.0
        %2163 = vmatmul.mubr.f32.gmra.mrb[0].mxu0 %v2010
        %v2164 = vpop.f32.mrb[0].mxu0
        %v2165 = vadd.f32 0.0, %v2164
        %v2166 = vpop.f32.mrb[0].mxu0
        %2167 = vmatprep.mubr.f32.mxu0 0.0
        %2168 = vmatmul.mubr.f32.gmra.mrb[0].mxu0 %v2011
        %v2169 = vpop.f32.mrb[0].mxu0
        %v2170 = vadd.f32 0.0, %v2169
        %v2171 = vpop.f32.mrb[0].mxu0
        %2172 = vmatprep.mubr.f32.mxu0 0.0
        %2173 = vmatmul.mubr.f32.gmra.mrb[0].mxu0 %v2012
        %v2174 = vpop.f32.mrb[0].mxu0
        %v2175 = vadd.f32 0.0, %v2174
        %v2176 = vpop.f32.mrb[0].mxu0
        %2177 = vmatprep.mubr.f32.mxu0 0.0
        %2178 = vmatmul.mubr.f32.gmra.mrb[0].mxu0 %v2013
        %v2179 = vpop.f32.mrb[0].mxu0
        %v2180 = vadd.f32 0.0, %v2179
        %v2181 = vpop.f32.mrb[0].mxu0
        %2182 = vmatprep.mubr.f32.mxu0 0.0
        %2183 = vmatmul.mubr.f32.gmra.mrb[0].mxu0 %v2014
        %v2184 = vpop.f32.mrb[0].mxu0
        %v2185 = vadd.f32 0.0, %v2184
        %v2186 = vpop.f32.mrb[0].mxu0
        %2187 = vmatprep.mubr.f32.mxu0 0.0
        %2188 = vmatmul.mubr.f32.gmra.mrb[0].mxu0 %v2015
        %v2189 = vpop.f32.mrb[0].mxu0
        %v2190 = vadd.f32 0.0, %v2189
        %v2191 = vpop.f32.mrb[0].mxu0
        %2192 = vmatprep.mubr.f32.mxu0 0.0
        %2193 = vmatmul.mubr.f32.gmra.mrb[0].mxu0 %v2016
        %v2194 = vpop.f32.mrb[0].mxu0
        %v2195 = vadd.f32 0.0, %v2194
        %v2196 = vpop.f32.mrb[0].mxu0
        %2197 = vmatprep.mubr.f32.mxu0 0.0
        %2198 = vmatmul.mubr.f32.gmra.mrb[0].mxu0 %v2017
        %v2199 = vpop.f32.mrb[0].mxu0
        %v2200 = vadd.f32 0.0, %v2199
        %v2201 = vpop.f32.mrb[0].mxu0
        %2202 = vmatprep.mubr.f32.mxu0 0.0
        %2203 = vmatmul.mubr.f32.gmra.mrb[0].mxu0 %v2018
        %v2204 = vpop.f32.mrb[0].mxu0
        %v2205 = vadd.f32 0.0, %v2204
        %v2206 = vpop.f32.mrb[0].mxu0
        %2207 = vmatprep.mubr.f32.mxu0 0.0
        %2208 = vmatmul.mubr.f32.gmra.mrb[0].mxu0 %v2019
        %v2209 = vpop.f32.mrb[0].mxu0
        %v2210 = vadd.f32 0.0, %v2209
        %v2211 = vpop.f32.mrb[0].mxu0
        %2212 = vmatprep.mubr.f32.mxu0 0.0
        %2213 = vmatmul.mubr.f32.gmra.mrb[0].mxu0 %v2020
        %v2214 = vpop.f32.mrb[0].mxu0
        %v2215 = vadd.f32 0.0, %v2214
        %v2216 = vpop.f32.mrb[0].mxu0
        %2217 = vmatprep.mubr.f32.mxu0 0.0
        %2218 = vmatmul.mubr.f32.gmra.mrb[0].mxu0 %v2021
        %v2219 = vpop.f32.mrb[0].mxu0
        %v2220 = vadd.f32 0.0, %v2219
        %v2221 = vpop.f32.mrb[0].mxu0
        %2222 = vmatprep.mubr.f32.mxu0 0.0
        %2223 = vmatmul.mubr.f32.gmra.mrb[0].mxu0 %v2022
        %v2224 = vpop.f32.mrb[0].mxu0
        %v2225 = vadd.f32 0.0, %v2224
        %v2226 = vpop.f32.mrb[0].mxu0
        %2227 = vmatprep.mubr.f32.mxu0 0.0
        %2228 = vmatmul.mubr.f32.gmra.mrb[0].mxu0 %v2023
        %v2229 = vpop.f32.mrb[0].mxu0
        %v2230 = vadd.f32 0.0, %v2229
        %v2231 = vpop.f32.mrb[0].mxu0
        %2232 = vmatprep.mubr.f32.mxu0 0.0
        %2233 = vmatmul.mubr.f32.gmra.mrb[0].mxu0 %v2024
        %v2234 = vpop.f32.mrb[0].mxu0
        %v2235 = vadd.f32 0.0, %v2234
        %v2236 = vpop.f32.mrb[0].mxu0
        %2237 = vmatprep.mubr.f32.mxu0 0.0
        %2238 = vmatmul.mubr.f32.gmra.mrb[0].mxu0 %v2025
        %v2239 = vpop.f32.mrb[0].mxu0
        %v2240 = vadd.f32 0.0, %v2239
        %v2241 = vpop.f32.mrb[0].mxu0
        %2242 = vmatprep.mubr.f32.mxu0 0.0
        %2243 = vmatmul.mubr.f32.gmra.mrb[0].mxu0 %v2026
        %v2244 = vpop.f32.mrb[0].mxu0
        %v2245 = vadd.f32 0.0, %v2244
        %v2246 = vpop.f32.mrb[0].mxu0
        %2247 = vmatprep.mubr.f32.mxu0 0.0
        %2248 = vmatmul.mubr.f32.gmra.mrb[0].mxu0 %v2027
        %v2249 = vpop.f32.mrb[0].mxu0
        %v2250 = vadd.f32 0.0, %v2249
        %v2251 = vpop.f32.mrb[0].mxu0
        %2252 = vmatprep.mubr.f32.mxu0 0.0
        %2253 = vmatmul.mubr.f32.gmra.mrb[0].mxu0 %v2028
        %v2254 = vpop.f32.mrb[0].mxu0
        %v2255 = vadd.f32 0.0, %v2254
        %v2256 = vpop.f32.mrb[0].mxu0
        %2257 = vmatprep.mubr.f32.mxu0 0.0
        %2258 = vmatmul.mubr.f32.gmra.mrb[0].mxu0 %v2029
        %v2259 = vpop.f32.mrb[0].mxu0
        %v2260 = vadd.f32 0.0, %v2259
        %v2261 = vpop.f32.mrb[0].mxu0
        %2262 = vmatprep.mubr.f32.mxu0 0.0
        %2263 = vmatmul.mubr.f32.gmra.mrb[0].mxu0 %v2030
        %v2264 = vpop.f32.mrb[0].mxu0
        %v2265 = vadd.f32 0.0, %v2264
        %v2266 = vpop.f32.mrb[0].mxu0
        %2267 = vmatprep.mubr.f32.mxu0 0.0
        %2268 = vmatmul.mubr.f32.gmra.mrb[0].mxu0 %v2031
        %v2269 = vpop.f32.mrb[0].mxu0
        %v2270 = vadd.f32 0.0, %v2269
        %v2271 = vpop.f32.mrb[0].mxu0
        %2272 = vdwg.mxu0
        // Predicated region
        $region81: #{tpu_custom_call.1} parent=59 // pred_check
          %p2273 = pneg %p513
        $region82: #{tpu_custom_call.1} parent=59 // pred_check_branch
          %2275 = sbr.rel (%p2273) target = $region84
        $region83: #{tpu_custom_call.1} parent=59 // pred_region
          %2276 = vst [vmem:[%s499] sm:$0xff] %v2115
          %2277 = vst [vmem:[%s499 + $0x8] sm:$0xff] %v2120
          %2278 = vst [vmem:[%s499 + $0x10] sm:$0xff] %v2125
          %2279 = vst [vmem:[%s499 + $0x18] sm:$0xff] %v2130
          %2280 = vst [vmem:[%s499 + $0x20] sm:$0xff] %v2135
          %2281 = vst [vmem:[%s499 + $0x28] sm:$0xff] %v2140
          %2282 = vst [vmem:[%s499 + $0x30] sm:$0xff] %v2145
          %2283 = vst [vmem:[%s499 + $0x38] sm:$0xff] %v2150
          %2284 = vst [vmem:[%s499 + $0x40] sm:$0xff] %v2155
          %2285 = vst [vmem:[%s499 + $0x48] sm:$0xff] %v2160
          %2286 = vst [vmem:[%s499 + $0x50] sm:$0xff] %v2165
          %2287 = vst [vmem:[%s499 + $0x58] sm:$0xff] %v2170
          %2288 = vst [vmem:[%s499 + $0x60] sm:$0xff] %v2175
          %2289 = vst [vmem:[%s499 + $0x68] sm:$0xff] %v2180
          %2290 = vst [vmem:[%s499 + $0x70] sm:$0xff] %v2185
          %2291 = vst [vmem:[%s499 + $0x78] sm:$0xff] %v2190
          %2292 = vst [vmem:[%s499 + $0x80] sm:$0xff] %v2195
          %2293 = vst [vmem:[%s499 + $0x88] sm:$0xff] %v2200
          %2294 = vst [vmem:[%s499 + $0x90] sm:$0xff] %v2205
          %2295 = vst [vmem:[%s499 + $0x98] sm:$0xff] %v2210
          %2296 = vst [vmem:[%s499 + $0xa0] sm:$0xff] %v2215
          %2297 = vst [vmem:[%s499 + $0xa8] sm:$0xff] %v2220
          %2298 = vst [vmem:[%s499 + $0xb0] sm:$0xff] %v2225
          %2299 = vst [vmem:[%s499 + $0xb8] sm:$0xff] %v2230
          %2300 = vst [vmem:[%s499 + $0xc0] sm:$0xff] %v2235
          %2301 = vst [vmem:[%s499 + $0xc8] sm:$0xff] %v2240
          %2302 = vst [vmem:[%s499 + $0xd0] sm:$0xff] %v2245
          %2303 = vst [vmem:[%s499 + $0xd8] sm:$0xff] %v2250
          %2304 = vst [vmem:[%s499 + $0xe0] sm:$0xff] %v2255
          %2305 = vst [vmem:[%s499 + $0xe8] sm:$0xff] %v2260
          %2306 = vst [vmem:[%s499 + $0xf0] sm:$0xff] %v2265
          %2307 = vst [vmem:[%s499 + $0xf8] sm:$0xff] %v2270
        $region84: #{tpu_custom_call.1} parent=59 // pred_fallthru
          _
        %p2308 = scmp.gt.s32.totalorder %s34, 0
        // Predicated region
        $region85: #{tpu_custom_call.1} parent=59 // pred_check
          %p2309 = pneg %p2308
        $region86: #{tpu_custom_call.1} parent=59 // pred_check_branch
          %2311 = sbr.rel (%p2309) target = $region88
        $region87: #{tpu_custom_call.1} parent=59 // pred_region
          %v2312 = vld [vmem:[%s499] sm:$0xff]
          %v2313 = vld [vmem:[%s499 + $0x8] sm:$0xff]
          %v2314 = vld [vmem:[%s499 + $0x10] sm:$0xff]
          %v2315 = vld [vmem:[%s499 + $0x18] sm:$0xff]
          %v2316 = vld [vmem:[%s499 + $0x20] sm:$0xff]
          %v2317 = vld [vmem:[%s499 + $0x28] sm:$0xff]
          %v2318 = vld [vmem:[%s499 + $0x30] sm:$0xff]
          %v2319 = vld [vmem:[%s499 + $0x38] sm:$0xff]
          %v2320 = vld [vmem:[%s499 + $0x40] sm:$0xff]
          %v2321 = vld [vmem:[%s499 + $0x48] sm:$0xff]
          %v2322 = vld [vmem:[%s499 + $0x50] sm:$0xff]
          %v2323 = vld [vmem:[%s499 + $0x58] sm:$0xff]
          %v2324 = vld [vmem:[%s499 + $0x60] sm:$0xff]
          %v2325 = vld [vmem:[%s499 + $0x68] sm:$0xff]
          %v2326 = vld [vmem:[%s499 + $0x70] sm:$0xff]
          %v2327 = vld [vmem:[%s499 + $0x78] sm:$0xff]
          %v2328 = vld [vmem:[%s499 + $0x80] sm:$0xff]
          %v2329 = vld [vmem:[%s499 + $0x88] sm:$0xff]
          %v2330 = vld [vmem:[%s499 + $0x90] sm:$0xff]
          %v2331 = vld [vmem:[%s499 + $0x98] sm:$0xff]
          %v2332 = vld [vmem:[%s499 + $0xa0] sm:$0xff]
          %v2333 = vld [vmem:[%s499 + $0xa8] sm:$0xff]
          %v2334 = vld [vmem:[%s499 + $0xb0] sm:$0xff]
          %v2335 = vld [vmem:[%s499 + $0xb8] sm:$0xff]
          %v2336 = vld [vmem:[%s499 + $0xc0] sm:$0xff]
          %v2337 = vld [vmem:[%s499 + $0xc8] sm:$0xff]
          %v2338 = vld [vmem:[%s499 + $0xd0] sm:$0xff]
          %v2339 = vld [vmem:[%s499 + $0xd8] sm:$0xff]
          %v2340 = vld [vmem:[%s499 + $0xe0] sm:$0xff]
          %v2341 = vld [vmem:[%s499 + $0xe8] sm:$0xff]
          %v2342 = vld [vmem:[%s499 + $0xf0] sm:$0xff]
          %v2343 = vld [vmem:[%s499 + $0xf8] sm:$0xff]
          %v2344 = vadd.f32 %v2312, %v2115
          %v2345 = vadd.f32 %v2313, %v2120
          %v2346 = vadd.f32 %v2314, %v2125
          %v2347 = vadd.f32 %v2315, %v2130
          %v2348 = vadd.f32 %v2316, %v2135
          %v2349 = vadd.f32 %v2317, %v2140
          %v2350 = vadd.f32 %v2318, %v2145
          %v2351 = vadd.f32 %v2319, %v2150
          %v2352 = vadd.f32 %v2320, %v2155
          %v2353 = vadd.f32 %v2321, %v2160
          %v2354 = vadd.f32 %v2322, %v2165
          %v2355 = vadd.f32 %v2323, %v2170
          %v2356 = vadd.f32 %v2324, %v2175
          %v2357 = vadd.f32 %v2325, %v2180
          %v2358 = vadd.f32 %v2326, %v2185
          %v2359 = vadd.f32 %v2327, %v2190
          %v2360 = vadd.f32 %v2328, %v2195
          %v2361 = vadd.f32 %v2329, %v2200
          %v2362 = vadd.f32 %v2330, %v2205
          %v2363 = vadd.f32 %v2331, %v2210
          %v2364 = vadd.f32 %v2332, %v2215
          %v2365 = vadd.f32 %v2333, %v2220
          %v2366 = vadd.f32 %v2334, %v2225
          %v2367 = vadd.f32 %v2335, %v2230
          %v2368 = vadd.f32 %v2336, %v2235
          %v2369 = vadd.f32 %v2337, %v2240
          %v2370 = vadd.f32 %v2338, %v2245
          %v2371 = vadd.f32 %v2339, %v2250
          %v2372 = vadd.f32 %v2340, %v2255
          %v2373 = vadd.f32 %v2341, %v2260
          %v2374 = vadd.f32 %v2342, %v2265
          %v2375 = vadd.f32 %v2343, %v2270
          %2376 = vst [vmem:[%s499] sm:$0xff] %v2344
          %2377 = vst [vmem:[%s499 + $0x8] sm:$0xff] %v2345
          %2378 = vst [vmem:[%s499 + $0x10] sm:$0xff] %v2346
          %2379 = vst [vmem:[%s499 + $0x18] sm:$0xff] %v2347
          %2380 = vst [vmem:[%s499 + $0x20] sm:$0xff] %v2348
          %2381 = vst [vmem:[%s499 + $0x28] sm:$0xff] %v2349
          %2382 = vst [vmem:[%s499 + $0x30] sm:$0xff] %v2350
          %2383 = vst [vmem:[%s499 + $0x38] sm:$0xff] %v2351
          %2384 = vst [vmem:[%s499 + $0x40] sm:$0xff] %v2352
          %2385 = vst [vmem:[%s499 + $0x48] sm:$0xff] %v2353
          %2386 = vst [vmem:[%s499 + $0x50] sm:$0xff] %v2354
          %2387 = vst [vmem:[%s499 + $0x58] sm:$0xff] %v2355
          %2388 = vst [vmem:[%s499 + $0x60] sm:$0xff] %v2356
          %2389 = vst [vmem:[%s499 + $0x68] sm:$0xff] %v2357
          %2390 = vst [vmem:[%s499 + $0x70] sm:$0xff] %v2358
          %2391 = vst [vmem:[%s499 + $0x78] sm:$0xff] %v2359
          %2392 = vst [vmem:[%s499 + $0x80] sm:$0xff] %v2360
          %2393 = vst [vmem:[%s499 + $0x88] sm:$0xff] %v2361
          %2394 = vst [vmem:[%s499 + $0x90] sm:$0xff] %v2362
          %2395 = vst [vmem:[%s499 + $0x98] sm:$0xff] %v2363
          %2396 = vst [vmem:[%s499 + $0xa0] sm:$0xff] %v2364
          %2397 = vst [vmem:[%s499 + $0xa8] sm:$0xff] %v2365
          %2398 = vst [vmem:[%s499 + $0xb0] sm:$0xff] %v2366
          %2399 = vst [vmem:[%s499 + $0xb8] sm:$0xff] %v2367
          %2400 = vst [vmem:[%s499 + $0xc0] sm:$0xff] %v2368
          %2401 = vst [vmem:[%s499 + $0xc8] sm:$0xff] %v2369
          %2402 = vst [vmem:[%s499 + $0xd0] sm:$0xff] %v2370
          %2403 = vst [vmem:[%s499 + $0xd8] sm:$0xff] %v2371
          %2404 = vst [vmem:[%s499 + $0xe0] sm:$0xff] %v2372
          %2405 = vst [vmem:[%s499 + $0xe8] sm:$0xff] %v2373
          %2406 = vst [vmem:[%s499 + $0xf0] sm:$0xff] %v2374
          %2407 = vst [vmem:[%s499 + $0xf8] sm:$0xff] %v2375
        $region88: #{tpu_custom_call.1} parent=59 // pred_fallthru
          _
        // Predicated region
        $region89: #{tpu_custom_call.1} parent=59 // pred_check
          %p2408 = pneg %p513
        $region90: #{tpu_custom_call.1} parent=59 // pred_check_branch
          %2410 = sbr.rel (%p2408) target = $region92
        $region91: #{tpu_custom_call.1} parent=59 // pred_region
          %v2411 = vld [vmem:[%s499] sm:$0xff]
          %v2412 = vld [vmem:[%s499 + $0x8] sm:$0xff]
          %v2413 = vld [vmem:[%s499 + $0x10] sm:$0xff]
          %v2414 = vld [vmem:[%s499 + $0x18] sm:$0xff]
          %v2415 = vld [vmem:[%s499 + $0x20] sm:$0xff]
          %v2416 = vld [vmem:[%s499 + $0x28] sm:$0xff]
          %v2417 = vld [vmem:[%s499 + $0x30] sm:$0xff]
          %v2418 = vld [vmem:[%s499 + $0x38] sm:$0xff]
          %v2419 = vld [vmem:[%s499 + $0x40] sm:$0xff]
          %v2420 = vld [vmem:[%s499 + $0x48] sm:$0xff]
          %v2421 = vld [vmem:[%s499 + $0x50] sm:$0xff]
          %v2422 = vld [vmem:[%s499 + $0x58] sm:$0xff]
          %v2423 = vld [vmem:[%s499 + $0x60] sm:$0xff]
          %v2424 = vld [vmem:[%s499 + $0x68] sm:$0xff]
          %v2425 = vld [vmem:[%s499 + $0x70] sm:$0xff]
          %v2426 = vld [vmem:[%s499 + $0x78] sm:$0xff]
          %v2427 = vld [vmem:[%s499 + $0x80] sm:$0xff]
          %v2428 = vld [vmem:[%s499 + $0x88] sm:$0xff]
          %v2429 = vld [vmem:[%s499 + $0x90] sm:$0xff]
          %v2430 = vld [vmem:[%s499 + $0x98] sm:$0xff]
          %v2431 = vld [vmem:[%s499 + $0xa0] sm:$0xff]
          %v2432 = vld [vmem:[%s499 + $0xa8] sm:$0xff]
          %v2433 = vld [vmem:[%s499 + $0xb0] sm:$0xff]
          %v2434 = vld [vmem:[%s499 + $0xb8] sm:$0xff]
          %v2435 = vld [vmem:[%s499 + $0xc0] sm:$0xff]
          %v2436 = vld [vmem:[%s499 + $0xc8] sm:$0xff]
          %v2437 = vld [vmem:[%s499 + $0xd0] sm:$0xff]
          %v2438 = vld [vmem:[%s499 + $0xd8] sm:$0xff]
          %v2439 = vld [vmem:[%s499 + $0xe0] sm:$0xff]
          %v2440 = vld [vmem:[%s499 + $0xe8] sm:$0xff]
          %v2441 = vld [vmem:[%s499 + $0xf0] sm:$0xff]
          %v2442 = vld [vmem:[%s499 + $0xf8] sm:$0xff]
          %v2443 = vld [vmem:[%s8] sm:$0x1]
          %v2445 = vlaneseq
          %v2446 = vshrl.u32 %v2445, 7
          %v2447 = vsub.s32 0, %v2446
          %v2448 = vrot.slane %v2443, %v2447
          %v2450 = vmul.f32 %v2411, %v2448
          %v2451 = vmul.f32 %v2412, %v2448
          %v2452 = vmul.f32 %v2413, %v2448
          %v2453 = vmul.f32 %v2414, %v2448
          %v2454 = vmul.f32 %v2415, %v2448
          %v2455 = vmul.f32 %v2416, %v2448
          %v2456 = vmul.f32 %v2417, %v2448
          %v2457 = vmul.f32 %v2418, %v2448
          %v2458 = vmul.f32 %v2419, %v2448
          %v2459 = vmul.f32 %v2420, %v2448
          %v2460 = vmul.f32 %v2421, %v2448
          %v2461 = vmul.f32 %v2422, %v2448
          %v2462 = vmul.f32 %v2423, %v2448
          %v2463 = vmul.f32 %v2424, %v2448
          %v2464 = vmul.f32 %v2425, %v2448
          %v2465 = vmul.f32 %v2426, %v2448
          %v2466 = vmul.f32 %v2427, %v2448
          %v2467 = vmul.f32 %v2428, %v2448
          %v2468 = vmul.f32 %v2429, %v2448
          %v2469 = vmul.f32 %v2430, %v2448
          %v2470 = vmul.f32 %v2431, %v2448
          %v2471 = vmul.f32 %v2432, %v2448
          %v2472 = vmul.f32 %v2433, %v2448
          %v2473 = vmul.f32 %v2434, %v2448
          %v2474 = vmul.f32 %v2435, %v2448
          %v2475 = vmul.f32 %v2436, %v2448
          %v2476 = vmul.f32 %v2437, %v2448
          %v2477 = vmul.f32 %v2438, %v2448
          %v2478 = vmul.f32 %v2439, %v2448
          %v2479 = vmul.f32 %v2440, %v2448
          %v2480 = vmul.f32 %v2441, %v2448
          %v2481 = vmul.f32 %v2442, %v2448
          %v2482 = vld [vmem:[%s9] sm:$0x1]
          %v2484 = vlaneseq
          %v2485 = vshrl.u32 %v2484, 7
          %v2486 = vsub.s32 0, %v2485
          %v2487 = vrot.slane %v2482, %v2486
          %v2489 = vadd.f32 %v2450, %v2487
          %v2490 = vadd.f32 %v2451, %v2487
          %v2491 = vadd.f32 %v2452, %v2487
          %v2492 = vadd.f32 %v2453, %v2487
          %v2493 = vadd.f32 %v2454, %v2487
          %v2494 = vadd.f32 %v2455, %v2487
          %v2495 = vadd.f32 %v2456, %v2487
          %v2496 = vadd.f32 %v2457, %v2487
          %v2497 = vadd.f32 %v2458, %v2487
          %v2498 = vadd.f32 %v2459, %v2487
          %v2499 = vadd.f32 %v2460, %v2487
          %v2500 = vadd.f32 %v2461, %v2487
          %v2501 = vadd.f32 %v2462, %v2487
          %v2502 = vadd.f32 %v2463, %v2487
          %v2503 = vadd.f32 %v2464, %v2487
          %v2504 = vadd.f32 %v2465, %v2487
          %v2505 = vadd.f32 %v2466, %v2487
          %v2506 = vadd.f32 %v2467, %v2487
          %v2507 = vadd.f32 %v2468, %v2487
          %v2508 = vadd.f32 %v2469, %v2487
          %v2509 = vadd.f32 %v2470, %v2487
          %v2510 = vadd.f32 %v2471, %v2487
          %v2511 = vadd.f32 %v2472, %v2487
          %v2512 = vadd.f32 %v2473, %v2487
          %v2513 = vadd.f32 %v2474, %v2487
          %v2514 = vadd.f32 %v2475, %v2487
          %v2515 = vadd.f32 %v2476, %v2487
          %v2516 = vadd.f32 %v2477, %v2487
          %v2517 = vadd.f32 %v2478, %v2487
          %v2518 = vadd.f32 %v2479, %v2487
          %v2519 = vadd.f32 %v2480, %v2487
          %v2520 = vadd.f32 %v2481, %v2487
          %v2521 = vadd.f32 %v2489, %v571
          %v2522 = vadd.f32 %v2490, %v572
          %v2523 = vadd.f32 %v2491, %v573
          %v2524 = vadd.f32 %v2492, %v574
          %v2525 = vadd.f32 %v2493, %v575
          %v2526 = vadd.f32 %v2494, %v576
          %v2527 = vadd.f32 %v2495, %v577
          %v2528 = vadd.f32 %v2496, %v578
          %v2529 = vadd.f32 %v2497, %v579
          %v2530 = vadd.f32 %v2498, %v580
          %v2531 = vadd.f32 %v2499, %v581
          %v2532 = vadd.f32 %v2500, %v582
          %v2533 = vadd.f32 %v2501, %v583
          %v2534 = vadd.f32 %v2502, %v584
          %v2535 = vadd.f32 %v2503, %v585
          %v2536 = vadd.f32 %v2504, %v586
          %v2537 = vadd.f32 %v2505, %v587
          %v2538 = vadd.f32 %v2506, %v588
          %v2539 = vadd.f32 %v2507, %v589
          %v2540 = vadd.f32 %v2508, %v590
          %v2541 = vadd.f32 %v2509, %v591
          %v2542 = vadd.f32 %v2510, %v592
          %v2543 = vadd.f32 %v2511, %v593
          %v2544 = vadd.f32 %v2512, %v594
          %v2545 = vadd.f32 %v2513, %v595
          %v2546 = vadd.f32 %v2514, %v596
          %v2547 = vadd.f32 %v2515, %v597
          %v2548 = vadd.f32 %v2516, %v598
          %v2549 = vadd.f32 %v2517, %v599
          %v2550 = vadd.f32 %v2518, %v600
          %v2551 = vadd.f32 %v2519, %v601
          %v2552 = vadd.f32 %v2520, %v602
          %2553 = vst [vmem:[%s499] sm:$0xff] %v2521
          %2554 = vst [vmem:[%s499 + $0x8] sm:$0xff] %v2522
          %2555 = vst [vmem:[%s499 + $0x10] sm:$0xff] %v2523
          %2556 = vst [vmem:[%s499 + $0x18] sm:$0xff] %v2524
          %2557 = vst [vmem:[%s499 + $0x20] sm:$0xff] %v2525
          %2558 = vst [vmem:[%s499 + $0x28] sm:$0xff] %v2526
          %2559 = vst [vmem:[%s499 + $0x30] sm:$0xff] %v2527
          %2560 = vst [vmem:[%s499 + $0x38] sm:$0xff] %v2528
          %2561 = vst [vmem:[%s499 + $0x40] sm:$0xff] %v2529
          %2562 = vst [vmem:[%s499 + $0x48] sm:$0xff] %v2530
          %2563 = vst [vmem:[%s499 + $0x50] sm:$0xff] %v2531
          %2564 = vst [vmem:[%s499 + $0x58] sm:$0xff] %v2532
          %2565 = vst [vmem:[%s499 + $0x60] sm:$0xff] %v2533
          %2566 = vst [vmem:[%s499 + $0x68] sm:$0xff] %v2534
          %2567 = vst [vmem:[%s499 + $0x70] sm:$0xff] %v2535
          %2568 = vst [vmem:[%s499 + $0x78] sm:$0xff] %v2536
          %2569 = vst [vmem:[%s499 + $0x80] sm:$0xff] %v2537
          %2570 = vst [vmem:[%s499 + $0x88] sm:$0xff] %v2538
          %2571 = vst [vmem:[%s499 + $0x90] sm:$0xff] %v2539
          %2572 = vst [vmem:[%s499 + $0x98] sm:$0xff] %v2540
          %2573 = vst [vmem:[%s499 + $0xa0] sm:$0xff] %v2541
          %2574 = vst [vmem:[%s499 + $0xa8] sm:$0xff] %v2542
          %2575 = vst [vmem:[%s499 + $0xb0] sm:$0xff] %v2543
          %2576 = vst [vmem:[%s499 + $0xb8] sm:$0xff] %v2544
          %2577 = vst [vmem:[%s499 + $0xc0] sm:$0xff] %v2545
          %2578 = vst [vmem:[%s499 + $0xc8] sm:$0xff] %v2546
          %2579 = vst [vmem:[%s499 + $0xd0] sm:$0xff] %v2547
          %2580 = vst [vmem:[%s499 + $0xd8] sm:$0xff] %v2548
          %2581 = vst [vmem:[%s499 + $0xe0] sm:$0xff] %v2549
          %2582 = vst [vmem:[%s499 + $0xe8] sm:$0xff] %v2550
          %2583 = vst [vmem:[%s499 + $0xf0] sm:$0xff] %v2551
          %2584 = vst [vmem:[%s499 + $0xf8] sm:$0xff] %v2552
        $region92: #{tpu_custom_call.1} parent=59 // pred_fallthru
          _
        %s2585 = sand.u32 %s299, 1
        %s2586 = scalar_lea.sflag [#allocation5], %s2585
        %s2587 = sand.u32 %s299, 1
        %s2588 = smul.addr %s2587, 256
        %s2589 = scalar_lea.vmem [#allocation11], %s2588
        // Predicated region
        $region93: #{tpu_custom_call.1} parent=59 // pred_check
          %p2590 = pneg %p309
        $region94: #{tpu_custom_call.1} parent=59 // pred_check_branch
          %2592 = sbr.rel (%p2590) target = $region96
        $region95: #{tpu_custom_call.1} parent=59 // pred_region
          %s2594 = ssub.s32 4096, 4096
          %2595 = vsyncadd %s2586, %s2594
          %s2596 = smul.addr %s33, 32
          %s2597 = smul.addr %s2596, 128
          %s2598 = scalar_lea.hbm %s10, %s2597
          %s2599 = sshll.u32 %s2589, 4
          %s2600 = int_to_ptr.vmem [resolvable:$true] %s2599
          %2605 = dma.vmem_to_hbm [thread:$0]  %s2600, 4096, %s2598, %s2586, 128, 128, 8
        $region96: #{tpu_custom_call.1} parent=59 // pred_fallthru
          _
      $region60: #{tpu_custom_call.1} parent=5 // pred_fallthru
        _
      %p2606 = scmp.le.s32.totalorder 2, %s24
      // Predicated region
      $region97: #{tpu_custom_call.1} parent=5 // pred_check
        %p2607 = pneg %p2606
      $region98: #{tpu_custom_call.1} parent=5 // pred_check_branch
        %2609 = sbr.rel (%p2607) target = $region100
      $region99: #{tpu_custom_call.1} parent=5 // pred_region
        %s2610 = ssub.s32 %s24, 2
        // Predicated region
        $region101: #{tpu_custom_call.1} parent=99 // pred_check
          %p2611 = pneg %p315
        $region102: #{tpu_custom_call.1} parent=99 // pred_check_branch
          %2613 = sbr.rel (%p2611) target = $region104
        $region103: #{tpu_custom_call.1} parent=99 // pred_region
          %s2614 = sand.u32 %s300, 1
          %s2615 = scalar_lea.sflag [#allocation5], %s2614
          %s2616 = sand.u32 %s300, 1
          %s2617 = smul.addr %s2616, 256
          %s2618 = scalar_lea.vmem [#allocation11], %s2617
          %2619 = dma.done %s2615, 4096
        $region104: #{tpu_custom_call.1} parent=99 // pred_fallthru
          _
      $region100: #{tpu_custom_call.1} parent=5 // pred_fallthru
        _
    $region6: #{tpu_custom_call.1} parent=1 // loop_footer
      %s28 = sadd.s32 1, %s24
    $region7: #{tpu_custom_call.1} parent=1 // loop_footer_branch
      %23 = sbr.rel target = $region3
    $region8: #{tpu_custom_call.1} parent=1 // loop_exit
      _
    %2620 = vsyncpa [#allocation4], 1
    %s2621 = scalar_lea.sflag [#allocation4], 1
    %2622 = vsyncpa %s2621, 1
    %2623 = vsyncpa [#allocation7], 1
    %2624 = vsyncpa [#allocation10], 1
    %2625 = vsyncpa [#allocation5], 1
    %s2626 = scalar_lea.sflag [#allocation5], 1
    %2627 = vsyncpa %s2626, 1

</llo_original>
